<compile_context>
chip_gen: v7x
topology: tpu7x:2x2x1
jax: 0.10.0
libtpu: 0.0.40
codegen_flags: <defaults>
</compile_context>

<pallas_src>
import math

import jax
import jax.numpy as jnp
from jax import lax
from jax.experimental import pallas as pl
from jax.experimental.pallas import tpu as pltpu


# --------------------------------------------------------------------------
# Gating MLP: Linear->ReLU->Linear->ReLU->Linear(no bias)->softmax.
# Tiny (B, F) problem -> single grid-less pallas_call, whole arrays in VMEM.
# --------------------------------------------------------------------------
def _gating_kernel(ug_ref, gw1_ref, gb1_ref, gw2_ref, gb2_ref, gw3_ref, prob_ref):
    f32 = jnp.float32
    g = ug_ref[...]                                                    # (B, F)
    h = jnp.maximum(
        jnp.dot(g, gw1_ref[...], preferred_element_type=f32) + gb1_ref[...], 0.0)
    h = jnp.maximum(
        jnp.dot(h, gw2_ref[...], preferred_element_type=f32) + gb2_ref[...], 0.0)
    logit = jnp.dot(h, gw3_ref[...], preferred_element_type=f32)       # (B, K)
    logit = logit - jnp.max(logit, axis=-1, keepdims=True)
    e = jnp.exp(logit)
    prob_ref[...] = e / jnp.sum(e, axis=-1, keepdims=True)


# --------------------------------------------------------------------------
# Fused Noise_injector + Conv2DSequence (three 1x1 convs) + class softmax.
# One grid step handles one batch element and TN latent samples.
# Layout: channels on sublanes, pixels on lanes -> every intermediate is
# (channels, TN*HW) with a lane-dense, 128-multiple last dim.
# --------------------------------------------------------------------------
def _mose_fuse_kernel(fm_ref, z_ref,
                      wr_ref, br_ref, ws_ref, bs_ref,
                      w1_ref, b1_ref, w2_ref, b2_ref, w3_ref, b3_ref,
                      out_ref):
    f32 = jnp.float32
    dn = (((0,), (0,)), ((), ()))          # contract dim0(lhs) with dim0(rhs)

    fm = fm_ref[0]                         # (C, HW)   feature map of this batch elem
    zt = z_ref[0]                          # (TN, L)   latent codes of this tile
    C, HW = fm.shape
    TN, L = zt.shape
    CL = w3_ref.shape[1]

    # ---- Noise_injector res/sc in (C, TN) column layout ----------------------
    if L == 1:
        # degenerate K=1 contraction -> pure VPU broadcast (MXU stays free for convs)
        z_row = zt.reshape(1, TN)                                      # (1, TN)
        res_t = wr_ref[...] * z_row + br_ref[...]                      # (C, TN)
        sc_t = ws_ref[...] * z_row + bs_ref[...]                       # (C, TN)
    else:
        res_t = lax.dot_general(wr_ref[...], zt, (((1,), (1,)), ((), ())),
                                preferred_element_type=f32) + br_ref[...]
        sc_t = lax.dot_general(ws_ref[...], zt, (((1,), (1,)), ((), ())),
                               preferred_element_type=f32) + bs_ref[...]

    # x[c, n, p] = (fm[c, p] + res[c, n]) * (sc[c, n] + 1e-5)
    x3 = (fm[:, None, :] + res_t[:, :, None]) * (sc_t[:, :, None] + 1e-5)  # (C, TN, HW)
    xt = x3.reshape(C, TN * HW)                                            # lane-dense

    # ---- Conv2DSequence as three lane-dense f32 matmuls (weight as LHS) ------
    h1 = jnp.maximum(
        lax.dot_general(w1_ref[...], xt, dn, preferred_element_type=f32)
        + b1_ref[...], 0.0)                                            # (C1, TN*HW)
    h2 = jnp.maximum(
        lax.dot_general(w2_ref[...], h1, dn, preferred_element_type=f32)
        + b2_ref[...], 0.0)                                            # (C2, TN*HW)
    yt = lax.dot_general(w3_ref[...], h2, dn, preferred_element_type=f32) \
        + b3_ref[...]                                                  # (CL, TN*HW)

    # ---- class softmax over the (tiny) class axis, exact normalisation -------
    m = jnp.max(yt, axis=0, keepdims=True)
    e = jnp.exp(yt - m)
    p = e / jnp.sum(e, axis=0, keepdims=True)                          # (CL, TN*HW)

    # ---- regroup to (TN*CL, HW) and store one dense full block ---------------
    out = jnp.transpose(p.reshape(CL, TN, HW), (1, 0, 2)).reshape(TN * CL, HW)
    out_ref[0] = out


# --------------------------------------------------------------------------
# MoSE forward (training branch: N = K * S, rsample from expert priors).
# --------------------------------------------------------------------------
def _mose_forward(u_g, u_d, params, mu, log_sigma, S, key):
    B, C, H, W = u_d.shape
    K, L = mu.shape
    N = K * S
    HW = H * W
    CL = params["w3"].shape[1]

    # Normal(mu, exp(log_sigma)+1e-8).rsample([B, S]) -> permute(0,2,1,3).reshape(B,N,L)
    eps = jax.random.normal(key, (B, S, K, L), dtype=jnp.float32)
    latent = mu[None, None] + (jnp.exp(log_sigma)[None, None] + 1e-8) * eps
    latent_codes = jnp.transpose(latent, (0, 2, 1, 3)).reshape(B, N, L)

    # ---- gating (tiny, separate grid-less call) -------------------------------
    expert_probs = pl.pallas_call(
        _gating_kernel,
        out_shape=jax.ShapeDtypeStruct((B, K), jnp.float32),
    )(u_g, params["gw1"], params["gb1"], params["gw2"], params["gb2"], params["gw3"])

    # ---- fused noise-injector + conv stack + softmax --------------------------
    # channels stay on sublanes: (B, C, HW) is a free reshape of u_d (no transpose)
    u_d_flat = u_d.reshape(B, C, HW)

    # samples per tile so a tile is ~2048 pixel columns (TN must divide N)
    TILE_COLS = 2048
    TN = max(1, min(N, TILE_COLS // max(HW, 1)))
    while N % TN:
        TN -= 1
    n_tiles = N // TN

    # weights / biases in the column (channels-first) layout used by the kernel
    wr_t = params["wr"].T            # (C, L)
    ws_t = params["ws"].T            # (C, L)
    br_t = params["br"].T            # (C, 1)
    bs_t = params["bs"].T            # (C, 1)
    b1_t = params["b1"].T            # (C, 1)
    b2_t = params["b2"].T            # (C, 1)
    b3_t = params["b3"].T            # (CL, 1)

    def wspec(shape):
        nd = len(shape)
        return pl.BlockSpec(shape, lambda b, t, _n=nd: (0,) * _n)

    pred_flat = pl.pallas_call(
        _mose_fuse_kernel,
        out_shape=jax.ShapeDtypeStruct((B, N * CL, HW), jnp.float32),
        grid=(B, n_tiles),
        in_specs=[
            pl.BlockSpec((1, C, HW), lambda b, t: (b, 0, 0)),     # feature map (per b)
            pl.BlockSpec((1, TN, L), lambda b, t: (b, t, 0)),     # latent codes (tile)
            wspec(wr_t.shape), wspec(br_t.shape),
            wspec(ws_t.shape), wspec(bs_t.shape),
            wspec(params["w1"].shape), wspec(b1_t.shape),
            wspec(params["w2"].shape), wspec(b2_t.shape),
            wspec(params["w3"].shape), wspec(b3_t.shape),
        ],
        out_specs=pl.BlockSpec((1, TN * CL, HW), lambda b, t: (b, t, 0)),
        compiler_params=pltpu.CompilerParams(
            dimension_semantics=("parallel", "parallel"),
            vmem_limit_bytes=32 * 1024 * 1024,
        ),
    )(u_d_flat, latent_codes, wr_t, br_t, ws_t, bs_t,
      params["w1"], b1_t, params["w2"], b2_t, params["w3"], b3_t)

    # expert_probs.expand(S,B,K).permute(1,2,0).flatten(1) / S  ==  repeat / S
    sample_probs = jnp.repeat(expert_probs, S, axis=1) / S               # (B, K*S)
    pred = pred_flat.reshape(B, N, CL, H, W)                             # free reshape
    return pred, sample_probs


mose_forward = jax.jit(_mose_forward, static_argnums=(5,))


# --------------------------------------------------------------------------
# Pure-JAX f32 reference (for correctness check).
# --------------------------------------------------------------------------
def reference_forward(u_g, u_d, p, latent_codes):
    h = jax.nn.relu(u_g @ p["gw1"] + p["gb1"])
    h = jax.nn.relu(h @ p["gw2"] + p["gb2"])
    expert_probs = jax.nn.softmax(h @ p["gw3"], axis=-1)

    B, C, H, W = u_d.shape
    _, N, L = latent_codes.shape
    fm = jnp.transpose(u_d, (0, 2, 3, 1)).reshape(B, 1, H * W, C)
    res = latent_codes @ p["wr"] + p["br"]
    sc = latent_codes @ p["ws"] + p["bs"]
    x = (fm + res[:, :, None, :]) * (sc[:, :, None, :] + 1e-5)
    x = jax.nn.relu(x @ p["w1"] + p["b1"])
    x = jax.nn.relu(x @ p["w2"] + p["b2"])
    y = x @ p["w3"] + p["b3"]
    pred = jax.nn.softmax(y, axis=-1)
    CL = pred.shape[-1]
    pred = jnp.transpose(pred.reshape(B, N, H, W, CL), (0, 1, 4, 2, 3))
    return pred, expert_probs


if __name__ == "__main__":
    # Small shapes consistent with the module.
    B, H, W = 2, 16, 16
    num_classes = 2           # CL
    num_filters = [32, 64]    # num_filters[0] = n_hidden (fuse), [-1] = gating width
    K, S, L = 4, 4, 1         # num_expert, sample_per_mode, latent_dim
    n_hidden = num_filters[0]
    f_gate = num_filters[-1]

    key = jax.random.PRNGKey(0)
    ks = jax.random.split(key, 20)
    scw = 0.1
    params = {
        # Gating MLP (weights stored (in, out); equivalent semantics to nn.Linear)
        "gw1": jax.random.normal(ks[0], (f_gate, f_gate), jnp.float32) * scw,
        "gb1": jax.random.normal(ks[1], (1, f_gate), jnp.float32) * scw,
        "gw2": jax.random.normal(ks[2], (f_gate, f_gate), jnp.float32) * scw,
        "gb2": jax.random.normal(ks[3], (1, f_gate), jnp.float32) * scw,
        "gw3": jax.random.normal(ks[4], (f_gate, K), jnp.float32) * scw,
        # Noise_injector: residual / scale linears (L -> n_hidden)
        "wr": jax.random.normal(ks[5], (L, n_hidden), jnp.float32) * scw,
        "br": jax.random.normal(ks[6], (1, n_hidden), jnp.float32) * scw,
        "ws": jax.random.normal(ks[7], (L, n_hidden), jnp.float32) * scw,
        "bs": jax.random.normal(ks[8], (1, n_hidden), jnp.float32) * scw,
        # Conv2DSequence (1x1 convs, depth=3)  [assumed conv-relu-conv-relu-conv]
        "w1": jax.random.normal(ks[9], (n_hidden, n_hidden), jnp.float32) * scw,
        "b1": jax.random.normal(ks[10], (1, n_hidden), jnp.float32) * scw,
        "w2": jax.random.normal(ks[11], (n_hidden, n_hidden), jnp.float32) * scw,
        "b2": jax.random.normal(ks[12], (1, n_hidden), jnp.float32) * scw,
        "w3": jax.random.normal(ks[13], (n_hidden, num_classes), jnp.float32) * scw,
        "b3": jax.random.normal(ks[14], (1, num_classes), jnp.float32) * scw,
    }
    # mu_init not provided -> deterministic spread; log_sigma = log(1/8)
    mu = jnp.linspace(-1.0, 1.0, K * L, dtype=jnp.float32).reshape(K, L)
    log_sigma = jnp.full((K, L), math.log(1.0 / 8.0), dtype=jnp.float32)

    # TODO(synk): Unet backbone not provided -> synthesize its outputs (u_g, u_d).
    u_g = jax.random.normal(ks[15], (B, f_gate), jnp.float32)
    u_d = jax.random.normal(ks[16], (B, n_hidden, H, W), jnp.float32)
    sample_key = ks[17]

    pred, sample_probs = mose_forward(u_g, u_d, params, mu, log_sigma, S, sample_key)
    jax.block_until_ready((pred, sample_probs))

    # Reference check (re-derive the same latent codes deterministically).
    eps = jax.random.normal(sample_key, (B, S, K, L), dtype=jnp.float32)
    latent = mu[None, None] + (jnp.exp(log_sigma)[None, None] + 1e-8) * eps
    latent_codes = jnp.transpose(latent, (0, 2, 1, 3)).reshape(B, K * S, L)
    pred_ref, expert_probs_ref = reference_forward(u_g, u_d, params, latent_codes)
    sample_probs_ref = jnp.repeat(expert_probs_ref, S, axis=1) / S

    assert pred.shape == (B, K * S, num_classes, H, W)
    assert sample_probs.shape == (B, K * S)
    # All-f32 kernel: only differences are matmul accumulation order / MXU f32 passes.
    assert jnp.allclose(pred, pred_ref, atol=2e-3, rtol=2e-3)
    assert jnp.allclose(sample_probs, sample_probs_ref, atol=5e-4, rtol=1e-3)
    print("KERNEL_OK")
</pallas_src>

<mosaic_0001>
module attributes {stable_mosaic.version = 11 : i64} {
  func.func @_mose_fuse_kernel(%arg0: i32, %arg1: i32, %arg2: memref<1x32x256xf32, #tpu.memory_space<vmem>>, %arg3: memref<1x8x1xf32, #tpu.memory_space<vmem>>, %arg4: memref<32x1xf32, #tpu.memory_space<vmem>>, %arg5: memref<32x1xf32, #tpu.memory_space<vmem>>, %arg6: memref<32x1xf32, #tpu.memory_space<vmem>>, %arg7: memref<32x1xf32, #tpu.memory_space<vmem>>, %arg8: memref<32x32xf32, #tpu.memory_space<vmem>>, %arg9: memref<32x1xf32, #tpu.memory_space<vmem>>, %arg10: memref<32x32xf32, #tpu.memory_space<vmem>>, %arg11: memref<32x1xf32, #tpu.memory_space<vmem>>, %arg12: memref<32x2xf32, #tpu.memory_space<vmem>>, %arg13: memref<2x1xf32, #tpu.memory_space<vmem>>, %arg14: memref<1x16x256xf32, #tpu.memory_space<vmem>>) attributes {dimension_semantics = [#tpu.dimension_semantics<parallel>, #tpu.dimension_semantics<parallel>], iteration_bounds = array<i64: 2, 2>, scalar_prefetch = 0 : i64, scratch_operands = 0 : i64, tpu.core_type = #tpu.core_type<tc>, window_params = [{transform_indices = @transform_0, window_bounds = array<i64: 1, 32, 256>}, {transform_indices = @transform_1, window_bounds = array<i64: 1, 8, 1>}, {pipeline_mode = #tpu.pipeline_mode<synchronous>, transform_indices = @transform_2, window_bounds = array<i64: 32, 1>}, {pipeline_mode = #tpu.pipeline_mode<synchronous>, transform_indices = @transform_3, window_bounds = array<i64: 32, 1>}, {pipeline_mode = #tpu.pipeline_mode<synchronous>, transform_indices = @transform_4, window_bounds = array<i64: 32, 1>}, {pipeline_mode = #tpu.pipeline_mode<synchronous>, transform_indices = @transform_5, window_bounds = array<i64: 32, 1>}, {pipeline_mode = #tpu.pipeline_mode<synchronous>, transform_indices = @transform_6, window_bounds = array<i64: 32, 32>}, {pipeline_mode = #tpu.pipeline_mode<synchronous>, transform_indices = @transform_7, window_bounds = array<i64: 32, 1>}, {pipeline_mode = #tpu.pipeline_mode<synchronous>, transform_indices = @transform_8, window_bounds = array<i64: 32, 32>}, {pipeline_mode = #tpu.pipeline_mode<synchronous>, transform_indices = @transform_9, window_bounds = array<i64: 32, 1>}, {pipeline_mode = #tpu.pipeline_mode<synchronous>, transform_indices = @transform_10, window_bounds = array<i64: 32, 2>}, {pipeline_mode = #tpu.pipeline_mode<synchronous>, transform_indices = @transform_11, window_bounds = array<i64: 2, 1>}, {transform_indices = @transform_12, window_bounds = array<i64: 1, 16, 256>}]} {
    %c0 = arith.constant 0 : index
    %c0_0 = arith.constant 0 : index
    %c0_1 = arith.constant 0 : index
    %0 = vector.load %arg2[%c0, %c0_0, %c0_1] : memref<1x32x256xf32, #tpu.memory_space<vmem>>, vector<1x32x256xf32>
    %1 = vector.shape_cast %0 : vector<1x32x256xf32> to vector<32x256xf32>
    %c0_2 = arith.constant 0 : index
    %c0_3 = arith.constant 0 : index
    %c0_4 = arith.constant 0 : index
    %2 = vector.load %arg3[%c0_2, %c0_3, %c0_4] : memref<1x8x1xf32, #tpu.memory_space<vmem>>, vector<1x8x1xf32>
    %3 = vector.shape_cast %2 : vector<1x8x1xf32> to vector<8x1xf32>
    %4 = vector.shape_cast %3 : vector<8x1xf32> to vector<1x8xf32>
    %c0_5 = arith.constant 0 : index
    %c0_6 = arith.constant 0 : index
    %5 = vector.load %arg4[%c0_5, %c0_6] : memref<32x1xf32, #tpu.memory_space<vmem>>, vector<32x1xf32>
    %6 = vector.broadcast %5 : vector<32x1xf32> to vector<32x8xf32>
    %7 = vector.broadcast %4 : vector<1x8xf32> to vector<32x8xf32>
    %8 = arith.mulf %6, %7 : vector<32x8xf32>
    %c0_7 = arith.constant 0 : index
    %c0_8 = arith.constant 0 : index
    %9 = vector.load %arg5[%c0_7, %c0_8] : memref<32x1xf32, #tpu.memory_space<vmem>>, vector<32x1xf32>
    %10 = vector.broadcast %9 : vector<32x1xf32> to vector<32x8xf32>
    %11 = arith.addf %8, %10 : vector<32x8xf32>
    %c0_9 = arith.constant 0 : index
    %c0_10 = arith.constant 0 : index
    %12 = vector.load %arg6[%c0_9, %c0_10] : memref<32x1xf32, #tpu.memory_space<vmem>>, vector<32x1xf32>
    %13 = vector.broadcast %12 : vector<32x1xf32> to vector<32x8xf32>
    %14 = vector.broadcast %4 : vector<1x8xf32> to vector<32x8xf32>
    %15 = arith.mulf %13, %14 : vector<32x8xf32>
    %c0_11 = arith.constant 0 : index
    %c0_12 = arith.constant 0 : index
    %16 = vector.load %arg7[%c0_11, %c0_12] : memref<32x1xf32, #tpu.memory_space<vmem>>, vector<32x1xf32>
    %17 = vector.broadcast %16 : vector<32x1xf32> to vector<32x8xf32>
    %18 = arith.addf %15, %17 : vector<32x8xf32>
    %19 = vector.shape_cast %1 : vector<32x256xf32> to vector<32x1x256xf32>
    %20 = vector.shape_cast %11 : vector<32x8xf32> to vector<32x8x1xf32>
    %21 = vector.broadcast %19 : vector<32x1x256xf32> to vector<32x8x256xf32>
    %22 = vector.broadcast %20 : vector<32x8x1xf32> to vector<32x8x256xf32>
    %23 = arith.addf %21, %22 : vector<32x8x256xf32>
    %24 = vector.shape_cast %18 : vector<32x8xf32> to vector<32x8x1xf32>
    %cst = arith.constant 9.99999974E-6 : f32
    %25 = vector.broadcast %cst : f32 to vector<32x8x1xf32>
    %26 = arith.addf %24, %25 : vector<32x8x1xf32>
    %27 = vector.broadcast %26 : vector<32x8x1xf32> to vector<32x8x256xf32>
    %28 = arith.mulf %23, %27 : vector<32x8x256xf32>
    %29 = vector.shape_cast %28 : vector<32x8x256xf32> to vector<32x2048xf32>
    %c0_13 = arith.constant 0 : index
    %c0_14 = arith.constant 0 : index
    %30 = vector.load %arg8[%c0_13, %c0_14] : memref<32x32xf32, #tpu.memory_space<vmem>>, vector<32x32xf32>
    %cst_15 = arith.constant dense<0.000000e+00> : vector<32x2048xf32>
    %31 = tpu.matmul %30, %29, %cst_15 {dimension_numbers = #tpu.dot_dimension_numbers<[0], [0], [1], [1], [0, 1, 1, 1], [], []>} : vector<32x32xf32>, vector<32x2048xf32>, vector<32x2048xf32> -> vector<32x2048xf32>
    %c0_16 = arith.constant 0 : index
    %c0_17 = arith.constant 0 : index
    %32 = vector.load %arg9[%c0_16, %c0_17] : memref<32x1xf32, #tpu.memory_space<vmem>>, vector<32x1xf32>
    %33 = vector.broadcast %32 : vector<32x1xf32> to vector<32x2048xf32>
    %34 = arith.addf %31, %33 : vector<32x2048xf32>
    %cst_18 = arith.constant 0.000000e+00 : f32
    %35 = vector.broadcast %cst_18 : f32 to vector<32x2048xf32>
    %36 = arith.maximumf %34, %35 : vector<32x2048xf32>
    %c0_19 = arith.constant 0 : index
    %c0_20 = arith.constant 0 : index
    %37 = vector.load %arg10[%c0_19, %c0_20] : memref<32x32xf32, #tpu.memory_space<vmem>>, vector<32x32xf32>
    %cst_21 = arith.constant dense<0.000000e+00> : vector<32x2048xf32>
    %38 = tpu.matmul %37, %36, %cst_21 {dimension_numbers = #tpu.dot_dimension_numbers<[0], [0], [1], [1], [0, 1, 1, 1], [], []>} : vector<32x32xf32>, vector<32x2048xf32>, vector<32x2048xf32> -> vector<32x2048xf32>
    %c0_22 = arith.constant 0 : index
    %c0_23 = arith.constant 0 : index
    %39 = vector.load %arg11[%c0_22, %c0_23] : memref<32x1xf32, #tpu.memory_space<vmem>>, vector<32x1xf32>
    %40 = vector.broadcast %39 : vector<32x1xf32> to vector<32x2048xf32>
    %41 = arith.addf %38, %40 : vector<32x2048xf32>
    %cst_24 = arith.constant 0.000000e+00 : f32
    %42 = vector.broadcast %cst_24 : f32 to vector<32x2048xf32>
    %43 = arith.maximumf %41, %42 : vector<32x2048xf32>
    %c0_25 = arith.constant 0 : index
    %c0_26 = arith.constant 0 : index
    %44 = vector.load %arg12[%c0_25, %c0_26] : memref<32x2xf32, #tpu.memory_space<vmem>>, vector<32x2xf32>
    %cst_27 = arith.constant dense<0.000000e+00> : vector<2x2048xf32>
    %45 = tpu.matmul %44, %43, %cst_27 {dimension_numbers = #tpu.dot_dimension_numbers<[0], [0], [1], [1], [0, 1, 1, 1], [], []>} : vector<32x2xf32>, vector<32x2048xf32>, vector<2x2048xf32> -> vector<2x2048xf32>
    %c0_28 = arith.constant 0 : index
    %c0_29 = arith.constant 0 : index
    %46 = vector.load %arg13[%c0_28, %c0_29] : memref<2x1xf32, #tpu.memory_space<vmem>>, vector<2x1xf32>
    %47 = vector.broadcast %46 : vector<2x1xf32> to vector<2x2048xf32>
    %48 = arith.addf %45, %47 : vector<2x2048xf32>
    %cst_30 = arith.constant dense<0xFF800000> : vector<2048xf32>
    %49 = vector.multi_reduction <maximumf>, %48, %cst_30 [0] : vector<2x2048xf32> to vector<2048xf32>
    %50 = vector.shape_cast %49 : vector<2048xf32> to vector<1x2048xf32>
    %51 = vector.broadcast %50 : vector<1x2048xf32> to vector<2x2048xf32>
    %52 = arith.subf %48, %51 : vector<2x2048xf32>
    %53 = math.exp %52 : vector<2x2048xf32>
    %cst_31 = arith.constant dense<0.000000e+00> : vector<2048xf32>
    %54 = vector.multi_reduction <add>, %53, %cst_31 [0] : vector<2x2048xf32> to vector<2048xf32>
    %55 = vector.shape_cast %54 : vector<2048xf32> to vector<1x2048xf32>
    %56 = vector.broadcast %55 : vector<1x2048xf32> to vector<2x2048xf32>
    %57 = arith.divf %53, %56 : vector<2x2048xf32>
    %58 = vector.shape_cast %57 : vector<2x2048xf32> to vector<2x8x256xf32>
    %59 = tpu.transpose %58, [1, 0, 2] : vector<2x8x256xf32> -> vector<8x2x256xf32>
    %60 = vector.shape_cast %59 : vector<8x2x256xf32> to vector<16x256xf32>
    %c0_32 = arith.constant 0 : index
    %c0_33 = arith.constant 0 : index
    %c0_34 = arith.constant 0 : index
    %61 = vector.load %arg14[%c0_32, %c0_33, %c0_34] : memref<1x16x256xf32, #tpu.memory_space<vmem>>, vector<1x16x256xf32>
    %62 = vector.shape_cast %61 : vector<1x16x256xf32> to vector<16x256xf32>
    %63 = vector.shape_cast %60 : vector<16x256xf32> to vector<1x16x256xf32>
    tpu.vector_store %arg14[%c0_32, %c0_33, %c0_34], %63 {strides = array<i32>} : memref<1x16x256xf32, #tpu.memory_space<vmem>>, vector<1x16x256xf32>,
    return
  }
  func.func @transform_0(%arg0: i32, %arg1: i32) -> (i32, i32, i32) {
    %c0_i32 = arith.constant 0 : i32
    %c0_i32_0 = arith.constant 0 : i32
    %c0_i32_1 = arith.constant 0 : i32
    return %arg0, %c0_i32, %c0_i32_0 : i32, i32, i32
  }
  func.func @transform_1(%arg0: i32, %arg1: i32) -> (i32, i32, i32) {
    %c0_i32 = arith.constant 0 : i32
    %c0_i32_0 = arith.constant 0 : i32
    return %arg0, %arg1, %c0_i32 : i32, i32, i32
  }
  func.func @transform_2(%arg0: i32, %arg1: i32) -> (i32, i32) {
    %c0_i32 = arith.constant 0 : i32
    %c0_i32_0 = arith.constant 0 : i32
    %c0_i32_1 = arith.constant 0 : i32
    return %c0_i32, %c0_i32_0 : i32, i32
  }
  func.func @transform_3(%arg0: i32, %arg1: i32) -> (i32, i32) {
    %c0_i32 = arith.constant 0 : i32
    %c0_i32_0 = arith.constant 0 : i32
    %c0_i32_1 = arith.constant 0 : i32
    return %c0_i32, %c0_i32_0 : i32, i32
  }
  func.func @transform_4(%arg0: i32, %arg1: i32) -> (i32, i32) {
    %c0_i32 = arith.constant 0 : i32
    %c0_i32_0 = arith.constant 0 : i32
    %c0_i32_1 = arith.constant 0 : i32
    return %c0_i32, %c0_i32_0 : i32, i32
  }
  func.func @transform_5(%arg0: i32, %arg1: i32) -> (i32, i32) {
    %c0_i32 = arith.constant 0 : i32
    %c0_i32_0 = arith.constant 0 : i32
    %c0_i32_1 = arith.constant 0 : i32
    return %c0_i32, %c0_i32_0 : i32, i32
  }
  func.func @transform_6(%arg0: i32, %arg1: i32) -> (i32, i32) {
    %c0_i32 = arith.constant 0 : i32
    %c0_i32_0 = arith.constant 0 : i32
    %c0_i32_1 = arith.constant 0 : i32
    return %c0_i32, %c0_i32_0 : i32, i32
  }
  func.func @transform_7(%arg0: i32, %arg1: i32) -> (i32, i32) {
    %c0_i32 = arith.constant 0 : i32
    %c0_i32_0 = arith.constant 0 : i32
    %c0_i32_1 = arith.constant 0 : i32
    return %c0_i32, %c0_i32_0 : i32, i32
  }
  func.func @transform_8(%arg0: i32, %arg1: i32) -> (i32, i32) {
    %c0_i32 = arith.constant 0 : i32
    %c0_i32_0 = arith.constant 0 : i32
    %c0_i32_1 = arith.constant 0 : i32
    return %c0_i32, %c0_i32_0 : i32, i32
  }
  func.func @transform_9(%arg0: i32, %arg1: i32) -> (i32, i32) {
    %c0_i32 = arith.constant 0 : i32
    %c0_i32_0 = arith.constant 0 : i32
    %c0_i32_1 = arith.constant 0 : i32
    return %c0_i32, %c0_i32_0 : i32, i32
  }
  func.func @transform_10(%arg0: i32, %arg1: i32) -> (i32, i32) {
    %c0_i32 = arith.constant 0 : i32
    %c0_i32_0 = arith.constant 0 : i32
    %c0_i32_1 = arith.constant 0 : i32
    return %c0_i32, %c0_i32_0 : i32, i32
  }
  func.func @transform_11(%arg0: i32, %arg1: i32) -> (i32, i32) {
    %c0_i32 = arith.constant 0 : i32
    %c0_i32_0 = arith.constant 0 : i32
    %c0_i32_1 = arith.constant 0 : i32
    return %c0_i32, %c0_i32_0 : i32, i32
  }
  func.func @transform_12(%arg0: i32, %arg1: i32) -> (i32, i32, i32) {
    %c0_i32 = arith.constant 0 : i32
    %c0_i32_0 = arith.constant 0 : i32
    return %arg0, %arg1, %c0_i32 : i32, i32, i32
  }
}

module attributes {stable_mosaic.version = 11 : i64} {
  func.func @_gating_kernel(%arg0: memref<2x64xf32, #tpu.memory_space<vmem>>, %arg1: memref<64x64xf32, #tpu.memory_space<vmem>>, %arg2: memref<1x64xf32, #tpu.memory_space<vmem>>, %arg3: memref<64x64xf32, #tpu.memory_space<vmem>>, %arg4: memref<1x64xf32, #tpu.memory_space<vmem>>, %arg5: memref<64x4xf32, #tpu.memory_space<vmem>>, %arg6: memref<2x4xf32, #tpu.memory_space<vmem>>) attributes {dimension_semantics = [], scalar_prefetch = 0 : i64, scratch_operands = 0 : i64, tpu.core_type = #tpu.core_type<tc>} {
    %c0 = arith.constant 0 : index
    %c0_0 = arith.constant 0 : index
    %0 = vector.load %arg0[%c0, %c0_0] : memref<2x64xf32, #tpu.memory_space<vmem>>, vector<2x64xf32>
    %c0_1 = arith.constant 0 : index
    %c0_2 = arith.constant 0 : index
    %1 = vector.load %arg1[%c0_1, %c0_2] : memref<64x64xf32, #tpu.memory_space<vmem>>, vector<64x64xf32>
    %cst = arith.constant dense<0.000000e+00> : vector<2x64xf32>
    %2 = tpu.matmul %0, %1, %cst {dimension_numbers = #tpu.dot_dimension_numbers<[1], [0], [0], [1], [0, 0, 1, 1], [], []>} : vector<2x64xf32>, vector<64x64xf32>, vector<2x64xf32> -> vector<2x64xf32>
    %c0_3 = arith.constant 0 : index
    %c0_4 = arith.constant 0 : index
    %3 = vector.load %arg2[%c0_3, %c0_4] : memref<1x64xf32, #tpu.memory_space<vmem>>, vector<1x64xf32>
    %4 = vector.broadcast %3 : vector<1x64xf32> to vector<2x64xf32>
    %5 = arith.addf %2, %4 : vector<2x64xf32>
    %cst_5 = arith.constant 0.000000e+00 : f32
    %6 = vector.broadcast %cst_5 : f32 to vector<2x64xf32>
    %7 = arith.maximumf %5, %6 : vector<2x64xf32>
    %c0_6 = arith.constant 0 : index
    %c0_7 = arith.constant 0 : index
    %8 = vector.load %arg3[%c0_6, %c0_7] : memref<64x64xf32, #tpu.memory_space<vmem>>, vector<64x64xf32>
    %cst_8 = arith.constant dense<0.000000e+00> : vector<2x64xf32>
    %9 = tpu.matmul %7, %8, %cst_8 {dimension_numbers = #tpu.dot_dimension_numbers<[1], [0], [0], [1], [0, 0, 1, 1], [], []>} : vector<2x64xf32>, vector<64x64xf32>, vector<2x64xf32> -> vector<2x64xf32>
    %c0_9 = arith.constant 0 : index
    %c0_10 = arith.constant 0 : index
    %10 = vector.load %arg4[%c0_9, %c0_10] : memref<1x64xf32, #tpu.memory_space<vmem>>, vector<1x64xf32>
    %11 = vector.broadcast %10 : vector<1x64xf32> to vector<2x64xf32>
    %12 = arith.addf %9, %11 : vector<2x64xf32>
    %cst_11 = arith.constant 0.000000e+00 : f32
    %13 = vector.broadcast %cst_11 : f32 to vector<2x64xf32>
    %14 = arith.maximumf %12, %13 : vector<2x64xf32>
    %c0_12 = arith.constant 0 : index
    %c0_13 = arith.constant 0 : index
    %15 = vector.load %arg5[%c0_12, %c0_13] : memref<64x4xf32, #tpu.memory_space<vmem>>, vector<64x4xf32>
    %cst_14 = arith.constant dense<0.000000e+00> : vector<2x4xf32>
    %16 = tpu.matmul %14, %15, %cst_14 {dimension_numbers = #tpu.dot_dimension_numbers<[1], [0], [0], [1], [0, 0, 1, 1], [], []>} : vector<2x64xf32>, vector<64x4xf32>, vector<2x4xf32> -> vector<2x4xf32>
    %cst_15 = arith.constant dense<0xFF800000> : vector<2xf32>
    %17 = vector.multi_reduction <maximumf>, %16, %cst_15 [1] : vector<2x4xf32> to vector<2xf32>
    %18 = vector.shape_cast %17 : vector<2xf32> to vector<2x1xf32>
    %19 = vector.broadcast %18 : vector<2x1xf32> to vector<2x4xf32>
    %20 = arith.subf %16, %19 : vector<2x4xf32>
    %21 = math.exp %20 : vector<2x4xf32>
    %cst_16 = arith.constant dense<0.000000e+00> : vector<2xf32>
    %22 = vector.multi_reduction <add>, %21, %cst_16 [1] : vector<2x4xf32> to vector<2xf32>
    %23 = vector.shape_cast %22 : vector<2xf32> to vector<2x1xf32>
    %24 = vector.broadcast %23 : vector<2x1xf32> to vector<2x4xf32>
    %25 = arith.divf %21, %24 : vector<2x4xf32>
    %c0_17 = arith.constant 0 : index
    %c0_18 = arith.constant 0 : index
    %26 = vector.load %arg6[%c0_17, %c0_18] : memref<2x4xf32, #tpu.memory_space<vmem>>, vector<2x4xf32>
    tpu.vector_store %arg6[%c0_17, %c0_18], %25 {strides = array<i32>} : memref<2x4xf32, #tpu.memory_space<vmem>>, vector<2x4xf32>,
    return
  }
}

</mosaic_0001>

<llo_original>
// kernel: _mose_forward.3
$region0: #{_mose_forward.3}
  #allocation0 [shape = 'u32[]', space=smem, size = 0x4, offset = 0x4, fixed_abs, tag = 'smem constant byte address 0x4 - core index']
  #allocation1 [shape = 'u32[144,128]{1,0:T(1,128)}', space=vmem, size = 0x12000, scoped, tag = 'internal scratch']
  %s0 = inlined_call_operand.vmem [shape: f32[2,64], index: 0, kind: input, shape index: {}]
  %s1 = inlined_call_operand.vmem [shape: f32[64,64], index: 1, kind: input, shape index: {}]
  %s2 = inlined_call_operand.vmem [shape: f32[1,64], index: 2, kind: input, shape index: {}]
  %s3 = inlined_call_operand.vmem [shape: f32[64,64], index: 3, kind: input, shape index: {}]
  %s4 = inlined_call_operand.vmem [shape: f32[1,64], index: 4, kind: input, shape index: {}]
  %s5 = inlined_call_operand.vmem [shape: f32[64,4], index: 5, kind: input, shape index: {}]
  %s6 = inlined_call_operand.vmem [shape: f32[2,4], index: 6, kind: output, shape index: {}]
  %s7 = sld [smem:[#allocation0]]
  $region34: #{_mose_forward.3} parent=0
    _
  %s9 = ssub.s32 1, %s7
  %s10 = scalar_select 0, %s9, %s7
  // Predicated region
  $region2: #{_mose_forward.3} parent=0 // pred_check
    _
  $region3: #{_mose_forward.3} parent=0 // pred_check_branch
    %12 = sbr.rel (0) target = $region5
  $region4: #{_mose_forward.3} parent=0 // pred_region
    _
  $region5: #{_mose_forward.3} parent=0 // pred_fallthru
    _
  // Predicated region
  $region6: #{_mose_forward.3} parent=0 // pred_check
    _
  $region7: #{_mose_forward.3} parent=0 // pred_check_branch
    %14 = sbr.rel (0) target = $region9
  $region8: #{_mose_forward.3} parent=0 // pred_region
    _
  $region9: #{_mose_forward.3} parent=0 // pred_fallthru
    _
  // Predicated region
  $region10: #{_mose_forward.3} parent=0 // pred_check
    _
  $region11: #{_mose_forward.3} parent=0 // pred_check_branch
    %16 = sbr.rel (0) target = $region13
  $region12: #{_mose_forward.3} parent=0 // pred_region
    _
  $region13: #{_mose_forward.3} parent=0 // pred_fallthru
    _
  // Predicated region
  $region14: #{_mose_forward.3} parent=0 // pred_check
    _
  $region15: #{_mose_forward.3} parent=0 // pred_check_branch
    %18 = sbr.rel (0) target = $region17
  $region16: #{_mose_forward.3} parent=0 // pred_region
    _
  $region17: #{_mose_forward.3} parent=0 // pred_fallthru
    _
  // Predicated region
  $region18: #{_mose_forward.3} parent=0 // pred_check
    _
  $region19: #{_mose_forward.3} parent=0 // pred_check_branch
    %20 = sbr.rel (0) target = $region21
  $region20: #{_mose_forward.3} parent=0 // pred_region
    _
  $region21: #{_mose_forward.3} parent=0 // pred_fallthru
    _
  // Predicated region
  $region22: #{_mose_forward.3} parent=0 // pred_check
    _
  $region23: #{_mose_forward.3} parent=0 // pred_check_branch
    %22 = sbr.rel (0) target = $region25
  $region24: #{_mose_forward.3} parent=0 // pred_region
    _
  $region25: #{_mose_forward.3} parent=0 // pred_fallthru
    _
  %v23 = vld [vmem:[%s0] sm:$0x3]
  %v24 = vld [vmem:[%s1] sm:$0xff]
  %v25 = vld [vmem:[%s1 + $0x8] sm:$0xff]
  %v26 = vld [vmem:[%s1 + $0x10] sm:$0xff]
  %v27 = vld [vmem:[%s1 + $0x18] sm:$0xff]
  %v28 = vld [vmem:[%s1 + $0x20] sm:$0xff]
  %v29 = vld [vmem:[%s1 + $0x28] sm:$0xff]
  %v30 = vld [vmem:[%s1 + $0x30] sm:$0xff]
  %v31 = vld [vmem:[%s1 + $0x38] sm:$0xff]
  %v32 = vld [vmem:[%s2] sm:$0x1]
  %v34 = vlaneseq
  %v35 = vshrl.u32 %v34, 7
  %v36 = vsub.s32 0, %v35
  %v37 = vrot.slane %v32, %v36
  %vm39 = vcmask 523264
  %v41 = vsel %vm39, %v23, 0
  %43 = vmatprep.subr.mxu0 0.0
  %44 = vmatpush1.msra.mxu0 %v24
  %45 = vmatprep.subr.mxu0 0.0
  %46 = vmatpush1.msra.mxu0 %v25
  %47 = vmatprep.subr.mxu0 0.0
  %48 = vmatpush1.msra.mxu0 %v26
  %49 = vmatprep.subr.mxu0 0.0
  %50 = vmatpush1.msra.mxu0 %v27
  %51 = vmatprep.subr.mxu0 0.0
  %52 = vmatpush1.msra.mxu0 %v28
  %53 = vmatprep.subr.mxu0 0.0
  %54 = vmatpush1.msra.mxu0 %v29
  %55 = vmatprep.subr.mxu0 0.0
  %56 = vmatpush1.msra.mxu0 %v30
  %57 = vmatprep.subr.mxu0 0.0
  %58 = vmatpush1.msra.mxu0 %v31
  %59 = vmatprep.subr.mxu0 0.0
  %60 = vmatpush1.msra.mxu0 0.0
  %61 = vmatprep.subr.mxu0 0.0
  %62 = vmatpush1.msra.mxu0 0.0
  %63 = vmatprep.subr.mxu0 0.0
  %64 = vmatpush1.msra.mxu0 0.0
  %65 = vmatprep.subr.mxu0 0.0
  %66 = vmatpush1.msra.mxu0 0.0
  %67 = vmatprep.subr.mxu0 0.0
  %68 = vmatpush1.msra.mxu0 0.0
  %69 = vmatprep.subr.mxu0 0.0
  %70 = vmatpush1.msra.mxu0 0.0
  %71 = vmatprep.subr.mxu0 0.0
  %72 = vmatpush1.msra.mxu0 0.0
  %73 = vmatprep.subr.mxu0 0.0
  %74 = vmatpush1.msra.mxu0 0.0
  %75 = vmatprep.subr.mxu0 0.0
  %76 = vmatpush1.msra.mxu0 0.0
  %77 = vmatprep.subr.mxu0 0.0
  %78 = vmatpush1.msra.mxu0 0.0
  %79 = vmatprep.subr.mxu0 0.0
  %80 = vmatpush1.msra.mxu0 0.0
  %81 = vmatprep.subr.mxu0 0.0
  %82 = vmatpush1.msra.mxu0 0.0
  %83 = vmatprep.subr.mxu0 0.0
  %84 = vmatpush1.msra.mxu0 0.0
  %85 = vmatprep.subr.mxu0 0.0
  %86 = vmatpush1.msra.mxu0 0.0
  %87 = vmatprep.subr.mxu0 0.0
  %88 = vmatpush1.msra.mxu0 0.0
  %89 = vmatprep.subr.mxu0 0.0
  %90 = vmatpush1.msra.mxu0 0.0
  %91 = vmatprep.subr.mxu0 0.0
  %92 = vmatpush1.msra.mxu0 0.0
  %93 = vmatprep.subr.mxu0 0.0
  %94 = vmatpush1.msra.mxu0 0.0
  %95 = vmatprep.subr.mxu0 0.0
  %96 = vmatpush1.msra.mxu0 0.0
  %97 = vmatprep.subr.mxu0 0.0
  %98 = vmatpush1.msra.mxu0 0.0
  %99 = vmatprep.subr.mxu0 0.0
  %100 = vmatpush1.msra.mxu0 0.0
  %101 = vmatprep.subr.mxu0 0.0
  %102 = vmatpush1.msra.mxu0 0.0
  %103 = vmatprep.subr.mxu0 0.0
  %104 = vmatpush1.msra.mxu0 0.0
  %105 = vmatprep.subr.mxu0 0.0
  %106 = vmatpush1.msra.mxu0 0.0
  %107 = vmatprep.mubr.f32.mxu0 0.0
  %108 = vmatmul.mubr.f32.gmra.mrb[0].mxu0 %v41
  %v109 = vpop.f32.mrb[0].mxu0
  %v110 = vadd.f32 %v37, %v109
  %v111 = vpop.f32.mrb[0].mxu0
  %112 = vdwg.mxu0
  %v113 = vmax.f32 %v110, 0.0
  %v114 = vld [vmem:[%s3] sm:$0xff]
  %v115 = vld [vmem:[%s3 + $0x8] sm:$0xff]
  %v116 = vld [vmem:[%s3 + $0x10] sm:$0xff]
  %v117 = vld [vmem:[%s3 + $0x18] sm:$0xff]
  %v118 = vld [vmem:[%s3 + $0x20] sm:$0xff]
  %v119 = vld [vmem:[%s3 + $0x28] sm:$0xff]
  %v120 = vld [vmem:[%s3 + $0x30] sm:$0xff]
  %v121 = vld [vmem:[%s3 + $0x38] sm:$0xff]
  %v122 = vld [vmem:[%s4] sm:$0x1]
  %v124 = vlaneseq
  %v125 = vshrl.u32 %v124, 7
  %v126 = vsub.s32 0, %v125
  %v127 = vrot.slane %v122, %v126
  %v130 = vsel %vm39, %v113, 0
  %132 = vmatprep.subr.mxu0 0.0
  %133 = vmatpush1.msra.mxu0 %v114
  %134 = vmatprep.subr.mxu0 0.0
  %135 = vmatpush1.msra.mxu0 %v115
  %136 = vmatprep.subr.mxu0 0.0
  %137 = vmatpush1.msra.mxu0 %v116
  %138 = vmatprep.subr.mxu0 0.0
  %139 = vmatpush1.msra.mxu0 %v117
  %140 = vmatprep.subr.mxu0 0.0
  %141 = vmatpush1.msra.mxu0 %v118
  %142 = vmatprep.subr.mxu0 0.0
  %143 = vmatpush1.msra.mxu0 %v119
  %144 = vmatprep.subr.mxu0 0.0
  %145 = vmatpush1.msra.mxu0 %v120
  %146 = vmatprep.subr.mxu0 0.0
  %147 = vmatpush1.msra.mxu0 %v121
  %148 = vmatprep.subr.mxu0 0.0
  %149 = vmatpush1.msra.mxu0 0.0
  %150 = vmatprep.subr.mxu0 0.0
  %151 = vmatpush1.msra.mxu0 0.0
  %152 = vmatprep.subr.mxu0 0.0
  %153 = vmatpush1.msra.mxu0 0.0
  %154 = vmatprep.subr.mxu0 0.0
  %155 = vmatpush1.msra.mxu0 0.0
  %156 = vmatprep.subr.mxu0 0.0
  %157 = vmatpush1.msra.mxu0 0.0
  %158 = vmatprep.subr.mxu0 0.0
  %159 = vmatpush1.msra.mxu0 0.0
  %160 = vmatprep.subr.mxu0 0.0
  %161 = vmatpush1.msra.mxu0 0.0
  %162 = vmatprep.subr.mxu0 0.0
  %163 = vmatpush1.msra.mxu0 0.0
  %164 = vmatprep.subr.mxu0 0.0
  %165 = vmatpush1.msra.mxu0 0.0
  %166 = vmatprep.subr.mxu0 0.0
  %167 = vmatpush1.msra.mxu0 0.0
  %168 = vmatprep.subr.mxu0 0.0
  %169 = vmatpush1.msra.mxu0 0.0
  %170 = vmatprep.subr.mxu0 0.0
  %171 = vmatpush1.msra.mxu0 0.0
  %172 = vmatprep.subr.mxu0 0.0
  %173 = vmatpush1.msra.mxu0 0.0
  %174 = vmatprep.subr.mxu0 0.0
  %175 = vmatpush1.msra.mxu0 0.0
  %176 = vmatprep.subr.mxu0 0.0
  %177 = vmatpush1.msra.mxu0 0.0
  %178 = vmatprep.subr.mxu0 0.0
  %179 = vmatpush1.msra.mxu0 0.0
  %180 = vmatprep.subr.mxu0 0.0
  %181 = vmatpush1.msra.mxu0 0.0
  %182 = vmatprep.subr.mxu0 0.0
  %183 = vmatpush1.msra.mxu0 0.0
  %184 = vmatprep.subr.mxu0 0.0
  %185 = vmatpush1.msra.mxu0 0.0
  %186 = vmatprep.subr.mxu0 0.0
  %187 = vmatpush1.msra.mxu0 0.0
  %188 = vmatprep.subr.mxu0 0.0
  %189 = vmatpush1.msra.mxu0 0.0
  %190 = vmatprep.subr.mxu0 0.0
  %191 = vmatpush1.msra.mxu0 0.0
  %192 = vmatprep.subr.mxu0 0.0
  %193 = vmatpush1.msra.mxu0 0.0
  %194 = vmatprep.subr.mxu0 0.0
  %195 = vmatpush1.msra.mxu0 0.0
  %196 = vmatprep.mubr.f32.mxu0 0.0
  %197 = vmatmul.mubr.f32.gmra.mrb[0].mxu0 %v130
  %v198 = vpop.f32.mrb[0].mxu0
  %v199 = vadd.f32 %v127, %v198
  %v200 = vpop.f32.mrb[0].mxu0
  %201 = vdwg.mxu0
  %v202 = vmax.f32 %v199, 0.0
  %v203 = vld [vmem:[%s5] sm:$0xff]
  %v204 = vld [vmem:[%s5 + $0x8] sm:$0xff]
  %v205 = vld [vmem:[%s5 + $0x10] sm:$0xff]
  %v206 = vld [vmem:[%s5 + $0x18] sm:$0xff]
  %v207 = vld [vmem:[%s5 + $0x20] sm:$0xff]
  %v208 = vld [vmem:[%s5 + $0x28] sm:$0xff]
  %v209 = vld [vmem:[%s5 + $0x30] sm:$0xff]
  %v210 = vld [vmem:[%s5 + $0x38] sm:$0xff]
  %v212 = vsel %vm39, %v202, 0
  %214 = vmatprep.subr.mxu0 0.0
  %215 = vmatpush1.msra.mxu0 %v203
  %216 = vmatprep.subr.mxu0 0.0
  %217 = vmatpush1.msra.mxu0 %v204
  %218 = vmatprep.subr.mxu0 0.0
  %219 = vmatpush1.msra.mxu0 %v205
  %220 = vmatprep.subr.mxu0 0.0
  %221 = vmatpush1.msra.mxu0 %v206
  %222 = vmatprep.subr.mxu0 0.0
  %223 = vmatpush1.msra.mxu0 %v207
  %224 = vmatprep.subr.mxu0 0.0
  %225 = vmatpush1.msra.mxu0 %v208
  %226 = vmatprep.subr.mxu0 0.0
  %227 = vmatpush1.msra.mxu0 %v209
  %228 = vmatprep.subr.mxu0 0.0
  %229 = vmatpush1.msra.mxu0 %v210
  %230 = vmatprep.subr.mxu0 0.0
  %231 = vmatpush1.msra.mxu0 0.0
  %232 = vmatprep.subr.mxu0 0.0
  %233 = vmatpush1.msra.mxu0 0.0
  %234 = vmatprep.subr.mxu0 0.0
  %235 = vmatpush1.msra.mxu0 0.0
  %236 = vmatprep.subr.mxu0 0.0
  %237 = vmatpush1.msra.mxu0 0.0
  %238 = vmatprep.subr.mxu0 0.0
  %239 = vmatpush1.msra.mxu0 0.0
  %240 = vmatprep.subr.mxu0 0.0
  %241 = vmatpush1.msra.mxu0 0.0
  %242 = vmatprep.subr.mxu0 0.0
  %243 = vmatpush1.msra.mxu0 0.0
  %244 = vmatprep.subr.mxu0 0.0
  %245 = vmatpush1.msra.mxu0 0.0
  %246 = vmatprep.subr.mxu0 0.0
  %247 = vmatpush1.msra.mxu0 0.0
  %248 = vmatprep.subr.mxu0 0.0
  %249 = vmatpush1.msra.mxu0 0.0
  %250 = vmatprep.subr.mxu0 0.0
  %251 = vmatpush1.msra.mxu0 0.0
  %252 = vmatprep.subr.mxu0 0.0
  %253 = vmatpush1.msra.mxu0 0.0
  %254 = vmatprep.subr.mxu0 0.0
  %255 = vmatpush1.msra.mxu0 0.0
  %256 = vmatprep.subr.mxu0 0.0
  %257 = vmatpush1.msra.mxu0 0.0
  %258 = vmatprep.subr.mxu0 0.0
  %259 = vmatpush1.msra.mxu0 0.0
  %260 = vmatprep.subr.mxu0 0.0
  %261 = vmatpush1.msra.mxu0 0.0
  %262 = vmatprep.subr.mxu0 0.0
  %263 = vmatpush1.msra.mxu0 0.0
  %264 = vmatprep.subr.mxu0 0.0
  %265 = vmatpush1.msra.mxu0 0.0
  %266 = vmatprep.subr.mxu0 0.0
  %267 = vmatpush1.msra.mxu0 0.0
  %268 = vmatprep.subr.mxu0 0.0
  %269 = vmatpush1.msra.mxu0 0.0
  %270 = vmatprep.subr.mxu0 0.0
  %271 = vmatpush1.msra.mxu0 0.0
  %272 = vmatprep.subr.mxu0 0.0
  %273 = vmatpush1.msra.mxu0 0.0
  %274 = vmatprep.subr.mxu0 0.0
  %275 = vmatpush1.msra.mxu0 0.0
  %276 = vmatprep.subr.mxu0 0.0
  %277 = vmatpush1.msra.mxu0 0.0
  %278 = vmatprep.mubr.f32.mxu0 0.0
  %279 = vmatmul.mubr.f32.gmra.mrb[0].mxu0 %v212
  %v280 = vpop.f32.mrb[0].mxu0
  %v281 = vadd.f32 0.0, %v280
  %v282 = vpop.f32.mrb[0].mxu0
  %283 = vdwg.mxu0
  %vm284 = vcmask 25600
  %v285 = vsel %vm284, %v281, -inf
  %286 = vmax.xlane.f32.xlu0 %v285
  %v287 = vpop.xlane.xlu0 %286
  %v288 = vsub.f32 %v281, %v287
  %v289 = vmul.f32 %v288, 1.442695
  %v290 = vpow.pop %v289
  %v291 = vsel %vm284, %v290, 0.0
  %292 = vadd.xlane.f32.xlu0 %v291
  %v293 = vpop.xlane.xlu0 %292
  %v294 = vrcp.pop %v293
  %v295 = vmul.f32 %v290, %v294
  %296 = vst.msk [vmem:[%s6] sm:$0x3] %vm284, %v295
  // Predicated region
  $region26: #{_mose_forward.3} parent=0 // pred_check
    _
  $region27: #{_mose_forward.3} parent=0 // pred_check_branch
    %298 = sbr.rel (0) target = $region29
  $region28: #{_mose_forward.3} parent=0 // pred_region
    _
  $region29: #{_mose_forward.3} parent=0 // pred_fallthru
    _
  // Predicated region
  $region30: #{_mose_forward.3} parent=0 // pred_check
    _
  $region31: #{_mose_forward.3} parent=0 // pred_check_branch
    %300 = sbr.rel (0) target = $region33
  $region32: #{_mose_forward.3} parent=0 // pred_region
    _
  $region33: #{_mose_forward.3} parent=0 // pred_fallthru
    _

// kernel: _mose_forward.2
$region0: #{_mose_forward.2}
  #allocation0 [shape = 'u32[]', space=smem, size = 0x4, offset = 0x4, fixed_abs, tag = 'smem constant byte address 0x4 - core index']
  #allocation1 [shape = 'u32[144,128]{1,0:T(1,128)}', space=vmem, size = 0x12000, scoped, tag = 'internal scratch']
  %s0 = inlined_call_operand.vmem [shape: f32[2,32,256], index: 0, kind: input, shape index: {}]
  %s1 = inlined_call_operand.vmem [shape: f32[2,16,1], index: 1, kind: input, shape index: {}]
  %s2 = inlined_call_operand.vmem [shape: f32[32,1], index: 2, kind: input, shape index: {}]
  %s3 = inlined_call_operand.vmem [shape: f32[32,1], index: 3, kind: input, shape index: {}]
  %s4 = inlined_call_operand.vmem [shape: f32[32,1], index: 4, kind: input, shape index: {}]
  %s5 = inlined_call_operand.vmem [shape: f32[32,1], index: 5, kind: input, shape index: {}]
  %s6 = inlined_call_operand.vmem [shape: f32[32,32], index: 6, kind: input, shape index: {}]
  %s7 = inlined_call_operand.vmem [shape: f32[32,1], index: 7, kind: input, shape index: {}]
  %s8 = inlined_call_operand.vmem [shape: f32[32,32], index: 8, kind: input, shape index: {}]
  %s9 = inlined_call_operand.vmem [shape: f32[32,1], index: 9, kind: input, shape index: {}]
  %s10 = inlined_call_operand.vmem [shape: f32[32,2], index: 10, kind: input, shape index: {}]
  %s11 = inlined_call_operand.vmem [shape: f32[2,1], index: 11, kind: input, shape index: {}]
  %s12 = inlined_call_operand.vmem [shape: f32[2,32,256], index: 12, kind: output, shape index: {}]
  %s13 = sld [smem:[#allocation0]]
  $region81: #{_mose_forward.2} parent=0
    _
  %s15 = ssub.s32 1, %s13
  %s16 = scalar_select 0, %s15, %s13
  loop: start=0, step=1, limit=6
  $region2: #{_mose_forward.2} parent=0 // loop_pre_header
    _
  $region3: #{_mose_forward.2} parent=0 // loop_header
    %s18 = sphi 0, %s22
    %p19 = scmp.ge.s32.totalorder %s18, 6
    %s25 = sphi 0, %s37
    %s26 = sphi 0, %s33
    %s27 = sphi 0, %s25
    %s28 = sphi 0, %s26
    %s29 = sphi 0, %s27
    %s30 = sphi 0, %s28
    %s40 = sphi 0, %s42
    %s43 = sphi 0, %s40
    %s44 = sphi 0, %s43
    %s60 = sphi 0, %s44
    %s68 = sphi 0, %s70
    %s71 = sphi 0, %s68
    %s72 = sphi 0, %s71
    %s88 = sphi 0, %s72
    %s92 = sphi 0, %s92
    %s94 = sphi 0, %s92
    %s95 = sphi 0, %s94
    %s109 = sphi 0, %s95
    %s113 = sphi 0, %s113
    %s115 = sphi 0, %s113
    %s116 = sphi 0, %s115
    %s130 = sphi 0, %s116
    %s134 = sphi 0, %s134
    %s136 = sphi 0, %s134
    %s137 = sphi 0, %s136
    %s151 = sphi 0, %s137
    %s155 = sphi 0, %s155
    %s157 = sphi 0, %s155
    %s158 = sphi 0, %s157
    %s172 = sphi 0, %s158
    %s176 = sphi 0, %s176
    %s178 = sphi 0, %s176
    %s179 = sphi 0, %s178
    %s193 = sphi 0, %s179
    %s197 = sphi 0, %s197
    %s199 = sphi 0, %s197
    %s200 = sphi 0, %s199
    %s214 = sphi 0, %s200
    %s218 = sphi 0, %s218
    %s220 = sphi 0, %s218
    %s221 = sphi 0, %s220
    %s235 = sphi 0, %s221
    %s239 = sphi 0, %s239
    %s241 = sphi 0, %s239
    %s242 = sphi 0, %s241
    %s256 = sphi 0, %s242
    %s260 = sphi 0, %s260
    %s262 = sphi 0, %s260
    %s263 = sphi 0, %s262
    %s277 = sphi 0, %s263
    %s281 = sphi 0, %s281
    %s283 = sphi 0, %s281
    %s284 = sphi 0, %s283
    %s298 = sphi 0, %s284
    %s306 = sphi 0, %s308
    %s309 = sphi 0, %s306
    %s310 = sphi 0, %s309
    %s326 = sphi 0, %s310
  $region4: #{_mose_forward.2} parent=0 // loop_header_branch
    %21 = sbr.rel (%p19) target = $region8
  $region5: #{_mose_forward.2} parent=0 // loop_body
    %s23 = ssub.s32 %s18, 1
    %s24 = ssub.s32 %s18, 2
    %s31 = sadd.s32 1, %s26
    %p32 = scmp.ge.s32.totalorder %s31, 2
    %s33 = scalar_select %p32, 0, %s31
    %s34 = sadd.s32 1, %s25
    %s35 = scalar_select %p32, %s34, %s25
    %p36 = scmp.ge.s32.totalorder %s35, 2
    %s37 = scalar_select %p36, 0, %s35
    %s38 = ssub.s32 %s25, %s37
    %p39 = scmp.eq.s32.totalorder %s38, 0
    %s41 = sadd.s32 %s40, 1
    %s42 = scalar_select %p39, %s40, %s41
    %p45 = pneg %p39
    %p46 = scmp.eq.s32.totalorder %s18, 3
    %p47 = por %p45, %p46
    %p48 = scmp.ne.s32.totalorder %s40, %s43
    %p49 = scmp.eq.s32.totalorder %s18, 0
    %p50 = por %p48, %p49
    %p51 = scmp.ne.s32.totalorder %s40, %s43
    %p52 = scmp.eq.s32.totalorder %s23, 3
    %p53 = por %p51, %p52
    %p54 = scmp.ne.s32.totalorder %s43, %s44
    %p55 = scmp.eq.s32.totalorder %s23, 0
    %p56 = por %p54, %p55
    %p57 = scmp.ne.s32.totalorder %s43, %s44
    %p58 = scmp.eq.s32.totalorder %s24, 3
    %p59 = por %p57, %p58
    %p61 = scmp.ne.s32.totalorder %s44, %s60
    %p62 = scmp.eq.s32.totalorder %s24, 0
    %p63 = por %p61, %p62
    %s64 = ssub.s32 %s25, %s37
    %s65 = ssub.s32 %s26, %s33
    %s66 = sor.u32 %s64, %s65
    %p67 = scmp.eq.s32.totalorder %s66, 0
    %s69 = sadd.s32 %s68, 1
    %s70 = scalar_select %p67, %s68, %s69
    %p73 = pneg %p67
    %p74 = scmp.eq.s32.totalorder %s18, 3
    %p75 = por %p73, %p74
    %p76 = scmp.ne.s32.totalorder %s68, %s71
    %p77 = scmp.eq.s32.totalorder %s18, 0
    %p78 = por %p76, %p77
    %p79 = scmp.ne.s32.totalorder %s68, %s71
    %p80 = scmp.eq.s32.totalorder %s23, 3
    %p81 = por %p79, %p80
    %p82 = scmp.ne.s32.totalorder %s71, %s72
    %p83 = scmp.eq.s32.totalorder %s23, 0
    %p84 = por %p82, %p83
    %p85 = scmp.ne.s32.totalorder %s71, %s72
    %p86 = scmp.eq.s32.totalorder %s24, 3
    %p87 = por %p85, %p86
    %p89 = scmp.ne.s32.totalorder %s72, %s88
    %p90 = scmp.eq.s32.totalorder %s24, 0
    %p91 = por %p89, %p90
    %s93 = sadd.s32 %s92, 1
    %p96 = scmp.eq.s32.totalorder %s18, 3
    %p97 = scmp.ne.s32.totalorder %s92, %s94
    %p98 = scmp.eq.s32.totalorder %s18, 0
    %p99 = por %p97, %p98
    %p100 = scmp.ne.s32.totalorder %s92, %s94
    %p101 = scmp.eq.s32.totalorder %s23, 3
    %p102 = por %p100, %p101
    %p103 = scmp.ne.s32.totalorder %s94, %s95
    %p104 = scmp.eq.s32.totalorder %s23, 0
    %p105 = por %p103, %p104
    %p106 = scmp.ne.s32.totalorder %s94, %s95
    %p107 = scmp.eq.s32.totalorder %s24, 3
    %p108 = por %p106, %p107
    %p110 = scmp.ne.s32.totalorder %s95, %s109
    %p111 = scmp.eq.s32.totalorder %s24, 0
    %p112 = por %p110, %p111
    %s114 = sadd.s32 %s113, 1
    %p117 = scmp.eq.s32.totalorder %s18, 3
    %p118 = scmp.ne.s32.totalorder %s113, %s115
    %p119 = scmp.eq.s32.totalorder %s18, 0
    %p120 = por %p118, %p119
    %p121 = scmp.ne.s32.totalorder %s113, %s115
    %p122 = scmp.eq.s32.totalorder %s23, 3
    %p123 = por %p121, %p122
    %p124 = scmp.ne.s32.totalorder %s115, %s116
    %p125 = scmp.eq.s32.totalorder %s23, 0
    %p126 = por %p124, %p125
    %p127 = scmp.ne.s32.totalorder %s115, %s116
    %p128 = scmp.eq.s32.totalorder %s24, 3
    %p129 = por %p127, %p128
    %p131 = scmp.ne.s32.totalorder %s116, %s130
    %p132 = scmp.eq.s32.totalorder %s24, 0
    %p133 = por %p131, %p132
    %s135 = sadd.s32 %s134, 1
    %p138 = scmp.eq.s32.totalorder %s18, 3
    %p139 = scmp.ne.s32.totalorder %s134, %s136
    %p140 = scmp.eq.s32.totalorder %s18, 0
    %p141 = por %p139, %p140
    %p142 = scmp.ne.s32.totalorder %s134, %s136
    %p143 = scmp.eq.s32.totalorder %s23, 3
    %p144 = por %p142, %p143
    %p145 = scmp.ne.s32.totalorder %s136, %s137
    %p146 = scmp.eq.s32.totalorder %s23, 0
    %p147 = por %p145, %p146
    %p148 = scmp.ne.s32.totalorder %s136, %s137
    %p149 = scmp.eq.s32.totalorder %s24, 3
    %p150 = por %p148, %p149
    %p152 = scmp.ne.s32.totalorder %s137, %s151
    %p153 = scmp.eq.s32.totalorder %s24, 0
    %p154 = por %p152, %p153
    %s156 = sadd.s32 %s155, 1
    %p159 = scmp.eq.s32.totalorder %s18, 3
    %p160 = scmp.ne.s32.totalorder %s155, %s157
    %p161 = scmp.eq.s32.totalorder %s18, 0
    %p162 = por %p160, %p161
    %p163 = scmp.ne.s32.totalorder %s155, %s157
    %p164 = scmp.eq.s32.totalorder %s23, 3
    %p165 = por %p163, %p164
    %p166 = scmp.ne.s32.totalorder %s157, %s158
    %p167 = scmp.eq.s32.totalorder %s23, 0
    %p168 = por %p166, %p167
    %p169 = scmp.ne.s32.totalorder %s157, %s158
    %p170 = scmp.eq.s32.totalorder %s24, 3
    %p171 = por %p169, %p170
    %p173 = scmp.ne.s32.totalorder %s158, %s172
    %p174 = scmp.eq.s32.totalorder %s24, 0
    %p175 = por %p173, %p174
    %s177 = sadd.s32 %s176, 1
    %p180 = scmp.eq.s32.totalorder %s18, 3
    %p181 = scmp.ne.s32.totalorder %s176, %s178
    %p182 = scmp.eq.s32.totalorder %s18, 0
    %p183 = por %p181, %p182
    %p184 = scmp.ne.s32.totalorder %s176, %s178
    %p185 = scmp.eq.s32.totalorder %s23, 3
    %p186 = por %p184, %p185
    %p187 = scmp.ne.s32.totalorder %s178, %s179
    %p188 = scmp.eq.s32.totalorder %s23, 0
    %p189 = por %p187, %p188
    %p190 = scmp.ne.s32.totalorder %s178, %s179
    %p191 = scmp.eq.s32.totalorder %s24, 3
    %p192 = por %p190, %p191
    %p194 = scmp.ne.s32.totalorder %s179, %s193
    %p195 = scmp.eq.s32.totalorder %s24, 0
    %p196 = por %p194, %p195
    %s198 = sadd.s32 %s197, 1
    %p201 = scmp.eq.s32.totalorder %s18, 3
    %p202 = scmp.ne.s32.totalorder %s197, %s199
    %p203 = scmp.eq.s32.totalorder %s18, 0
    %p204 = por %p202, %p203
    %p205 = scmp.ne.s32.totalorder %s197, %s199
    %p206 = scmp.eq.s32.totalorder %s23, 3
    %p207 = por %p205, %p206
    %p208 = scmp.ne.s32.totalorder %s199, %s200
    %p209 = scmp.eq.s32.totalorder %s23, 0
    %p210 = por %p208, %p209
    %p211 = scmp.ne.s32.totalorder %s199, %s200
    %p212 = scmp.eq.s32.totalorder %s24, 3
    %p213 = por %p211, %p212
    %p215 = scmp.ne.s32.totalorder %s200, %s214
    %p216 = scmp.eq.s32.totalorder %s24, 0
    %p217 = por %p215, %p216
    %s219 = sadd.s32 %s218, 1
    %p222 = scmp.eq.s32.totalorder %s18, 3
    %p223 = scmp.ne.s32.totalorder %s218, %s220
    %p224 = scmp.eq.s32.totalorder %s18, 0
    %p225 = por %p223, %p224
    %p226 = scmp.ne.s32.totalorder %s218, %s220
    %p227 = scmp.eq.s32.totalorder %s23, 3
    %p228 = por %p226, %p227
    %p229 = scmp.ne.s32.totalorder %s220, %s221
    %p230 = scmp.eq.s32.totalorder %s23, 0
    %p231 = por %p229, %p230
    %p232 = scmp.ne.s32.totalorder %s220, %s221
    %p233 = scmp.eq.s32.totalorder %s24, 3
    %p234 = por %p232, %p233
    %p236 = scmp.ne.s32.totalorder %s221, %s235
    %p237 = scmp.eq.s32.totalorder %s24, 0
    %p238 = por %p236, %p237
    %s240 = sadd.s32 %s239, 1
    %p243 = scmp.eq.s32.totalorder %s18, 3
    %p244 = scmp.ne.s32.totalorder %s239, %s241
    %p245 = scmp.eq.s32.totalorder %s18, 0
    %p246 = por %p244, %p245
    %p247 = scmp.ne.s32.totalorder %s239, %s241
    %p248 = scmp.eq.s32.totalorder %s23, 3
    %p249 = por %p247, %p248
    %p250 = scmp.ne.s32.totalorder %s241, %s242
    %p251 = scmp.eq.s32.totalorder %s23, 0
    %p252 = por %p250, %p251
    %p253 = scmp.ne.s32.totalorder %s241, %s242
    %p254 = scmp.eq.s32.totalorder %s24, 3
    %p255 = por %p253, %p254
    %p257 = scmp.ne.s32.totalorder %s242, %s256
    %p258 = scmp.eq.s32.totalorder %s24, 0
    %p259 = por %p257, %p258
    %s261 = sadd.s32 %s260, 1
    %p264 = scmp.eq.s32.totalorder %s18, 3
    %p265 = scmp.ne.s32.totalorder %s260, %s262
    %p266 = scmp.eq.s32.totalorder %s18, 0
    %p267 = por %p265, %p266
    %p268 = scmp.ne.s32.totalorder %s260, %s262
    %p269 = scmp.eq.s32.totalorder %s23, 3
    %p270 = por %p268, %p269
    %p271 = scmp.ne.s32.totalorder %s262, %s263
    %p272 = scmp.eq.s32.totalorder %s23, 0
    %p273 = por %p271, %p272
    %p274 = scmp.ne.s32.totalorder %s262, %s263
    %p275 = scmp.eq.s32.totalorder %s24, 3
    %p276 = por %p274, %p275
    %p278 = scmp.ne.s32.totalorder %s263, %s277
    %p279 = scmp.eq.s32.totalorder %s24, 0
    %p280 = por %p278, %p279
    %s282 = sadd.s32 %s281, 1
    %p285 = scmp.eq.s32.totalorder %s18, 3
    %p286 = scmp.ne.s32.totalorder %s281, %s283
    %p287 = scmp.eq.s32.totalorder %s18, 0
    %p288 = por %p286, %p287
    %p289 = scmp.ne.s32.totalorder %s281, %s283
    %p290 = scmp.eq.s32.totalorder %s23, 3
    %p291 = por %p289, %p290
    %p292 = scmp.ne.s32.totalorder %s283, %s284
    %p293 = scmp.eq.s32.totalorder %s23, 0
    %p294 = por %p292, %p293
    %p295 = scmp.ne.s32.totalorder %s283, %s284
    %p296 = scmp.eq.s32.totalorder %s24, 3
    %p297 = por %p295, %p296
    %p299 = scmp.ne.s32.totalorder %s284, %s298
    %p300 = scmp.eq.s32.totalorder %s24, 0
    %p301 = por %p299, %p300
    %s302 = ssub.s32 %s25, %s37
    %s303 = ssub.s32 %s26, %s33
    %s304 = sor.u32 %s302, %s303
    %p305 = scmp.eq.s32.totalorder %s304, 0
    %s307 = sadd.s32 %s306, 1
    %s308 = scalar_select %p305, %s306, %s307
    %p311 = pneg %p305
    %p312 = scmp.eq.s32.totalorder %s18, 3
    %p313 = por %p311, %p312
    %p314 = scmp.ne.s32.totalorder %s306, %s309
    %p315 = scmp.eq.s32.totalorder %s18, 0
    %p316 = por %p314, %p315
    %p317 = scmp.ne.s32.totalorder %s306, %s309
    %p318 = scmp.eq.s32.totalorder %s23, 3
    %p319 = por %p317, %p318
    %p320 = scmp.ne.s32.totalorder %s309, %s310
    %p321 = scmp.eq.s32.totalorder %s23, 0
    %p322 = por %p320, %p321
    %p323 = scmp.ne.s32.totalorder %s309, %s310
    %p324 = scmp.eq.s32.totalorder %s24, 3
    %p325 = por %p323, %p324
    %p327 = scmp.ne.s32.totalorder %s310, %s326
    %p328 = scmp.eq.s32.totalorder %s24, 0
    %p329 = por %p327, %p328
    %p330 = scmp.le.s32.totalorder 1, %s18
    %p331 = scmp.lt.s32.totalorder %s18, 5
    %p332 = pnand %p330, %p331
    %p333 = pneg %p332
    // Predicated region
    $region9: #{_mose_forward.2} parent=5 // pred_check
      _
    $region10: #{_mose_forward.2} parent=5 // pred_check_branch
      %335 = sbr.rel (%p332) target = $region12
    $region11: #{_mose_forward.2} parent=5 // pred_region
      %s336 = ssub.s32 %s18, 1
      // Predicated region
      $region13: #{_mose_forward.2} parent=11 // pred_check
        %p337 = pneg %p105
      $region14: #{_mose_forward.2} parent=11 // pred_check_branch
        %339 = sbr.rel (%p337) target = $region16
      $region15: #{_mose_forward.2} parent=11 // pred_region
        _
      $region16: #{_mose_forward.2} parent=11 // pred_fallthru
        _
      // Predicated region
      $region17: #{_mose_forward.2} parent=11 // pred_check
        %p340 = pneg %p126
      $region18: #{_mose_forward.2} parent=11 // pred_check_branch
        %342 = sbr.rel (%p340) target = $region20
      $region19: #{_mose_forward.2} parent=11 // pred_region
        _
      $region20: #{_mose_forward.2} parent=11 // pred_fallthru
        _
      // Predicated region
      $region21: #{_mose_forward.2} parent=11 // pred_check
        %p343 = pneg %p147
      $region22: #{_mose_forward.2} parent=11 // pred_check_branch
        %345 = sbr.rel (%p343) target = $region24
      $region23: #{_mose_forward.2} parent=11 // pred_region
        _
      $region24: #{_mose_forward.2} parent=11 // pred_fallthru
        _
      // Predicated region
      $region25: #{_mose_forward.2} parent=11 // pred_check
        %p346 = pneg %p168
      $region26: #{_mose_forward.2} parent=11 // pred_check_branch
        %348 = sbr.rel (%p346) target = $region28
      $region27: #{_mose_forward.2} parent=11 // pred_region
        _
      $region28: #{_mose_forward.2} parent=11 // pred_fallthru
        _
      // Predicated region
      $region29: #{_mose_forward.2} parent=11 // pred_check
        %p349 = pneg %p189
      $region30: #{_mose_forward.2} parent=11 // pred_check_branch
        %351 = sbr.rel (%p349) target = $region32
      $region31: #{_mose_forward.2} parent=11 // pred_region
        _
      $region32: #{_mose_forward.2} parent=11 // pred_fallthru
        _
      // Predicated region
      $region33: #{_mose_forward.2} parent=11 // pred_check
        %p352 = pneg %p210
      $region34: #{_mose_forward.2} parent=11 // pred_check_branch
        %354 = sbr.rel (%p352) target = $region36
      $region35: #{_mose_forward.2} parent=11 // pred_region
        _
      $region36: #{_mose_forward.2} parent=11 // pred_fallthru
        _
      // Predicated region
      $region37: #{_mose_forward.2} parent=11 // pred_check
        %p355 = pneg %p231
      $region38: #{_mose_forward.2} parent=11 // pred_check_branch
        %357 = sbr.rel (%p355) target = $region40
      $region39: #{_mose_forward.2} parent=11 // pred_region
        _
      $region40: #{_mose_forward.2} parent=11 // pred_fallthru
        _
      // Predicated region
      $region41: #{_mose_forward.2} parent=11 // pred_check
        %p358 = pneg %p252
      $region42: #{_mose_forward.2} parent=11 // pred_check_branch
        %360 = sbr.rel (%p358) target = $region44
      $region43: #{_mose_forward.2} parent=11 // pred_region
        _
      $region44: #{_mose_forward.2} parent=11 // pred_fallthru
        _
      // Predicated region
      $region45: #{_mose_forward.2} parent=11 // pred_check
        %p361 = pneg %p273
      $region46: #{_mose_forward.2} parent=11 // pred_check_branch
        %363 = sbr.rel (%p361) target = $region48
      $region47: #{_mose_forward.2} parent=11 // pred_region
        _
      $region48: #{_mose_forward.2} parent=11 // pred_fallthru
        _
      // Predicated region
      $region49: #{_mose_forward.2} parent=11 // pred_check
        %p364 = pneg %p294
      $region50: #{_mose_forward.2} parent=11 // pred_check_branch
        %366 = sbr.rel (%p364) target = $region52
      $region51: #{_mose_forward.2} parent=11 // pred_region
        _
      $region52: #{_mose_forward.2} parent=11 // pred_fallthru
        _
    $region12: #{_mose_forward.2} parent=5 // pred_fallthru
      _
    %p367 = scmp.lt.s32.totalorder %s18, 4
    // Predicated region
    $region53: #{_mose_forward.2} parent=5 // pred_check
      %p368 = pneg %p367
    $region54: #{_mose_forward.2} parent=5 // pred_check_branch
      %370 = sbr.rel (%p368) target = $region56
    $region55: #{_mose_forward.2} parent=5 // pred_region
      // Predicated region
      $region57: #{_mose_forward.2} parent=55 // pred_check
        %p371 = pneg %p50
      $region58: #{_mose_forward.2} parent=55 // pred_check_branch
        %373 = sbr.rel (%p371) target = $region60
      $region59: #{_mose_forward.2} parent=55 // pred_region
        %p374 = scmp.lt.s32.totalorder %s25, 1
        %s375 = scalar_select %p374, %s25, 1
        %s376 = smul.addr %s375, 8
        %s377 = smul.addr %s376, 8
        %s378 = scalar_lea.vmem %s0, %s377
      $region60: #{_mose_forward.2} parent=55 // pred_fallthru
        _
      // Predicated region
      $region61: #{_mose_forward.2} parent=55 // pred_check
        %p379 = pneg %p78
      $region62: #{_mose_forward.2} parent=55 // pred_check_branch
        %381 = sbr.rel (%p379) target = $region64
      $region63: #{_mose_forward.2} parent=55 // pred_region
        %p382 = scmp.lt.s32.totalorder %s25, 1
        %s383 = scalar_select %p382, %s25, 1
        %p384 = scmp.lt.s32.totalorder %s26, 1
        %s385 = scalar_select %p384, %s26, 1
        %s386 = smul.addr %s383, 2
        %s387 = sadd.s32 %s385, %s386
        %s388 = smul.addr %s387, 8
        %s389 = scalar_lea.vmem %s1, %s388
      $region64: #{_mose_forward.2} parent=55 // pred_fallthru
        _
    $region56: #{_mose_forward.2} parent=5 // pred_fallthru
      _
    %p390 = scmp.le.s32.totalorder 1, %s18
    %p391 = scmp.lt.s32.totalorder %s18, 5
    %p392 = pnand %p390, %p391
    %p393 = pneg %p392
    // Predicated region
    $region65: #{_mose_forward.2} parent=5 // pred_check
      _
    $region66: #{_mose_forward.2} parent=5 // pred_check_branch
      %395 = sbr.rel (%p392) target = $region68
    $region67: #{_mose_forward.2} parent=5 // pred_region
      %s396 = ssub.s32 %s18, 1
      %p397 = scmp.lt.s32.totalorder %s27, 1
      %s398 = scalar_select %p397, %s27, 1
      %s399 = smul.addr %s398, 8
      %s400 = smul.addr %s399, 8
      %s401 = scalar_lea.vmem %s0, %s400
      %p402 = pneg %p56
      %p403 = pneg %p53
      %p404 = scmp.lt.s32.totalorder %s27, 1
      %s405 = scalar_select %p404, %s27, 1
      %p406 = scmp.lt.s32.totalorder %s28, 1
      %s407 = scalar_select %p406, %s28, 1
      %s408 = smul.addr %s405, 2
      %s409 = sadd.s32 %s407, %s408
      %s410 = smul.addr %s409, 8
      %s411 = scalar_lea.vmem %s1, %s410
      %p412 = pneg %p84
      %p413 = pneg %p81
      %p414 = pneg %p105
      %p415 = pneg %p102
      %p416 = pneg %p126
      %p417 = pneg %p123
      %p418 = pneg %p147
      %p419 = pneg %p144
      %p420 = pneg %p168
      %p421 = pneg %p165
      %p422 = pneg %p189
      %p423 = pneg %p186
      %p424 = pneg %p210
      %p425 = pneg %p207
      %p426 = pneg %p231
      %p427 = pneg %p228
      %p428 = pneg %p252
      %p429 = pneg %p249
      %p430 = pneg %p273
      %p431 = pneg %p270
      %p432 = pneg %p294
      %p433 = pneg %p291
      %p434 = pneg %p322
      %p435 = pneg %p319
      %s436 = smul.u32 2, %s28
      %p437 = scmp.lt.s32.totalorder %s27, 1
      %s438 = scalar_select %p437, %s27, 1
      %p439 = scmp.lt.s32.totalorder %s436, 3
      %s440 = scalar_select %p439, %s436, 3
      %s441 = smul.addr %s440, 2
      %s442 = smul.addr %s438, 8
      %s443 = sadd.s32 %s441, %s442
      %s444 = smul.addr %s443, 8
      %s445 = scalar_lea.vmem %s12, %s444
      %p446 = scmp.lt.s32.totalorder %s27, 1
      %s447 = scalar_select %p446, %s27, 1
      %s448 = smul.addr %s447, 8
      %s449 = smul.addr %s448, 8
      %s450 = scalar_lea.vmem %s0, %s449
      %p451 = scmp.lt.s32.totalorder %s27, 1
      %s452 = scalar_select %p451, %s27, 1
      %p453 = scmp.lt.s32.totalorder %s28, 1
      %s454 = scalar_select %p453, %s28, 1
      %s455 = smul.addr %s452, 2
      %s456 = sadd.s32 %s454, %s455
      %s457 = smul.addr %s456, 8
      %s458 = scalar_lea.vmem %s1, %s457
      %s459 = smul.u32 2, %s28
      %p460 = scmp.lt.s32.totalorder %s27, 1
      %s461 = scalar_select %p460, %s27, 1
      %p462 = scmp.lt.s32.totalorder %s459, 3
      %s463 = scalar_select %p462, %s459, 3
      %s464 = smul.addr %s463, 2
      %s465 = smul.addr %s461, 8
      %s466 = sadd.s32 %s464, %s465
      %s467 = smul.addr %s466, 8
      %s468 = scalar_lea.vmem %s12, %s467
      %s469 = smul.u32 2, %s28
      %v470 = vld [vmem:[%s450] sm:$0xff]
      %v471 = vld [vmem:[%s450 + $0x8] sm:$0xff]
      %v472 = vld [vmem:[%s450 + $0x10] sm:$0xff]
      %v473 = vld [vmem:[%s450 + $0x18] sm:$0xff]
      %v474 = vld [vmem:[%s450 + $0x20] sm:$0xff]
      %v475 = vld [vmem:[%s450 + $0x28] sm:$0xff]
      %v476 = vld [vmem:[%s450 + $0x30] sm:$0xff]
      %v477 = vld [vmem:[%s450 + $0x38] sm:$0xff]
      %v478 = vld [vmem:[%s458] sm:$0xff]
      %v479 = vld [vmem:[%s2] sm:$0xff]
      %v480 = vld [vmem:[%s2 + $0x8] sm:$0xff]
      %v481 = vld [vmem:[%s2 + $0x10] sm:$0xff]
      %v482 = vld [vmem:[%s2 + $0x18] sm:$0xff]
      %484 = vset.pattern.permute.xlu0 0
      %485 = vperm.xlu0 %484, %v479
      %v486 = vpop.permute.xlu0 %485
      %489 = vset.pattern.permute.xlu0 0
      %490 = vperm.xlu0 %489, %v480
      %v491 = vpop.permute.xlu0 %490
      %494 = vset.pattern.permute.xlu0 0
      %495 = vperm.xlu0 %494, %v481
      %v496 = vpop.permute.xlu0 %495
      %499 = vset.pattern.permute.xlu0 0
      %500 = vperm.xlu0 %499, %v482
      %v501 = vpop.permute.xlu0 %500
      %504 = vset.pattern.permute.xlu0 0
      %505 = vperm.xlu0 %504, %v478
      %v506 = vpop.permute.xlu0 %505
      %v507 = vlaneseq
      %v508 = vand.u32 %v507, 127
      %v509 = vlaneseq
      %v510 = vshrl.u32 %v509, 7
      %v511 = vsub.s32 %v508, %v510
      %v512 = vrot.slane %v506, %v511
      %vm513 = vcmask 1042434
      %v514 = vsel %vm513, %v512, %v512
      %vm515 = vcmask 1043459
      %v516 = vsel %vm515, %v512, %v514
      %vm517 = vcmask 1044484
      %v518 = vsel %vm517, %v512, %v516
      %vm519 = vcmask 1045509
      %v520 = vsel %vm519, %v512, %v518
      %vm521 = vcmask 1046534
      %v522 = vsel %vm521, %v512, %v520
      %vm523 = vcmask 1047559
      %v524 = vsel %vm523, %v512, %v522
      %v526 = vmul.f32 %v486, %v524
      %v527 = vmul.f32 %v491, %v524
      %v528 = vmul.f32 %v496, %v524
      %v529 = vmul.f32 %v501, %v524
      %v530 = vld [vmem:[%s3] sm:$0xff]
      %v531 = vld [vmem:[%s3 + $0x8] sm:$0xff]
      %v532 = vld [vmem:[%s3 + $0x10] sm:$0xff]
      %v533 = vld [vmem:[%s3 + $0x18] sm:$0xff]
      %535 = vset.pattern.permute.xlu0 0
      %536 = vperm.xlu0 %535, %v530
      %v537 = vpop.permute.xlu0 %536
      %540 = vset.pattern.permute.xlu0 0
      %541 = vperm.xlu0 %540, %v531
      %v542 = vpop.permute.xlu0 %541
      %545 = vset.pattern.permute.xlu0 0
      %546 = vperm.xlu0 %545, %v532
      %v547 = vpop.permute.xlu0 %546
      %550 = vset.pattern.permute.xlu0 0
      %551 = vperm.xlu0 %550, %v533
      %v552 = vpop.permute.xlu0 %551
      %v554 = vadd.f32 %v526, %v537
      %v555 = vadd.f32 %v527, %v542
      %v556 = vadd.f32 %v528, %v547
      %v557 = vadd.f32 %v529, %v552
      %v558 = vld [vmem:[%s4] sm:$0xff]
      %v559 = vld [vmem:[%s4 + $0x8] sm:$0xff]
      %v560 = vld [vmem:[%s4 + $0x10] sm:$0xff]
      %v561 = vld [vmem:[%s4 + $0x18] sm:$0xff]
      %563 = vset.pattern.permute.xlu0 0
      %564 = vperm.xlu0 %563, %v558
      %v565 = vpop.permute.xlu0 %564
      %568 = vset.pattern.permute.xlu0 0
      %569 = vperm.xlu0 %568, %v559
      %v570 = vpop.permute.xlu0 %569
      %573 = vset.pattern.permute.xlu0 0
      %574 = vperm.xlu0 %573, %v560
      %v575 = vpop.permute.xlu0 %574
      %578 = vset.pattern.permute.xlu0 0
      %579 = vperm.xlu0 %578, %v561
      %v580 = vpop.permute.xlu0 %579
      %v582 = vmul.f32 %v565, %v524
      %v583 = vmul.f32 %v570, %v524
      %v584 = vmul.f32 %v575, %v524
      %v585 = vmul.f32 %v580, %v524
      %v586 = vld [vmem:[%s5] sm:$0xff]
      %v587 = vld [vmem:[%s5 + $0x8] sm:$0xff]
      %v588 = vld [vmem:[%s5 + $0x10] sm:$0xff]
      %v589 = vld [vmem:[%s5 + $0x18] sm:$0xff]
      %591 = vset.pattern.permute.xlu0 0
      %592 = vperm.xlu0 %591, %v586
      %v593 = vpop.permute.xlu0 %592
      %596 = vset.pattern.permute.xlu0 0
      %597 = vperm.xlu0 %596, %v587
      %v598 = vpop.permute.xlu0 %597
      %601 = vset.pattern.permute.xlu0 0
      %602 = vperm.xlu0 %601, %v588
      %v603 = vpop.permute.xlu0 %602
      %606 = vset.pattern.permute.xlu0 0
      %607 = vperm.xlu0 %606, %v589
      %v608 = vpop.permute.xlu0 %607
      %v610 = vadd.f32 %v582, %v593
      %v611 = vadd.f32 %v583, %v598
      %v612 = vadd.f32 %v584, %v603
      %v613 = vadd.f32 %v585, %v608
      %v622 = vcombine.low %v470, %v471
      %v623 = vcombine.high %v470, %v471
      %v625 = vunpack.c.l.s4 1966171168
      %v626 = vunpack.c.0.s8 %v625
      %v627 = vlaneseq
      %v628 = vshrl.u32 %v627, 7
      %v629 = vsub.s32 %v626, %v628
      %v630 = vrot.slane %v622, %v629
      %v632 = vunpack.c.l.s4 1966171168
      %v633 = vunpack.c.0.s8 %v632
      %v634 = vlaneseq
      %v635 = vshrl.u32 %v634, 7
      %v636 = vsub.s32 %v633, %v635
      %v637 = vrot.slane %v623, %v636
      %v638 = vcombine.high %v630, %v630
      %v639 = vcombine.high %v637, %v637
      %v641 = vunpack.c.l.s4 1966171168
      %v642 = vunpack.c.0.s8 %v641
      %v643 = vlaneseq
      %v644 = vshrl.u32 %v643, 7
      %v645 = vsub.s32 %v642, %v644
      %v646 = vrot.slane %v630, %v645
      %v648 = vunpack.c.l.s4 1966171168
      %v649 = vunpack.c.0.s8 %v648
      %v650 = vlaneseq
      %v651 = vshrl.u32 %v650, 7
      %v652 = vsub.s32 %v649, %v651
      %v653 = vrot.slane %v637, %v652
      %v655 = vunpack.c.l.s4 1966171168
      %v656 = vunpack.c.0.s8 %v655
      %v657 = vlaneseq
      %v658 = vshrl.u32 %v657, 7
      %v659 = vsub.s32 %v656, %v658
      %v660 = vrot.slane %v638, %v659
      %v662 = vunpack.c.l.s4 1966171168
      %v663 = vunpack.c.0.s8 %v662
      %v664 = vlaneseq
      %v665 = vshrl.u32 %v664, 7
      %v666 = vsub.s32 %v663, %v665
      %v667 = vrot.slane %v639, %v666
      %v668 = vcombine.high %v646, %v646
      %v669 = vcombine.high %v653, %v653
      %v670 = vcombine.high %v660, %v660
      %v671 = vcombine.high %v667, %v667
      %v672 = vcombine.low %v472, %v473
      %v673 = vcombine.high %v472, %v473
      %v675 = vunpack.c.l.s4 1966171168
      %v676 = vunpack.c.0.s8 %v675
      %v677 = vlaneseq
      %v678 = vshrl.u32 %v677, 7
      %v679 = vsub.s32 %v676, %v678
      %v680 = vrot.slane %v672, %v679
      %v682 = vunpack.c.l.s4 1966171168
      %v683 = vunpack.c.0.s8 %v682
      %v684 = vlaneseq
      %v685 = vshrl.u32 %v684, 7
      %v686 = vsub.s32 %v683, %v685
      %v687 = vrot.slane %v673, %v686
      %v688 = vcombine.high %v680, %v680
      %v689 = vcombine.high %v687, %v687
      %v691 = vunpack.c.l.s4 1966171168
      %v692 = vunpack.c.0.s8 %v691
      %v693 = vlaneseq
      %v694 = vshrl.u32 %v693, 7
      %v695 = vsub.s32 %v692, %v694
      %v696 = vrot.slane %v680, %v695
      %v698 = vunpack.c.l.s4 1966171168
      %v699 = vunpack.c.0.s8 %v698
      %v700 = vlaneseq
      %v701 = vshrl.u32 %v700, 7
      %v702 = vsub.s32 %v699, %v701
      %v703 = vrot.slane %v687, %v702
      %v705 = vunpack.c.l.s4 1966171168
      %v706 = vunpack.c.0.s8 %v705
      %v707 = vlaneseq
      %v708 = vshrl.u32 %v707, 7
      %v709 = vsub.s32 %v706, %v708
      %v710 = vrot.slane %v688, %v709
      %v712 = vunpack.c.l.s4 1966171168
      %v713 = vunpack.c.0.s8 %v712
      %v714 = vlaneseq
      %v715 = vshrl.u32 %v714, 7
      %v716 = vsub.s32 %v713, %v715
      %v717 = vrot.slane %v689, %v716
      %v718 = vcombine.high %v696, %v696
      %v719 = vcombine.high %v703, %v703
      %v720 = vcombine.high %v710, %v710
      %v721 = vcombine.high %v717, %v717
      %v722 = vcombine.low %v474, %v475
      %v723 = vcombine.high %v474, %v475
      %v725 = vunpack.c.l.s4 1966171168
      %v726 = vunpack.c.0.s8 %v725
      %v727 = vlaneseq
      %v728 = vshrl.u32 %v727, 7
      %v729 = vsub.s32 %v726, %v728
      %v730 = vrot.slane %v722, %v729
      %v732 = vunpack.c.l.s4 1966171168
      %v733 = vunpack.c.0.s8 %v732
      %v734 = vlaneseq
      %v735 = vshrl.u32 %v734, 7
      %v736 = vsub.s32 %v733, %v735
      %v737 = vrot.slane %v723, %v736
      %v738 = vcombine.high %v730, %v730
      %v739 = vcombine.high %v737, %v737
      %v741 = vunpack.c.l.s4 1966171168
      %v742 = vunpack.c.0.s8 %v741
      %v743 = vlaneseq
      %v744 = vshrl.u32 %v743, 7
      %v745 = vsub.s32 %v742, %v744
      %v746 = vrot.slane %v730, %v745
      %v748 = vunpack.c.l.s4 1966171168
      %v749 = vunpack.c.0.s8 %v748
      %v750 = vlaneseq
      %v751 = vshrl.u32 %v750, 7
      %v752 = vsub.s32 %v749, %v751
      %v753 = vrot.slane %v737, %v752
      %v755 = vunpack.c.l.s4 1966171168
      %v756 = vunpack.c.0.s8 %v755
      %v757 = vlaneseq
      %v758 = vshrl.u32 %v757, 7
      %v759 = vsub.s32 %v756, %v758
      %v760 = vrot.slane %v738, %v759
      %v762 = vunpack.c.l.s4 1966171168
      %v763 = vunpack.c.0.s8 %v762
      %v764 = vlaneseq
      %v765 = vshrl.u32 %v764, 7
      %v766 = vsub.s32 %v763, %v765
      %v767 = vrot.slane %v739, %v766
      %v768 = vcombine.high %v746, %v746
      %v769 = vcombine.high %v753, %v753
      %v770 = vcombine.high %v760, %v760
      %v771 = vcombine.high %v767, %v767
      %v772 = vcombine.low %v476, %v477
      %v773 = vcombine.high %v476, %v477
      %v775 = vunpack.c.l.s4 1966171168
      %v776 = vunpack.c.0.s8 %v775
      %v777 = vlaneseq
      %v778 = vshrl.u32 %v777, 7
      %v779 = vsub.s32 %v776, %v778
      %v780 = vrot.slane %v772, %v779
      %v782 = vunpack.c.l.s4 1966171168
      %v783 = vunpack.c.0.s8 %v782
      %v784 = vlaneseq
      %v785 = vshrl.u32 %v784, 7
      %v786 = vsub.s32 %v783, %v785
      %v787 = vrot.slane %v773, %v786
      %v788 = vcombine.high %v780, %v780
      %v789 = vcombine.high %v787, %v787
      %v791 = vunpack.c.l.s4 1966171168
      %v792 = vunpack.c.0.s8 %v791
      %v793 = vlaneseq
      %v794 = vshrl.u32 %v793, 7
      %v795 = vsub.s32 %v792, %v794
      %v796 = vrot.slane %v780, %v795
      %v798 = vunpack.c.l.s4 1966171168
      %v799 = vunpack.c.0.s8 %v798
      %v800 = vlaneseq
      %v801 = vshrl.u32 %v800, 7
      %v802 = vsub.s32 %v799, %v801
      %v803 = vrot.slane %v787, %v802
      %v805 = vunpack.c.l.s4 1966171168
      %v806 = vunpack.c.0.s8 %v805
      %v807 = vlaneseq
      %v808 = vshrl.u32 %v807, 7
      %v809 = vsub.s32 %v806, %v808
      %v810 = vrot.slane %v788, %v809
      %v812 = vunpack.c.l.s4 1966171168
      %v813 = vunpack.c.0.s8 %v812
      %v814 = vlaneseq
      %v815 = vshrl.u32 %v814, 7
      %v816 = vsub.s32 %v813, %v815
      %v817 = vrot.slane %v789, %v816
      %v818 = vcombine.high %v796, %v796
      %v819 = vcombine.high %v803, %v803
      %v820 = vcombine.high %v810, %v810
      %v821 = vcombine.high %v817, %v817
      %v822 = vlaneseq
      %v823 = vshrl.u32 %v822, 7
      %v824 = vsub.s32 0, %v823
      %v825 = vrot.slane %v554, %v824
      %827 = vbcast.lane.b32.xlu0 %v825, 256
      %v828 = vpop.permute.xlu0 %827
      %v829 = vlaneseq
      %v830 = vshrl.u32 %v829, 7
      %v831 = vsub.s32 1, %v830
      %v832 = vrot.slane %v554, %v831
      %834 = vbcast.lane.b32.xlu0 %v832, 256
      %v835 = vpop.permute.xlu0 %834
      %v836 = vlaneseq
      %v837 = vshrl.u32 %v836, 7
      %v838 = vsub.s32 2, %v837
      %v839 = vrot.slane %v554, %v838
      %841 = vbcast.lane.b32.xlu0 %v839, 256
      %v842 = vpop.permute.xlu0 %841
      %v843 = vlaneseq
      %v844 = vshrl.u32 %v843, 7
      %v845 = vsub.s32 3, %v844
      %v846 = vrot.slane %v554, %v845
      %848 = vbcast.lane.b32.xlu0 %v846, 256
      %v849 = vpop.permute.xlu0 %848
      %v850 = vlaneseq
      %v851 = vshrl.u32 %v850, 7
      %v852 = vsub.s32 4, %v851
      %v853 = vrot.slane %v554, %v852
      %855 = vbcast.lane.b32.xlu0 %v853, 256
      %v856 = vpop.permute.xlu0 %855
      %v857 = vlaneseq
      %v858 = vshrl.u32 %v857, 7
      %v859 = vsub.s32 5, %v858
      %v860 = vrot.slane %v554, %v859
      %862 = vbcast.lane.b32.xlu0 %v860, 256
      %v863 = vpop.permute.xlu0 %862
      %v864 = vlaneseq
      %v865 = vshrl.u32 %v864, 7
      %v866 = vsub.s32 6, %v865
      %v867 = vrot.slane %v554, %v866
      %869 = vbcast.lane.b32.xlu0 %v867, 256
      %v870 = vpop.permute.xlu0 %869
      %v871 = vlaneseq
      %v872 = vshrl.u32 %v871, 7
      %v873 = vsub.s32 7, %v872
      %v874 = vrot.slane %v554, %v873
      %876 = vbcast.lane.b32.xlu0 %v874, 256
      %v877 = vpop.permute.xlu0 %876
      %v878 = vlaneseq
      %v879 = vshrl.u32 %v878, 7
      %v880 = vsub.s32 0, %v879
      %v881 = vrot.slane %v555, %v880
      %883 = vbcast.lane.b32.xlu0 %v881, 256
      %v884 = vpop.permute.xlu0 %883
      %v885 = vlaneseq
      %v886 = vshrl.u32 %v885, 7
      %v887 = vsub.s32 1, %v886
      %v888 = vrot.slane %v555, %v887
      %890 = vbcast.lane.b32.xlu0 %v888, 256
      %v891 = vpop.permute.xlu0 %890
      %v892 = vlaneseq
      %v893 = vshrl.u32 %v892, 7
      %v894 = vsub.s32 2, %v893
      %v895 = vrot.slane %v555, %v894
      %897 = vbcast.lane.b32.xlu0 %v895, 256
      %v898 = vpop.permute.xlu0 %897
      %v899 = vlaneseq
      %v900 = vshrl.u32 %v899, 7
      %v901 = vsub.s32 3, %v900
      %v902 = vrot.slane %v555, %v901
      %904 = vbcast.lane.b32.xlu0 %v902, 256
      %v905 = vpop.permute.xlu0 %904
      %v906 = vlaneseq
      %v907 = vshrl.u32 %v906, 7
      %v908 = vsub.s32 4, %v907
      %v909 = vrot.slane %v555, %v908
      %911 = vbcast.lane.b32.xlu0 %v909, 256
      %v912 = vpop.permute.xlu0 %911
      %v913 = vlaneseq
      %v914 = vshrl.u32 %v913, 7
      %v915 = vsub.s32 5, %v914
      %v916 = vrot.slane %v555, %v915
      %918 = vbcast.lane.b32.xlu0 %v916, 256
      %v919 = vpop.permute.xlu0 %918
      %v920 = vlaneseq
      %v921 = vshrl.u32 %v920, 7
      %v922 = vsub.s32 6, %v921
      %v923 = vrot.slane %v555, %v922
      %925 = vbcast.lane.b32.xlu0 %v923, 256
      %v926 = vpop.permute.xlu0 %925
      %v927 = vlaneseq
      %v928 = vshrl.u32 %v927, 7
      %v929 = vsub.s32 7, %v928
      %v930 = vrot.slane %v555, %v929
      %932 = vbcast.lane.b32.xlu0 %v930, 256
      %v933 = vpop.permute.xlu0 %932
      %v934 = vlaneseq
      %v935 = vshrl.u32 %v934, 7
      %v936 = vsub.s32 0, %v935
      %v937 = vrot.slane %v556, %v936
      %939 = vbcast.lane.b32.xlu0 %v937, 256
      %v940 = vpop.permute.xlu0 %939
      %v941 = vlaneseq
      %v942 = vshrl.u32 %v941, 7
      %v943 = vsub.s32 1, %v942
      %v944 = vrot.slane %v556, %v943
      %946 = vbcast.lane.b32.xlu0 %v944, 256
      %v947 = vpop.permute.xlu0 %946
      %v948 = vlaneseq
      %v949 = vshrl.u32 %v948, 7
      %v950 = vsub.s32 2, %v949
      %v951 = vrot.slane %v556, %v950
      %953 = vbcast.lane.b32.xlu0 %v951, 256
      %v954 = vpop.permute.xlu0 %953
      %v955 = vlaneseq
      %v956 = vshrl.u32 %v955, 7
      %v957 = vsub.s32 3, %v956
      %v958 = vrot.slane %v556, %v957
      %960 = vbcast.lane.b32.xlu0 %v958, 256
      %v961 = vpop.permute.xlu0 %960
      %v962 = vlaneseq
      %v963 = vshrl.u32 %v962, 7
      %v964 = vsub.s32 4, %v963
      %v965 = vrot.slane %v556, %v964
      %967 = vbcast.lane.b32.xlu0 %v965, 256
      %v968 = vpop.permute.xlu0 %967
      %v969 = vlaneseq
      %v970 = vshrl.u32 %v969, 7
      %v971 = vsub.s32 5, %v970
      %v972 = vrot.slane %v556, %v971
      %974 = vbcast.lane.b32.xlu0 %v972, 256
      %v975 = vpop.permute.xlu0 %974
      %v976 = vlaneseq
      %v977 = vshrl.u32 %v976, 7
      %v978 = vsub.s32 6, %v977
      %v979 = vrot.slane %v556, %v978
      %981 = vbcast.lane.b32.xlu0 %v979, 256
      %v982 = vpop.permute.xlu0 %981
      %v983 = vlaneseq
      %v984 = vshrl.u32 %v983, 7
      %v985 = vsub.s32 7, %v984
      %v986 = vrot.slane %v556, %v985
      %988 = vbcast.lane.b32.xlu0 %v986, 256
      %v989 = vpop.permute.xlu0 %988
      %v990 = vlaneseq
      %v991 = vshrl.u32 %v990, 7
      %v992 = vsub.s32 0, %v991
      %v993 = vrot.slane %v557, %v992
      %995 = vbcast.lane.b32.xlu0 %v993, 256
      %v996 = vpop.permute.xlu0 %995
      %v997 = vlaneseq
      %v998 = vshrl.u32 %v997, 7
      %v999 = vsub.s32 1, %v998
      %v1000 = vrot.slane %v557, %v999
      %1002 = vbcast.lane.b32.xlu0 %v1000, 256
      %v1003 = vpop.permute.xlu0 %1002
      %v1004 = vlaneseq
      %v1005 = vshrl.u32 %v1004, 7
      %v1006 = vsub.s32 2, %v1005
      %v1007 = vrot.slane %v557, %v1006
      %1009 = vbcast.lane.b32.xlu0 %v1007, 256
      %v1010 = vpop.permute.xlu0 %1009
      %v1011 = vlaneseq
      %v1012 = vshrl.u32 %v1011, 7
      %v1013 = vsub.s32 3, %v1012
      %v1014 = vrot.slane %v557, %v1013
      %1016 = vbcast.lane.b32.xlu0 %v1014, 256
      %v1017 = vpop.permute.xlu0 %1016
      %v1018 = vlaneseq
      %v1019 = vshrl.u32 %v1018, 7
      %v1020 = vsub.s32 4, %v1019
      %v1021 = vrot.slane %v557, %v1020
      %1023 = vbcast.lane.b32.xlu0 %v1021, 256
      %v1024 = vpop.permute.xlu0 %1023
      %v1025 = vlaneseq
      %v1026 = vshrl.u32 %v1025, 7
      %v1027 = vsub.s32 5, %v1026
      %v1028 = vrot.slane %v557, %v1027
      %1030 = vbcast.lane.b32.xlu0 %v1028, 256
      %v1031 = vpop.permute.xlu0 %1030
      %v1032 = vlaneseq
      %v1033 = vshrl.u32 %v1032, 7
      %v1034 = vsub.s32 6, %v1033
      %v1035 = vrot.slane %v557, %v1034
      %1037 = vbcast.lane.b32.xlu0 %v1035, 256
      %v1038 = vpop.permute.xlu0 %1037
      %v1039 = vlaneseq
      %v1040 = vshrl.u32 %v1039, 7
      %v1041 = vsub.s32 7, %v1040
      %v1042 = vrot.slane %v557, %v1041
      %1044 = vbcast.lane.b32.xlu0 %v1042, 256
      %v1045 = vpop.permute.xlu0 %1044
      %v1046 = vlaneseq
      %v1047 = vshrl.u32 %v1046, 7
      %v1048 = vsub.s32 0, %v1047
      %v1049 = vrot.slane %v646, %v1048
      %v1050 = vlaneseq
      %v1051 = vshrl.u32 %v1050, 7
      %v1052 = vsub.s32 1, %v1051
      %v1053 = vrot.slane %v646, %v1052
      %v1054 = vlaneseq
      %v1055 = vshrl.u32 %v1054, 7
      %v1056 = vsub.s32 0, %v1055
      %v1057 = vrot.slane %v660, %v1056
      %v1058 = vlaneseq
      %v1059 = vshrl.u32 %v1058, 7
      %v1060 = vsub.s32 1, %v1059
      %v1061 = vrot.slane %v660, %v1060
      %v1062 = vlaneseq
      %v1063 = vshrl.u32 %v1062, 7
      %v1064 = vsub.s32 0, %v1063
      %v1065 = vrot.slane %v668, %v1064
      %v1066 = vlaneseq
      %v1067 = vshrl.u32 %v1066, 7
      %v1068 = vsub.s32 1, %v1067
      %v1069 = vrot.slane %v668, %v1068
      %v1070 = vlaneseq
      %v1071 = vshrl.u32 %v1070, 7
      %v1072 = vsub.s32 0, %v1071
      %v1073 = vrot.slane %v670, %v1072
      %v1074 = vlaneseq
      %v1075 = vshrl.u32 %v1074, 7
      %v1076 = vsub.s32 1, %v1075
      %v1077 = vrot.slane %v670, %v1076
      %v1078 = vlaneseq
      %v1079 = vshrl.u32 %v1078, 7
      %v1080 = vsub.s32 0, %v1079
      %v1081 = vrot.slane %v653, %v1080
      %v1082 = vlaneseq
      %v1083 = vshrl.u32 %v1082, 7
      %v1084 = vsub.s32 1, %v1083
      %v1085 = vrot.slane %v653, %v1084
      %v1086 = vlaneseq
      %v1087 = vshrl.u32 %v1086, 7
      %v1088 = vsub.s32 0, %v1087
      %v1089 = vrot.slane %v667, %v1088
      %v1090 = vlaneseq
      %v1091 = vshrl.u32 %v1090, 7
      %v1092 = vsub.s32 1, %v1091
      %v1093 = vrot.slane %v667, %v1092
      %v1094 = vlaneseq
      %v1095 = vshrl.u32 %v1094, 7
      %v1096 = vsub.s32 0, %v1095
      %v1097 = vrot.slane %v669, %v1096
      %v1098 = vlaneseq
      %v1099 = vshrl.u32 %v1098, 7
      %v1100 = vsub.s32 1, %v1099
      %v1101 = vrot.slane %v669, %v1100
      %v1102 = vlaneseq
      %v1103 = vshrl.u32 %v1102, 7
      %v1104 = vsub.s32 0, %v1103
      %v1105 = vrot.slane %v671, %v1104
      %v1106 = vlaneseq
      %v1107 = vshrl.u32 %v1106, 7
      %v1108 = vsub.s32 1, %v1107
      %v1109 = vrot.slane %v671, %v1108
      %v1110 = vlaneseq
      %v1111 = vshrl.u32 %v1110, 7
      %v1112 = vsub.s32 0, %v1111
      %v1113 = vrot.slane %v696, %v1112
      %v1114 = vlaneseq
      %v1115 = vshrl.u32 %v1114, 7
      %v1116 = vsub.s32 1, %v1115
      %v1117 = vrot.slane %v696, %v1116
      %v1118 = vlaneseq
      %v1119 = vshrl.u32 %v1118, 7
      %v1120 = vsub.s32 0, %v1119
      %v1121 = vrot.slane %v710, %v1120
      %v1122 = vlaneseq
      %v1123 = vshrl.u32 %v1122, 7
      %v1124 = vsub.s32 1, %v1123
      %v1125 = vrot.slane %v710, %v1124
      %v1126 = vlaneseq
      %v1127 = vshrl.u32 %v1126, 7
      %v1128 = vsub.s32 0, %v1127
      %v1129 = vrot.slane %v718, %v1128
      %v1130 = vlaneseq
      %v1131 = vshrl.u32 %v1130, 7
      %v1132 = vsub.s32 1, %v1131
      %v1133 = vrot.slane %v718, %v1132
      %v1134 = vlaneseq
      %v1135 = vshrl.u32 %v1134, 7
      %v1136 = vsub.s32 0, %v1135
      %v1137 = vrot.slane %v720, %v1136
      %v1138 = vlaneseq
      %v1139 = vshrl.u32 %v1138, 7
      %v1140 = vsub.s32 1, %v1139
      %v1141 = vrot.slane %v720, %v1140
      %v1142 = vlaneseq
      %v1143 = vshrl.u32 %v1142, 7
      %v1144 = vsub.s32 0, %v1143
      %v1145 = vrot.slane %v703, %v1144
      %v1146 = vlaneseq
      %v1147 = vshrl.u32 %v1146, 7
      %v1148 = vsub.s32 1, %v1147
      %v1149 = vrot.slane %v703, %v1148
      %v1150 = vlaneseq
      %v1151 = vshrl.u32 %v1150, 7
      %v1152 = vsub.s32 0, %v1151
      %v1153 = vrot.slane %v717, %v1152
      %v1154 = vlaneseq
      %v1155 = vshrl.u32 %v1154, 7
      %v1156 = vsub.s32 1, %v1155
      %v1157 = vrot.slane %v717, %v1156
      %v1158 = vlaneseq
      %v1159 = vshrl.u32 %v1158, 7
      %v1160 = vsub.s32 0, %v1159
      %v1161 = vrot.slane %v719, %v1160
      %v1162 = vlaneseq
      %v1163 = vshrl.u32 %v1162, 7
      %v1164 = vsub.s32 1, %v1163
      %v1165 = vrot.slane %v719, %v1164
      %v1166 = vlaneseq
      %v1167 = vshrl.u32 %v1166, 7
      %v1168 = vsub.s32 0, %v1167
      %v1169 = vrot.slane %v721, %v1168
      %v1170 = vlaneseq
      %v1171 = vshrl.u32 %v1170, 7
      %v1172 = vsub.s32 1, %v1171
      %v1173 = vrot.slane %v721, %v1172
      %v1174 = vlaneseq
      %v1175 = vshrl.u32 %v1174, 7
      %v1176 = vsub.s32 0, %v1175
      %v1177 = vrot.slane %v746, %v1176
      %v1178 = vlaneseq
      %v1179 = vshrl.u32 %v1178, 7
      %v1180 = vsub.s32 1, %v1179
      %v1181 = vrot.slane %v746, %v1180
      %v1182 = vlaneseq
      %v1183 = vshrl.u32 %v1182, 7
      %v1184 = vsub.s32 0, %v1183
      %v1185 = vrot.slane %v760, %v1184
      %v1186 = vlaneseq
      %v1187 = vshrl.u32 %v1186, 7
      %v1188 = vsub.s32 1, %v1187
      %v1189 = vrot.slane %v760, %v1188
      %v1190 = vlaneseq
      %v1191 = vshrl.u32 %v1190, 7
      %v1192 = vsub.s32 0, %v1191
      %v1193 = vrot.slane %v768, %v1192
      %v1194 = vlaneseq
      %v1195 = vshrl.u32 %v1194, 7
      %v1196 = vsub.s32 1, %v1195
      %v1197 = vrot.slane %v768, %v1196
      %v1198 = vlaneseq
      %v1199 = vshrl.u32 %v1198, 7
      %v1200 = vsub.s32 0, %v1199
      %v1201 = vrot.slane %v770, %v1200
      %v1202 = vlaneseq
      %v1203 = vshrl.u32 %v1202, 7
      %v1204 = vsub.s32 1, %v1203
      %v1205 = vrot.slane %v770, %v1204
      %v1206 = vlaneseq
      %v1207 = vshrl.u32 %v1206, 7
      %v1208 = vsub.s32 0, %v1207
      %v1209 = vrot.slane %v753, %v1208
      %v1210 = vlaneseq
      %v1211 = vshrl.u32 %v1210, 7
      %v1212 = vsub.s32 1, %v1211
      %v1213 = vrot.slane %v753, %v1212
      %v1214 = vlaneseq
      %v1215 = vshrl.u32 %v1214, 7
      %v1216 = vsub.s32 0, %v1215
      %v1217 = vrot.slane %v767, %v1216
      %v1218 = vlaneseq
      %v1219 = vshrl.u32 %v1218, 7
      %v1220 = vsub.s32 1, %v1219
      %v1221 = vrot.slane %v767, %v1220
      %v1222 = vlaneseq
      %v1223 = vshrl.u32 %v1222, 7
      %v1224 = vsub.s32 0, %v1223
      %v1225 = vrot.slane %v769, %v1224
      %v1226 = vlaneseq
      %v1227 = vshrl.u32 %v1226, 7
      %v1228 = vsub.s32 1, %v1227
      %v1229 = vrot.slane %v769, %v1228
      %v1230 = vlaneseq
      %v1231 = vshrl.u32 %v1230, 7
      %v1232 = vsub.s32 0, %v1231
      %v1233 = vrot.slane %v771, %v1232
      %v1234 = vlaneseq
      %v1235 = vshrl.u32 %v1234, 7
      %v1236 = vsub.s32 1, %v1235
      %v1237 = vrot.slane %v771, %v1236
      %v1238 = vlaneseq
      %v1239 = vshrl.u32 %v1238, 7
      %v1240 = vsub.s32 0, %v1239
      %v1241 = vrot.slane %v796, %v1240
      %v1242 = vlaneseq
      %v1243 = vshrl.u32 %v1242, 7
      %v1244 = vsub.s32 1, %v1243
      %v1245 = vrot.slane %v796, %v1244
      %v1246 = vlaneseq
      %v1247 = vshrl.u32 %v1246, 7
      %v1248 = vsub.s32 0, %v1247
      %v1249 = vrot.slane %v810, %v1248
      %v1250 = vlaneseq
      %v1251 = vshrl.u32 %v1250, 7
      %v1252 = vsub.s32 1, %v1251
      %v1253 = vrot.slane %v810, %v1252
      %v1254 = vlaneseq
      %v1255 = vshrl.u32 %v1254, 7
      %v1256 = vsub.s32 0, %v1255
      %v1257 = vrot.slane %v818, %v1256
      %v1258 = vlaneseq
      %v1259 = vshrl.u32 %v1258, 7
      %v1260 = vsub.s32 1, %v1259
      %v1261 = vrot.slane %v818, %v1260
      %v1262 = vlaneseq
      %v1263 = vshrl.u32 %v1262, 7
      %v1264 = vsub.s32 0, %v1263
      %v1265 = vrot.slane %v820, %v1264
      %v1266 = vlaneseq
      %v1267 = vshrl.u32 %v1266, 7
      %v1268 = vsub.s32 1, %v1267
      %v1269 = vrot.slane %v820, %v1268
      %v1270 = vlaneseq
      %v1271 = vshrl.u32 %v1270, 7
      %v1272 = vsub.s32 0, %v1271
      %v1273 = vrot.slane %v803, %v1272
      %v1274 = vlaneseq
      %v1275 = vshrl.u32 %v1274, 7
      %v1276 = vsub.s32 1, %v1275
      %v1277 = vrot.slane %v803, %v1276
      %v1278 = vlaneseq
      %v1279 = vshrl.u32 %v1278, 7
      %v1280 = vsub.s32 0, %v1279
      %v1281 = vrot.slane %v817, %v1280
      %v1282 = vlaneseq
      %v1283 = vshrl.u32 %v1282, 7
      %v1284 = vsub.s32 1, %v1283
      %v1285 = vrot.slane %v817, %v1284
      %v1286 = vlaneseq
      %v1287 = vshrl.u32 %v1286, 7
      %v1288 = vsub.s32 0, %v1287
      %v1289 = vrot.slane %v819, %v1288
      %v1290 = vlaneseq
      %v1291 = vshrl.u32 %v1290, 7
      %v1292 = vsub.s32 1, %v1291
      %v1293 = vrot.slane %v819, %v1292
      %v1294 = vlaneseq
      %v1295 = vshrl.u32 %v1294, 7
      %v1296 = vsub.s32 0, %v1295
      %v1297 = vrot.slane %v821, %v1296
      %v1298 = vlaneseq
      %v1299 = vshrl.u32 %v1298, 7
      %v1300 = vsub.s32 1, %v1299
      %v1301 = vrot.slane %v821, %v1300
      %v1366 = vadd.f32 %v1049, %v828
      %v1367 = vadd.f32 %v1053, %v828
      %v1368 = vadd.f32 %v1057, %v835
      %v1369 = vadd.f32 %v1061, %v835
      %v1370 = vadd.f32 %v1065, %v842
      %v1371 = vadd.f32 %v1069, %v842
      %v1372 = vadd.f32 %v1073, %v849
      %v1373 = vadd.f32 %v1077, %v849
      %v1374 = vadd.f32 %v1081, %v856
      %v1375 = vadd.f32 %v1085, %v856
      %v1376 = vadd.f32 %v1089, %v863
      %v1377 = vadd.f32 %v1093, %v863
      %v1378 = vadd.f32 %v1097, %v870
      %v1379 = vadd.f32 %v1101, %v870
      %v1380 = vadd.f32 %v1105, %v877
      %v1381 = vadd.f32 %v1109, %v877
      %v1382 = vadd.f32 %v1113, %v884
      %v1383 = vadd.f32 %v1117, %v884
      %v1384 = vadd.f32 %v1121, %v891
      %v1385 = vadd.f32 %v1125, %v891
      %v1386 = vadd.f32 %v1129, %v898
      %v1387 = vadd.f32 %v1133, %v898
      %v1388 = vadd.f32 %v1137, %v905
      %v1389 = vadd.f32 %v1141, %v905
      %v1390 = vadd.f32 %v1145, %v912
      %v1391 = vadd.f32 %v1149, %v912
      %v1392 = vadd.f32 %v1153, %v919
      %v1393 = vadd.f32 %v1157, %v919
      %v1394 = vadd.f32 %v1161, %v926
      %v1395 = vadd.f32 %v1165, %v926
      %v1396 = vadd.f32 %v1169, %v933
      %v1397 = vadd.f32 %v1173, %v933
      %v1398 = vadd.f32 %v1177, %v940
      %v1399 = vadd.f32 %v1181, %v940
      %v1400 = vadd.f32 %v1185, %v947
      %v1401 = vadd.f32 %v1189, %v947
      %v1402 = vadd.f32 %v1193, %v954
      %v1403 = vadd.f32 %v1197, %v954
      %v1404 = vadd.f32 %v1201, %v961
      %v1405 = vadd.f32 %v1205, %v961
      %v1406 = vadd.f32 %v1209, %v968
      %v1407 = vadd.f32 %v1213, %v968
      %v1408 = vadd.f32 %v1217, %v975
      %v1409 = vadd.f32 %v1221, %v975
      %v1410 = vadd.f32 %v1225, %v982
      %v1411 = vadd.f32 %v1229, %v982
      %v1412 = vadd.f32 %v1233, %v989
      %v1413 = vadd.f32 %v1237, %v989
      %v1414 = vadd.f32 %v1241, %v996
      %v1415 = vadd.f32 %v1245, %v996
      %v1416 = vadd.f32 %v1249, %v1003
      %v1417 = vadd.f32 %v1253, %v1003
      %v1418 = vadd.f32 %v1257, %v1010
      %v1419 = vadd.f32 %v1261, %v1010
      %v1420 = vadd.f32 %v1265, %v1017
      %v1421 = vadd.f32 %v1269, %v1017
      %v1422 = vadd.f32 %v1273, %v1024
      %v1423 = vadd.f32 %v1277, %v1024
      %v1424 = vadd.f32 %v1281, %v1031
      %v1425 = vadd.f32 %v1285, %v1031
      %v1426 = vadd.f32 %v1289, %v1038
      %v1427 = vadd.f32 %v1293, %v1038
      %v1428 = vadd.f32 %v1297, %v1045
      %v1429 = vadd.f32 %v1301, %v1045
      %v1430 = vlaneseq
      %v1431 = vshrl.u32 %v1430, 7
      %v1432 = vsub.s32 0, %v1431
      %v1433 = vrot.slane %v610, %v1432
      %1435 = vbcast.lane.b32.xlu0 %v1433, 256
      %v1436 = vpop.permute.xlu0 %1435
      %v1437 = vlaneseq
      %v1438 = vshrl.u32 %v1437, 7
      %v1439 = vsub.s32 1, %v1438
      %v1440 = vrot.slane %v610, %v1439
      %1442 = vbcast.lane.b32.xlu0 %v1440, 256
      %v1443 = vpop.permute.xlu0 %1442
      %v1444 = vlaneseq
      %v1445 = vshrl.u32 %v1444, 7
      %v1446 = vsub.s32 2, %v1445
      %v1447 = vrot.slane %v610, %v1446
      %1449 = vbcast.lane.b32.xlu0 %v1447, 256
      %v1450 = vpop.permute.xlu0 %1449
      %v1451 = vlaneseq
      %v1452 = vshrl.u32 %v1451, 7
      %v1453 = vsub.s32 3, %v1452
      %v1454 = vrot.slane %v610, %v1453
      %1456 = vbcast.lane.b32.xlu0 %v1454, 256
      %v1457 = vpop.permute.xlu0 %1456
      %v1458 = vlaneseq
      %v1459 = vshrl.u32 %v1458, 7
      %v1460 = vsub.s32 4, %v1459
      %v1461 = vrot.slane %v610, %v1460
      %1463 = vbcast.lane.b32.xlu0 %v1461, 256
      %v1464 = vpop.permute.xlu0 %1463
      %v1465 = vlaneseq
      %v1466 = vshrl.u32 %v1465, 7
      %v1467 = vsub.s32 5, %v1466
      %v1468 = vrot.slane %v610, %v1467
      %1470 = vbcast.lane.b32.xlu0 %v1468, 256
      %v1471 = vpop.permute.xlu0 %1470
      %v1472 = vlaneseq
      %v1473 = vshrl.u32 %v1472, 7
      %v1474 = vsub.s32 6, %v1473
      %v1475 = vrot.slane %v610, %v1474
      %1477 = vbcast.lane.b32.xlu0 %v1475, 256
      %v1478 = vpop.permute.xlu0 %1477
      %v1479 = vlaneseq
      %v1480 = vshrl.u32 %v1479, 7
      %v1481 = vsub.s32 7, %v1480
      %v1482 = vrot.slane %v610, %v1481
      %1484 = vbcast.lane.b32.xlu0 %v1482, 256
      %v1485 = vpop.permute.xlu0 %1484
      %v1486 = vlaneseq
      %v1487 = vshrl.u32 %v1486, 7
      %v1488 = vsub.s32 0, %v1487
      %v1489 = vrot.slane %v611, %v1488
      %1491 = vbcast.lane.b32.xlu0 %v1489, 256
      %v1492 = vpop.permute.xlu0 %1491
      %v1493 = vlaneseq
      %v1494 = vshrl.u32 %v1493, 7
      %v1495 = vsub.s32 1, %v1494
      %v1496 = vrot.slane %v611, %v1495
      %1498 = vbcast.lane.b32.xlu0 %v1496, 256
      %v1499 = vpop.permute.xlu0 %1498
      %v1500 = vlaneseq
      %v1501 = vshrl.u32 %v1500, 7
      %v1502 = vsub.s32 2, %v1501
      %v1503 = vrot.slane %v611, %v1502
      %1505 = vbcast.lane.b32.xlu0 %v1503, 256
      %v1506 = vpop.permute.xlu0 %1505
      %v1507 = vlaneseq
      %v1508 = vshrl.u32 %v1507, 7
      %v1509 = vsub.s32 3, %v1508
      %v1510 = vrot.slane %v611, %v1509
      %1512 = vbcast.lane.b32.xlu0 %v1510, 256
      %v1513 = vpop.permute.xlu0 %1512
      %v1514 = vlaneseq
      %v1515 = vshrl.u32 %v1514, 7
      %v1516 = vsub.s32 4, %v1515
      %v1517 = vrot.slane %v611, %v1516
      %1519 = vbcast.lane.b32.xlu0 %v1517, 256
      %v1520 = vpop.permute.xlu0 %1519
      %v1521 = vlaneseq
      %v1522 = vshrl.u32 %v1521, 7
      %v1523 = vsub.s32 5, %v1522
      %v1524 = vrot.slane %v611, %v1523
      %1526 = vbcast.lane.b32.xlu0 %v1524, 256
      %v1527 = vpop.permute.xlu0 %1526
      %v1528 = vlaneseq
      %v1529 = vshrl.u32 %v1528, 7
      %v1530 = vsub.s32 6, %v1529
      %v1531 = vrot.slane %v611, %v1530
      %1533 = vbcast.lane.b32.xlu0 %v1531, 256
      %v1534 = vpop.permute.xlu0 %1533
      %v1535 = vlaneseq
      %v1536 = vshrl.u32 %v1535, 7
      %v1537 = vsub.s32 7, %v1536
      %v1538 = vrot.slane %v611, %v1537
      %1540 = vbcast.lane.b32.xlu0 %v1538, 256
      %v1541 = vpop.permute.xlu0 %1540
      %v1542 = vlaneseq
      %v1543 = vshrl.u32 %v1542, 7
      %v1544 = vsub.s32 0, %v1543
      %v1545 = vrot.slane %v612, %v1544
      %1547 = vbcast.lane.b32.xlu0 %v1545, 256
      %v1548 = vpop.permute.xlu0 %1547
      %v1549 = vlaneseq
      %v1550 = vshrl.u32 %v1549, 7
      %v1551 = vsub.s32 1, %v1550
      %v1552 = vrot.slane %v612, %v1551
      %1554 = vbcast.lane.b32.xlu0 %v1552, 256
      %v1555 = vpop.permute.xlu0 %1554
      %v1556 = vlaneseq
      %v1557 = vshrl.u32 %v1556, 7
      %v1558 = vsub.s32 2, %v1557
      %v1559 = vrot.slane %v612, %v1558
      %1561 = vbcast.lane.b32.xlu0 %v1559, 256
      %v1562 = vpop.permute.xlu0 %1561
      %v1563 = vlaneseq
      %v1564 = vshrl.u32 %v1563, 7
      %v1565 = vsub.s32 3, %v1564
      %v1566 = vrot.slane %v612, %v1565
      %1568 = vbcast.lane.b32.xlu0 %v1566, 256
      %v1569 = vpop.permute.xlu0 %1568
      %v1570 = vlaneseq
      %v1571 = vshrl.u32 %v1570, 7
      %v1572 = vsub.s32 4, %v1571
      %v1573 = vrot.slane %v612, %v1572
      %1575 = vbcast.lane.b32.xlu0 %v1573, 256
      %v1576 = vpop.permute.xlu0 %1575
      %v1577 = vlaneseq
      %v1578 = vshrl.u32 %v1577, 7
      %v1579 = vsub.s32 5, %v1578
      %v1580 = vrot.slane %v612, %v1579
      %1582 = vbcast.lane.b32.xlu0 %v1580, 256
      %v1583 = vpop.permute.xlu0 %1582
      %v1584 = vlaneseq
      %v1585 = vshrl.u32 %v1584, 7
      %v1586 = vsub.s32 6, %v1585
      %v1587 = vrot.slane %v612, %v1586
      %1589 = vbcast.lane.b32.xlu0 %v1587, 256
      %v1590 = vpop.permute.xlu0 %1589
      %v1591 = vlaneseq
      %v1592 = vshrl.u32 %v1591, 7
      %v1593 = vsub.s32 7, %v1592
      %v1594 = vrot.slane %v612, %v1593
      %1596 = vbcast.lane.b32.xlu0 %v1594, 256
      %v1597 = vpop.permute.xlu0 %1596
      %v1598 = vlaneseq
      %v1599 = vshrl.u32 %v1598, 7
      %v1600 = vsub.s32 0, %v1599
      %v1601 = vrot.slane %v613, %v1600
      %1603 = vbcast.lane.b32.xlu0 %v1601, 256
      %v1604 = vpop.permute.xlu0 %1603
      %v1605 = vlaneseq
      %v1606 = vshrl.u32 %v1605, 7
      %v1607 = vsub.s32 1, %v1606
      %v1608 = vrot.slane %v613, %v1607
      %1610 = vbcast.lane.b32.xlu0 %v1608, 256
      %v1611 = vpop.permute.xlu0 %1610
      %v1612 = vlaneseq
      %v1613 = vshrl.u32 %v1612, 7
      %v1614 = vsub.s32 2, %v1613
      %v1615 = vrot.slane %v613, %v1614
      %1617 = vbcast.lane.b32.xlu0 %v1615, 256
      %v1618 = vpop.permute.xlu0 %1617
      %v1619 = vlaneseq
      %v1620 = vshrl.u32 %v1619, 7
      %v1621 = vsub.s32 3, %v1620
      %v1622 = vrot.slane %v613, %v1621
      %1624 = vbcast.lane.b32.xlu0 %v1622, 256
      %v1625 = vpop.permute.xlu0 %1624
      %v1626 = vlaneseq
      %v1627 = vshrl.u32 %v1626, 7
      %v1628 = vsub.s32 4, %v1627
      %v1629 = vrot.slane %v613, %v1628
      %1631 = vbcast.lane.b32.xlu0 %v1629, 256
      %v1632 = vpop.permute.xlu0 %1631
      %v1633 = vlaneseq
      %v1634 = vshrl.u32 %v1633, 7
      %v1635 = vsub.s32 5, %v1634
      %v1636 = vrot.slane %v613, %v1635
      %1638 = vbcast.lane.b32.xlu0 %v1636, 256
      %v1639 = vpop.permute.xlu0 %1638
      %v1640 = vlaneseq
      %v1641 = vshrl.u32 %v1640, 7
      %v1642 = vsub.s32 6, %v1641
      %v1643 = vrot.slane %v613, %v1642
      %1645 = vbcast.lane.b32.xlu0 %v1643, 256
      %v1646 = vpop.permute.xlu0 %1645
      %v1647 = vlaneseq
      %v1648 = vshrl.u32 %v1647, 7
      %v1649 = vsub.s32 7, %v1648
      %v1650 = vrot.slane %v613, %v1649
      %1652 = vbcast.lane.b32.xlu0 %v1650, 256
      %v1653 = vpop.permute.xlu0 %1652
      %v1654 = vadd.f32 %v1436, 1e-05
      %v1655 = vadd.f32 %v1443, 1e-05
      %v1656 = vadd.f32 %v1450, 1e-05
      %v1657 = vadd.f32 %v1457, 1e-05
      %v1658 = vadd.f32 %v1464, 1e-05
      %v1659 = vadd.f32 %v1471, 1e-05
      %v1660 = vadd.f32 %v1478, 1e-05
      %v1661 = vadd.f32 %v1485, 1e-05
      %v1662 = vadd.f32 %v1492, 1e-05
      %v1663 = vadd.f32 %v1499, 1e-05
      %v1664 = vadd.f32 %v1506, 1e-05
      %v1665 = vadd.f32 %v1513, 1e-05
      %v1666 = vadd.f32 %v1520, 1e-05
      %v1667 = vadd.f32 %v1527, 1e-05
      %v1668 = vadd.f32 %v1534, 1e-05
      %v1669 = vadd.f32 %v1541, 1e-05
      %v1670 = vadd.f32 %v1548, 1e-05
      %v1671 = vadd.f32 %v1555, 1e-05
      %v1672 = vadd.f32 %v1562, 1e-05
      %v1673 = vadd.f32 %v1569, 1e-05
      %v1674 = vadd.f32 %v1576, 1e-05
      %v1675 = vadd.f32 %v1583, 1e-05
      %v1676 = vadd.f32 %v1590, 1e-05
      %v1677 = vadd.f32 %v1597, 1e-05
      %v1678 = vadd.f32 %v1604, 1e-05
      %v1679 = vadd.f32 %v1611, 1e-05
      %v1680 = vadd.f32 %v1618, 1e-05
      %v1681 = vadd.f32 %v1625, 1e-05
      %v1682 = vadd.f32 %v1632, 1e-05
      %v1683 = vadd.f32 %v1639, 1e-05
      %v1684 = vadd.f32 %v1646, 1e-05
      %v1685 = vadd.f32 %v1653, 1e-05
      %v1686 = vmul.f32 %v1366, %v1654
      %v1687 = vmul.f32 %v1367, %v1654
      %v1688 = vmul.f32 %v1368, %v1655
      %v1689 = vmul.f32 %v1369, %v1655
      %v1690 = vmul.f32 %v1370, %v1656
      %v1691 = vmul.f32 %v1371, %v1656
      %v1692 = vmul.f32 %v1372, %v1657
      %v1693 = vmul.f32 %v1373, %v1657
      %v1694 = vmul.f32 %v1374, %v1658
      %v1695 = vmul.f32 %v1375, %v1658
      %v1696 = vmul.f32 %v1376, %v1659
      %v1697 = vmul.f32 %v1377, %v1659
      %v1698 = vmul.f32 %v1378, %v1660
      %v1699 = vmul.f32 %v1379, %v1660
      %v1700 = vmul.f32 %v1380, %v1661
      %v1701 = vmul.f32 %v1381, %v1661
      %v1702 = vmul.f32 %v1382, %v1662
      %v1703 = vmul.f32 %v1383, %v1662
      %v1704 = vmul.f32 %v1384, %v1663
      %v1705 = vmul.f32 %v1385, %v1663
      %v1706 = vmul.f32 %v1386, %v1664
      %v1707 = vmul.f32 %v1387, %v1664
      %v1708 = vmul.f32 %v1388, %v1665
      %v1709 = vmul.f32 %v1389, %v1665
      %v1710 = vmul.f32 %v1390, %v1666
      %v1711 = vmul.f32 %v1391, %v1666
      %v1712 = vmul.f32 %v1392, %v1667
      %v1713 = vmul.f32 %v1393, %v1667
      %v1714 = vmul.f32 %v1394, %v1668
      %v1715 = vmul.f32 %v1395, %v1668
      %v1716 = vmul.f32 %v1396, %v1669
      %v1717 = vmul.f32 %v1397, %v1669
      %v1718 = vmul.f32 %v1398, %v1670
      %v1719 = vmul.f32 %v1399, %v1670
      %v1720 = vmul.f32 %v1400, %v1671
      %v1721 = vmul.f32 %v1401, %v1671
      %v1722 = vmul.f32 %v1402, %v1672
      %v1723 = vmul.f32 %v1403, %v1672
      %v1724 = vmul.f32 %v1404, %v1673
      %v1725 = vmul.f32 %v1405, %v1673
      %v1726 = vmul.f32 %v1406, %v1674
      %v1727 = vmul.f32 %v1407, %v1674
      %v1728 = vmul.f32 %v1408, %v1675
      %v1729 = vmul.f32 %v1409, %v1675
      %v1730 = vmul.f32 %v1410, %v1676
      %v1731 = vmul.f32 %v1411, %v1676
      %v1732 = vmul.f32 %v1412, %v1677
      %v1733 = vmul.f32 %v1413, %v1677
      %v1734 = vmul.f32 %v1414, %v1678
      %v1735 = vmul.f32 %v1415, %v1678
      %v1736 = vmul.f32 %v1416, %v1679
      %v1737 = vmul.f32 %v1417, %v1679
      %v1738 = vmul.f32 %v1418, %v1680
      %v1739 = vmul.f32 %v1419, %v1680
      %v1740 = vmul.f32 %v1420, %v1681
      %v1741 = vmul.f32 %v1421, %v1681
      %v1742 = vmul.f32 %v1422, %v1682
      %v1743 = vmul.f32 %v1423, %v1682
      %v1744 = vmul.f32 %v1424, %v1683
      %v1745 = vmul.f32 %v1425, %v1683
      %v1746 = vmul.f32 %v1426, %v1684
      %v1747 = vmul.f32 %v1427, %v1684
      %v1748 = vmul.f32 %v1428, %v1685
      %v1749 = vmul.f32 %v1429, %v1685
      %v1750 = vcombine.low %v1686, %v1690
      %v1751 = vcombine.high %v1686, %v1690
      %v1753 = vunpack.c.l.s4 1983009808
      %v1754 = vunpack.c.0.s8 %v1753
      %v1755 = vlaneseq
      %v1756 = vshrl.u32 %v1755, 7
      %v1757 = vsub.s32 %v1754, %v1756
      %v1758 = vrot.slane %v1750, %v1757
      %v1760 = vunpack.c.l.s4 1983009808
      %v1761 = vunpack.c.0.s8 %v1760
      %v1762 = vlaneseq
      %v1763 = vshrl.u32 %v1762, 7
      %v1764 = vsub.s32 %v1761, %v1763
      %v1765 = vrot.slane %v1751, %v1764
      %v1766 = vcombine.low %v1688, %v1692
      %v1767 = vcombine.high %v1688, %v1692
      %v1769 = vunpack.c.l.s4 1983009808
      %v1770 = vunpack.c.0.s8 %v1769
      %v1771 = vlaneseq
      %v1772 = vshrl.u32 %v1771, 7
      %v1773 = vsub.s32 %v1770, %v1772
      %v1774 = vrot.slane %v1766, %v1773
      %v1776 = vunpack.c.l.s4 1983009808
      %v1777 = vunpack.c.0.s8 %v1776
      %v1778 = vlaneseq
      %v1779 = vshrl.u32 %v1778, 7
      %v1780 = vsub.s32 %v1777, %v1779
      %v1781 = vrot.slane %v1767, %v1780
      %v1782 = vcombine.low %v1694, %v1698
      %v1783 = vcombine.high %v1694, %v1698
      %v1785 = vunpack.c.l.s4 1983009808
      %v1786 = vunpack.c.0.s8 %v1785
      %v1787 = vlaneseq
      %v1788 = vshrl.u32 %v1787, 7
      %v1789 = vsub.s32 %v1786, %v1788
      %v1790 = vrot.slane %v1782, %v1789
      %v1792 = vunpack.c.l.s4 1983009808
      %v1793 = vunpack.c.0.s8 %v1792
      %v1794 = vlaneseq
      %v1795 = vshrl.u32 %v1794, 7
      %v1796 = vsub.s32 %v1793, %v1795
      %v1797 = vrot.slane %v1783, %v1796
      %v1798 = vcombine.low %v1696, %v1700
      %v1799 = vcombine.high %v1696, %v1700
      %v1801 = vunpack.c.l.s4 1983009808
      %v1802 = vunpack.c.0.s8 %v1801
      %v1803 = vlaneseq
      %v1804 = vshrl.u32 %v1803, 7
      %v1805 = vsub.s32 %v1802, %v1804
      %v1806 = vrot.slane %v1798, %v1805
      %v1808 = vunpack.c.l.s4 1983009808
      %v1809 = vunpack.c.0.s8 %v1808
      %v1810 = vlaneseq
      %v1811 = vshrl.u32 %v1810, 7
      %v1812 = vsub.s32 %v1809, %v1811
      %v1813 = vrot.slane %v1799, %v1812
      %v1814 = vcombine.low %v1758, %v1774
      %v1815 = vcombine.high %v1758, %v1774
      %v1817 = vunpack.c.l.s4 1934713408
      %v1818 = vunpack.c.0.s8 %v1817
      %v1819 = vlaneseq
      %v1820 = vshrl.u32 %v1819, 7
      %v1821 = vsub.s32 %v1818, %v1820
      %v1822 = vrot.slane %v1814, %v1821
      %v1824 = vunpack.c.l.s4 1934713408
      %v1825 = vunpack.c.0.s8 %v1824
      %v1826 = vlaneseq
      %v1827 = vshrl.u32 %v1826, 7
      %v1828 = vsub.s32 %v1825, %v1827
      %v1829 = vrot.slane %v1815, %v1828
      %v1830 = vcombine.low %v1765, %v1781
      %v1831 = vcombine.high %v1765, %v1781
      %v1833 = vunpack.c.l.s4 1934713408
      %v1834 = vunpack.c.0.s8 %v1833
      %v1835 = vlaneseq
      %v1836 = vshrl.u32 %v1835, 7
      %v1837 = vsub.s32 %v1834, %v1836
      %v1838 = vrot.slane %v1830, %v1837
      %v1840 = vunpack.c.l.s4 1934713408
      %v1841 = vunpack.c.0.s8 %v1840
      %v1842 = vlaneseq
      %v1843 = vshrl.u32 %v1842, 7
      %v1844 = vsub.s32 %v1841, %v1843
      %v1845 = vrot.slane %v1831, %v1844
      %v1846 = vcombine.low %v1790, %v1806
      %v1847 = vcombine.high %v1790, %v1806
      %v1849 = vunpack.c.l.s4 1934713408
      %v1850 = vunpack.c.0.s8 %v1849
      %v1851 = vlaneseq
      %v1852 = vshrl.u32 %v1851, 7
      %v1853 = vsub.s32 %v1850, %v1852
      %v1854 = vrot.slane %v1846, %v1853
      %v1856 = vunpack.c.l.s4 1934713408
      %v1857 = vunpack.c.0.s8 %v1856
      %v1858 = vlaneseq
      %v1859 = vshrl.u32 %v1858, 7
      %v1860 = vsub.s32 %v1857, %v1859
      %v1861 = vrot.slane %v1847, %v1860
      %v1862 = vcombine.low %v1797, %v1813
      %v1863 = vcombine.high %v1797, %v1813
      %v1865 = vunpack.c.l.s4 1934713408
      %v1866 = vunpack.c.0.s8 %v1865
      %v1867 = vlaneseq
      %v1868 = vshrl.u32 %v1867, 7
      %v1869 = vsub.s32 %v1866, %v1868
      %v1870 = vrot.slane %v1862, %v1869
      %v1872 = vunpack.c.l.s4 1934713408
      %v1873 = vunpack.c.0.s8 %v1872
      %v1874 = vlaneseq
      %v1875 = vshrl.u32 %v1874, 7
      %v1876 = vsub.s32 %v1873, %v1875
      %v1877 = vrot.slane %v1863, %v1876
      %v1878 = vcombine.low %v1822, %v1854
      %v1879 = vcombine.high %v1822, %v1854
      %v1880 = vcombine.low %v1829, %v1861
      %v1881 = vcombine.high %v1829, %v1861
      %v1882 = vcombine.low %v1838, %v1870
      %v1883 = vcombine.high %v1838, %v1870
      %v1884 = vcombine.low %v1845, %v1877
      %v1885 = vcombine.high %v1845, %v1877
      %v1886 = vcombine.low %v1702, %v1706
      %v1887 = vcombine.high %v1702, %v1706
      %v1889 = vunpack.c.l.s4 1983009808
      %v1890 = vunpack.c.0.s8 %v1889
      %v1891 = vlaneseq
      %v1892 = vshrl.u32 %v1891, 7
      %v1893 = vsub.s32 %v1890, %v1892
      %v1894 = vrot.slane %v1886, %v1893
      %v1896 = vunpack.c.l.s4 1983009808
      %v1897 = vunpack.c.0.s8 %v1896
      %v1898 = vlaneseq
      %v1899 = vshrl.u32 %v1898, 7
      %v1900 = vsub.s32 %v1897, %v1899
      %v1901 = vrot.slane %v1887, %v1900
      %v1902 = vcombine.low %v1704, %v1708
      %v1903 = vcombine.high %v1704, %v1708
      %v1905 = vunpack.c.l.s4 1983009808
      %v1906 = vunpack.c.0.s8 %v1905
      %v1907 = vlaneseq
      %v1908 = vshrl.u32 %v1907, 7
      %v1909 = vsub.s32 %v1906, %v1908
      %v1910 = vrot.slane %v1902, %v1909
      %v1912 = vunpack.c.l.s4 1983009808
      %v1913 = vunpack.c.0.s8 %v1912
      %v1914 = vlaneseq
      %v1915 = vshrl.u32 %v1914, 7
      %v1916 = vsub.s32 %v1913, %v1915
      %v1917 = vrot.slane %v1903, %v1916
      %v1918 = vcombine.low %v1710, %v1714
      %v1919 = vcombine.high %v1710, %v1714
      %v1921 = vunpack.c.l.s4 1983009808
      %v1922 = vunpack.c.0.s8 %v1921
      %v1923 = vlaneseq
      %v1924 = vshrl.u32 %v1923, 7
      %v1925 = vsub.s32 %v1922, %v1924
      %v1926 = vrot.slane %v1918, %v1925
      %v1928 = vunpack.c.l.s4 1983009808
      %v1929 = vunpack.c.0.s8 %v1928
      %v1930 = vlaneseq
      %v1931 = vshrl.u32 %v1930, 7
      %v1932 = vsub.s32 %v1929, %v1931
      %v1933 = vrot.slane %v1919, %v1932
      %v1934 = vcombine.low %v1712, %v1716
      %v1935 = vcombine.high %v1712, %v1716
      %v1937 = vunpack.c.l.s4 1983009808
      %v1938 = vunpack.c.0.s8 %v1937
      %v1939 = vlaneseq
      %v1940 = vshrl.u32 %v1939, 7
      %v1941 = vsub.s32 %v1938, %v1940
      %v1942 = vrot.slane %v1934, %v1941
      %v1944 = vunpack.c.l.s4 1983009808
      %v1945 = vunpack.c.0.s8 %v1944
      %v1946 = vlaneseq
      %v1947 = vshrl.u32 %v1946, 7
      %v1948 = vsub.s32 %v1945, %v1947
      %v1949 = vrot.slane %v1935, %v1948
      %v1950 = vcombine.low %v1894, %v1910
      %v1951 = vcombine.high %v1894, %v1910
      %v1953 = vunpack.c.l.s4 1934713408
      %v1954 = vunpack.c.0.s8 %v1953
      %v1955 = vlaneseq
      %v1956 = vshrl.u32 %v1955, 7
      %v1957 = vsub.s32 %v1954, %v1956
      %v1958 = vrot.slane %v1950, %v1957
      %v1960 = vunpack.c.l.s4 1934713408
      %v1961 = vunpack.c.0.s8 %v1960
      %v1962 = vlaneseq
      %v1963 = vshrl.u32 %v1962, 7
      %v1964 = vsub.s32 %v1961, %v1963
      %v1965 = vrot.slane %v1951, %v1964
      %v1966 = vcombine.low %v1901, %v1917
      %v1967 = vcombine.high %v1901, %v1917
      %v1969 = vunpack.c.l.s4 1934713408
      %v1970 = vunpack.c.0.s8 %v1969
      %v1971 = vlaneseq
      %v1972 = vshrl.u32 %v1971, 7
      %v1973 = vsub.s32 %v1970, %v1972
      %v1974 = vrot.slane %v1966, %v1973
      %v1976 = vunpack.c.l.s4 1934713408
      %v1977 = vunpack.c.0.s8 %v1976
      %v1978 = vlaneseq
      %v1979 = vshrl.u32 %v1978, 7
      %v1980 = vsub.s32 %v1977, %v1979
      %v1981 = vrot.slane %v1967, %v1980
      %v1982 = vcombine.low %v1926, %v1942
      %v1983 = vcombine.high %v1926, %v1942
      %v1985 = vunpack.c.l.s4 1934713408
      %v1986 = vunpack.c.0.s8 %v1985
      %v1987 = vlaneseq
      %v1988 = vshrl.u32 %v1987, 7
      %v1989 = vsub.s32 %v1986, %v1988
      %v1990 = vrot.slane %v1982, %v1989
      %v1992 = vunpack.c.l.s4 1934713408
      %v1993 = vunpack.c.0.s8 %v1992
      %v1994 = vlaneseq
      %v1995 = vshrl.u32 %v1994, 7
      %v1996 = vsub.s32 %v1993, %v1995
      %v1997 = vrot.slane %v1983, %v1996
      %v1998 = vcombine.low %v1933, %v1949
      %v1999 = vcombine.high %v1933, %v1949
      %v2001 = vunpack.c.l.s4 1934713408
      %v2002 = vunpack.c.0.s8 %v2001
      %v2003 = vlaneseq
      %v2004 = vshrl.u32 %v2003, 7
      %v2005 = vsub.s32 %v2002, %v2004
      %v2006 = vrot.slane %v1998, %v2005
      %v2008 = vunpack.c.l.s4 1934713408
      %v2009 = vunpack.c.0.s8 %v2008
      %v2010 = vlaneseq
      %v2011 = vshrl.u32 %v2010, 7
      %v2012 = vsub.s32 %v2009, %v2011
      %v2013 = vrot.slane %v1999, %v2012
      %v2014 = vcombine.low %v1958, %v1990
      %v2015 = vcombine.high %v1958, %v1990
      %v2016 = vcombine.low %v1965, %v1997
      %v2017 = vcombine.high %v1965, %v1997
      %v2018 = vcombine.low %v1974, %v2006
      %v2019 = vcombine.high %v1974, %v2006
      %v2020 = vcombine.low %v1981, %v2013
      %v2021 = vcombine.high %v1981, %v2013
      %v2022 = vcombine.low %v1718, %v1722
      %v2023 = vcombine.high %v1718, %v1722
      %v2025 = vunpack.c.l.s4 1983009808
      %v2026 = vunpack.c.0.s8 %v2025
      %v2027 = vlaneseq
      %v2028 = vshrl.u32 %v2027, 7
      %v2029 = vsub.s32 %v2026, %v2028
      %v2030 = vrot.slane %v2022, %v2029
      %v2032 = vunpack.c.l.s4 1983009808
      %v2033 = vunpack.c.0.s8 %v2032
      %v2034 = vlaneseq
      %v2035 = vshrl.u32 %v2034, 7
      %v2036 = vsub.s32 %v2033, %v2035
      %v2037 = vrot.slane %v2023, %v2036
      %v2038 = vcombine.low %v1720, %v1724
      %v2039 = vcombine.high %v1720, %v1724
      %v2041 = vunpack.c.l.s4 1983009808
      %v2042 = vunpack.c.0.s8 %v2041
      %v2043 = vlaneseq
      %v2044 = vshrl.u32 %v2043, 7
      %v2045 = vsub.s32 %v2042, %v2044
      %v2046 = vrot.slane %v2038, %v2045
      %v2048 = vunpack.c.l.s4 1983009808
      %v2049 = vunpack.c.0.s8 %v2048
      %v2050 = vlaneseq
      %v2051 = vshrl.u32 %v2050, 7
      %v2052 = vsub.s32 %v2049, %v2051
      %v2053 = vrot.slane %v2039, %v2052
      %v2054 = vcombine.low %v1726, %v1730
      %v2055 = vcombine.high %v1726, %v1730
      %v2057 = vunpack.c.l.s4 1983009808
      %v2058 = vunpack.c.0.s8 %v2057
      %v2059 = vlaneseq
      %v2060 = vshrl.u32 %v2059, 7
      %v2061 = vsub.s32 %v2058, %v2060
      %v2062 = vrot.slane %v2054, %v2061
      %v2064 = vunpack.c.l.s4 1983009808
      %v2065 = vunpack.c.0.s8 %v2064
      %v2066 = vlaneseq
      %v2067 = vshrl.u32 %v2066, 7
      %v2068 = vsub.s32 %v2065, %v2067
      %v2069 = vrot.slane %v2055, %v2068
      %v2070 = vcombine.low %v1728, %v1732
      %v2071 = vcombine.high %v1728, %v1732
      %v2073 = vunpack.c.l.s4 1983009808
      %v2074 = vunpack.c.0.s8 %v2073
      %v2075 = vlaneseq
      %v2076 = vshrl.u32 %v2075, 7
      %v2077 = vsub.s32 %v2074, %v2076
      %v2078 = vrot.slane %v2070, %v2077
      %v2080 = vunpack.c.l.s4 1983009808
      %v2081 = vunpack.c.0.s8 %v2080
      %v2082 = vlaneseq
      %v2083 = vshrl.u32 %v2082, 7
      %v2084 = vsub.s32 %v2081, %v2083
      %v2085 = vrot.slane %v2071, %v2084
      %v2086 = vcombine.low %v2030, %v2046
      %v2087 = vcombine.high %v2030, %v2046
      %v2089 = vunpack.c.l.s4 1934713408
      %v2090 = vunpack.c.0.s8 %v2089
      %v2091 = vlaneseq
      %v2092 = vshrl.u32 %v2091, 7
      %v2093 = vsub.s32 %v2090, %v2092
      %v2094 = vrot.slane %v2086, %v2093
      %v2096 = vunpack.c.l.s4 1934713408
      %v2097 = vunpack.c.0.s8 %v2096
      %v2098 = vlaneseq
      %v2099 = vshrl.u32 %v2098, 7
      %v2100 = vsub.s32 %v2097, %v2099
      %v2101 = vrot.slane %v2087, %v2100
      %v2102 = vcombine.low %v2037, %v2053
      %v2103 = vcombine.high %v2037, %v2053
      %v2105 = vunpack.c.l.s4 1934713408
      %v2106 = vunpack.c.0.s8 %v2105
      %v2107 = vlaneseq
      %v2108 = vshrl.u32 %v2107, 7
      %v2109 = vsub.s32 %v2106, %v2108
      %v2110 = vrot.slane %v2102, %v2109
      %v2112 = vunpack.c.l.s4 1934713408
      %v2113 = vunpack.c.0.s8 %v2112
      %v2114 = vlaneseq
      %v2115 = vshrl.u32 %v2114, 7
      %v2116 = vsub.s32 %v2113, %v2115
      %v2117 = vrot.slane %v2103, %v2116
      %v2118 = vcombine.low %v2062, %v2078
      %v2119 = vcombine.high %v2062, %v2078
      %v2121 = vunpack.c.l.s4 1934713408
      %v2122 = vunpack.c.0.s8 %v2121
      %v2123 = vlaneseq
      %v2124 = vshrl.u32 %v2123, 7
      %v2125 = vsub.s32 %v2122, %v2124
      %v2126 = vrot.slane %v2118, %v2125
      %v2128 = vunpack.c.l.s4 1934713408
      %v2129 = vunpack.c.0.s8 %v2128
      %v2130 = vlaneseq
      %v2131 = vshrl.u32 %v2130, 7
      %v2132 = vsub.s32 %v2129, %v2131
      %v2133 = vrot.slane %v2119, %v2132
      %v2134 = vcombine.low %v2069, %v2085
      %v2135 = vcombine.high %v2069, %v2085
      %v2137 = vunpack.c.l.s4 1934713408
      %v2138 = vunpack.c.0.s8 %v2137
      %v2139 = vlaneseq
      %v2140 = vshrl.u32 %v2139, 7
      %v2141 = vsub.s32 %v2138, %v2140
      %v2142 = vrot.slane %v2134, %v2141
      %v2144 = vunpack.c.l.s4 1934713408
      %v2145 = vunpack.c.0.s8 %v2144
      %v2146 = vlaneseq
      %v2147 = vshrl.u32 %v2146, 7
      %v2148 = vsub.s32 %v2145, %v2147
      %v2149 = vrot.slane %v2135, %v2148
      %v2150 = vcombine.low %v2094, %v2126
      %v2151 = vcombine.high %v2094, %v2126
      %v2152 = vcombine.low %v2101, %v2133
      %v2153 = vcombine.high %v2101, %v2133
      %v2154 = vcombine.low %v2110, %v2142
      %v2155 = vcombine.high %v2110, %v2142
      %v2156 = vcombine.low %v2117, %v2149
      %v2157 = vcombine.high %v2117, %v2149
      %v2158 = vcombine.low %v1734, %v1738
      %v2159 = vcombine.high %v1734, %v1738
      %v2161 = vunpack.c.l.s4 1983009808
      %v2162 = vunpack.c.0.s8 %v2161
      %v2163 = vlaneseq
      %v2164 = vshrl.u32 %v2163, 7
      %v2165 = vsub.s32 %v2162, %v2164
      %v2166 = vrot.slane %v2158, %v2165
      %v2168 = vunpack.c.l.s4 1983009808
      %v2169 = vunpack.c.0.s8 %v2168
      %v2170 = vlaneseq
      %v2171 = vshrl.u32 %v2170, 7
      %v2172 = vsub.s32 %v2169, %v2171
      %v2173 = vrot.slane %v2159, %v2172
      %v2174 = vcombine.low %v1736, %v1740
      %v2175 = vcombine.high %v1736, %v1740
      %v2177 = vunpack.c.l.s4 1983009808
      %v2178 = vunpack.c.0.s8 %v2177
      %v2179 = vlaneseq
      %v2180 = vshrl.u32 %v2179, 7
      %v2181 = vsub.s32 %v2178, %v2180
      %v2182 = vrot.slane %v2174, %v2181
      %v2184 = vunpack.c.l.s4 1983009808
      %v2185 = vunpack.c.0.s8 %v2184
      %v2186 = vlaneseq
      %v2187 = vshrl.u32 %v2186, 7
      %v2188 = vsub.s32 %v2185, %v2187
      %v2189 = vrot.slane %v2175, %v2188
      %v2190 = vcombine.low %v1742, %v1746
      %v2191 = vcombine.high %v1742, %v1746
      %v2193 = vunpack.c.l.s4 1983009808
      %v2194 = vunpack.c.0.s8 %v2193
      %v2195 = vlaneseq
      %v2196 = vshrl.u32 %v2195, 7
      %v2197 = vsub.s32 %v2194, %v2196
      %v2198 = vrot.slane %v2190, %v2197
      %v2200 = vunpack.c.l.s4 1983009808
      %v2201 = vunpack.c.0.s8 %v2200
      %v2202 = vlaneseq
      %v2203 = vshrl.u32 %v2202, 7
      %v2204 = vsub.s32 %v2201, %v2203
      %v2205 = vrot.slane %v2191, %v2204
      %v2206 = vcombine.low %v1744, %v1748
      %v2207 = vcombine.high %v1744, %v1748
      %v2209 = vunpack.c.l.s4 1983009808
      %v2210 = vunpack.c.0.s8 %v2209
      %v2211 = vlaneseq
      %v2212 = vshrl.u32 %v2211, 7
      %v2213 = vsub.s32 %v2210, %v2212
      %v2214 = vrot.slane %v2206, %v2213
      %v2216 = vunpack.c.l.s4 1983009808
      %v2217 = vunpack.c.0.s8 %v2216
      %v2218 = vlaneseq
      %v2219 = vshrl.u32 %v2218, 7
      %v2220 = vsub.s32 %v2217, %v2219
      %v2221 = vrot.slane %v2207, %v2220
      %v2222 = vcombine.low %v2166, %v2182
      %v2223 = vcombine.high %v2166, %v2182
      %v2225 = vunpack.c.l.s4 1934713408
      %v2226 = vunpack.c.0.s8 %v2225
      %v2227 = vlaneseq
      %v2228 = vshrl.u32 %v2227, 7
      %v2229 = vsub.s32 %v2226, %v2228
      %v2230 = vrot.slane %v2222, %v2229
      %v2232 = vunpack.c.l.s4 1934713408
      %v2233 = vunpack.c.0.s8 %v2232
      %v2234 = vlaneseq
      %v2235 = vshrl.u32 %v2234, 7
      %v2236 = vsub.s32 %v2233, %v2235
      %v2237 = vrot.slane %v2223, %v2236
      %v2238 = vcombine.low %v2173, %v2189
      %v2239 = vcombine.high %v2173, %v2189
      %v2241 = vunpack.c.l.s4 1934713408
      %v2242 = vunpack.c.0.s8 %v2241
      %v2243 = vlaneseq
      %v2244 = vshrl.u32 %v2243, 7
      %v2245 = vsub.s32 %v2242, %v2244
      %v2246 = vrot.slane %v2238, %v2245
      %v2248 = vunpack.c.l.s4 1934713408
      %v2249 = vunpack.c.0.s8 %v2248
      %v2250 = vlaneseq
      %v2251 = vshrl.u32 %v2250, 7
      %v2252 = vsub.s32 %v2249, %v2251
      %v2253 = vrot.slane %v2239, %v2252
      %v2254 = vcombine.low %v2198, %v2214
      %v2255 = vcombine.high %v2198, %v2214
      %v2257 = vunpack.c.l.s4 1934713408
      %v2258 = vunpack.c.0.s8 %v2257
      %v2259 = vlaneseq
      %v2260 = vshrl.u32 %v2259, 7
      %v2261 = vsub.s32 %v2258, %v2260
      %v2262 = vrot.slane %v2254, %v2261
      %v2264 = vunpack.c.l.s4 1934713408
      %v2265 = vunpack.c.0.s8 %v2264
      %v2266 = vlaneseq
      %v2267 = vshrl.u32 %v2266, 7
      %v2268 = vsub.s32 %v2265, %v2267
      %v2269 = vrot.slane %v2255, %v2268
      %v2270 = vcombine.low %v2205, %v2221
      %v2271 = vcombine.high %v2205, %v2221
      %v2273 = vunpack.c.l.s4 1934713408
      %v2274 = vunpack.c.0.s8 %v2273
      %v2275 = vlaneseq
      %v2276 = vshrl.u32 %v2275, 7
      %v2277 = vsub.s32 %v2274, %v2276
      %v2278 = vrot.slane %v2270, %v2277
      %v2280 = vunpack.c.l.s4 1934713408
      %v2281 = vunpack.c.0.s8 %v2280
      %v2282 = vlaneseq
      %v2283 = vshrl.u32 %v2282, 7
      %v2284 = vsub.s32 %v2281, %v2283
      %v2285 = vrot.slane %v2271, %v2284
      %v2286 = vcombine.low %v2230, %v2262
      %v2287 = vcombine.high %v2230, %v2262
      %v2288 = vcombine.low %v2237, %v2269
      %v2289 = vcombine.high %v2237, %v2269
      %v2290 = vcombine.low %v2246, %v2278
      %v2291 = vcombine.high %v2246, %v2278
      %v2292 = vcombine.low %v2253, %v2285
      %v2293 = vcombine.high %v2253, %v2285
      %v2294 = vcombine.low %v1687, %v1691
      %v2295 = vcombine.high %v1687, %v1691
      %v2297 = vunpack.c.l.s4 1983009808
      %v2298 = vunpack.c.0.s8 %v2297
      %v2299 = vlaneseq
      %v2300 = vshrl.u32 %v2299, 7
      %v2301 = vsub.s32 %v2298, %v2300
      %v2302 = vrot.slane %v2294, %v2301
      %v2304 = vunpack.c.l.s4 1983009808
      %v2305 = vunpack.c.0.s8 %v2304
      %v2306 = vlaneseq
      %v2307 = vshrl.u32 %v2306, 7
      %v2308 = vsub.s32 %v2305, %v2307
      %v2309 = vrot.slane %v2295, %v2308
      %v2310 = vcombine.low %v1689, %v1693
      %v2311 = vcombine.high %v1689, %v1693
      %v2313 = vunpack.c.l.s4 1983009808
      %v2314 = vunpack.c.0.s8 %v2313
      %v2315 = vlaneseq
      %v2316 = vshrl.u32 %v2315, 7
      %v2317 = vsub.s32 %v2314, %v2316
      %v2318 = vrot.slane %v2310, %v2317
      %v2320 = vunpack.c.l.s4 1983009808
      %v2321 = vunpack.c.0.s8 %v2320
      %v2322 = vlaneseq
      %v2323 = vshrl.u32 %v2322, 7
      %v2324 = vsub.s32 %v2321, %v2323
      %v2325 = vrot.slane %v2311, %v2324
      %v2326 = vcombine.low %v1695, %v1699
      %v2327 = vcombine.high %v1695, %v1699
      %v2329 = vunpack.c.l.s4 1983009808
      %v2330 = vunpack.c.0.s8 %v2329
      %v2331 = vlaneseq
      %v2332 = vshrl.u32 %v2331, 7
      %v2333 = vsub.s32 %v2330, %v2332
      %v2334 = vrot.slane %v2326, %v2333
      %v2336 = vunpack.c.l.s4 1983009808
      %v2337 = vunpack.c.0.s8 %v2336
      %v2338 = vlaneseq
      %v2339 = vshrl.u32 %v2338, 7
      %v2340 = vsub.s32 %v2337, %v2339
      %v2341 = vrot.slane %v2327, %v2340
      %v2342 = vcombine.low %v1697, %v1701
      %v2343 = vcombine.high %v1697, %v1701
      %v2345 = vunpack.c.l.s4 1983009808
      %v2346 = vunpack.c.0.s8 %v2345
      %v2347 = vlaneseq
      %v2348 = vshrl.u32 %v2347, 7
      %v2349 = vsub.s32 %v2346, %v2348
      %v2350 = vrot.slane %v2342, %v2349
      %v2352 = vunpack.c.l.s4 1983009808
      %v2353 = vunpack.c.0.s8 %v2352
      %v2354 = vlaneseq
      %v2355 = vshrl.u32 %v2354, 7
      %v2356 = vsub.s32 %v2353, %v2355
      %v2357 = vrot.slane %v2343, %v2356
      %v2358 = vcombine.low %v2302, %v2318
      %v2359 = vcombine.high %v2302, %v2318
      %v2361 = vunpack.c.l.s4 1934713408
      %v2362 = vunpack.c.0.s8 %v2361
      %v2363 = vlaneseq
      %v2364 = vshrl.u32 %v2363, 7
      %v2365 = vsub.s32 %v2362, %v2364
      %v2366 = vrot.slane %v2358, %v2365
      %v2368 = vunpack.c.l.s4 1934713408
      %v2369 = vunpack.c.0.s8 %v2368
      %v2370 = vlaneseq
      %v2371 = vshrl.u32 %v2370, 7
      %v2372 = vsub.s32 %v2369, %v2371
      %v2373 = vrot.slane %v2359, %v2372
      %v2374 = vcombine.low %v2309, %v2325
      %v2375 = vcombine.high %v2309, %v2325
      %v2377 = vunpack.c.l.s4 1934713408
      %v2378 = vunpack.c.0.s8 %v2377
      %v2379 = vlaneseq
      %v2380 = vshrl.u32 %v2379, 7
      %v2381 = vsub.s32 %v2378, %v2380
      %v2382 = vrot.slane %v2374, %v2381
      %v2384 = vunpack.c.l.s4 1934713408
      %v2385 = vunpack.c.0.s8 %v2384
      %v2386 = vlaneseq
      %v2387 = vshrl.u32 %v2386, 7
      %v2388 = vsub.s32 %v2385, %v2387
      %v2389 = vrot.slane %v2375, %v2388
      %v2390 = vcombine.low %v2334, %v2350
      %v2391 = vcombine.high %v2334, %v2350
      %v2393 = vunpack.c.l.s4 1934713408
      %v2394 = vunpack.c.0.s8 %v2393
      %v2395 = vlaneseq
      %v2396 = vshrl.u32 %v2395, 7
      %v2397 = vsub.s32 %v2394, %v2396
      %v2398 = vrot.slane %v2390, %v2397
      %v2400 = vunpack.c.l.s4 1934713408
      %v2401 = vunpack.c.0.s8 %v2400
      %v2402 = vlaneseq
      %v2403 = vshrl.u32 %v2402, 7
      %v2404 = vsub.s32 %v2401, %v2403
      %v2405 = vrot.slane %v2391, %v2404
      %v2406 = vcombine.low %v2341, %v2357
      %v2407 = vcombine.high %v2341, %v2357
      %v2409 = vunpack.c.l.s4 1934713408
      %v2410 = vunpack.c.0.s8 %v2409
      %v2411 = vlaneseq
      %v2412 = vshrl.u32 %v2411, 7
      %v2413 = vsub.s32 %v2410, %v2412
      %v2414 = vrot.slane %v2406, %v2413
      %v2416 = vunpack.c.l.s4 1934713408
      %v2417 = vunpack.c.0.s8 %v2416
      %v2418 = vlaneseq
      %v2419 = vshrl.u32 %v2418, 7
      %v2420 = vsub.s32 %v2417, %v2419
      %v2421 = vrot.slane %v2407, %v2420
      %v2422 = vcombine.low %v2366, %v2398
      %v2423 = vcombine.high %v2366, %v2398
      %v2424 = vcombine.low %v2373, %v2405
      %v2425 = vcombine.high %v2373, %v2405
      %v2426 = vcombine.low %v2382, %v2414
      %v2427 = vcombine.high %v2382, %v2414
      %v2428 = vcombine.low %v2389, %v2421
      %v2429 = vcombine.high %v2389, %v2421
      %v2430 = vcombine.low %v1703, %v1707
      %v2431 = vcombine.high %v1703, %v1707
      %v2433 = vunpack.c.l.s4 1983009808
      %v2434 = vunpack.c.0.s8 %v2433
      %v2435 = vlaneseq
      %v2436 = vshrl.u32 %v2435, 7
      %v2437 = vsub.s32 %v2434, %v2436
      %v2438 = vrot.slane %v2430, %v2437
      %v2440 = vunpack.c.l.s4 1983009808
      %v2441 = vunpack.c.0.s8 %v2440
      %v2442 = vlaneseq
      %v2443 = vshrl.u32 %v2442, 7
      %v2444 = vsub.s32 %v2441, %v2443
      %v2445 = vrot.slane %v2431, %v2444
      %v2446 = vcombine.low %v1705, %v1709
      %v2447 = vcombine.high %v1705, %v1709
      %v2449 = vunpack.c.l.s4 1983009808
      %v2450 = vunpack.c.0.s8 %v2449
      %v2451 = vlaneseq
      %v2452 = vshrl.u32 %v2451, 7
      %v2453 = vsub.s32 %v2450, %v2452
      %v2454 = vrot.slane %v2446, %v2453
      %v2456 = vunpack.c.l.s4 1983009808
      %v2457 = vunpack.c.0.s8 %v2456
      %v2458 = vlaneseq
      %v2459 = vshrl.u32 %v2458, 7
      %v2460 = vsub.s32 %v2457, %v2459
      %v2461 = vrot.slane %v2447, %v2460
      %v2462 = vcombine.low %v1711, %v1715
      %v2463 = vcombine.high %v1711, %v1715
      %v2465 = vunpack.c.l.s4 1983009808
      %v2466 = vunpack.c.0.s8 %v2465
      %v2467 = vlaneseq
      %v2468 = vshrl.u32 %v2467, 7
      %v2469 = vsub.s32 %v2466, %v2468
      %v2470 = vrot.slane %v2462, %v2469
      %v2472 = vunpack.c.l.s4 1983009808
      %v2473 = vunpack.c.0.s8 %v2472
      %v2474 = vlaneseq
      %v2475 = vshrl.u32 %v2474, 7
      %v2476 = vsub.s32 %v2473, %v2475
      %v2477 = vrot.slane %v2463, %v2476
      %v2478 = vcombine.low %v1713, %v1717
      %v2479 = vcombine.high %v1713, %v1717
      %v2481 = vunpack.c.l.s4 1983009808
      %v2482 = vunpack.c.0.s8 %v2481
      %v2483 = vlaneseq
      %v2484 = vshrl.u32 %v2483, 7
      %v2485 = vsub.s32 %v2482, %v2484
      %v2486 = vrot.slane %v2478, %v2485
      %v2488 = vunpack.c.l.s4 1983009808
      %v2489 = vunpack.c.0.s8 %v2488
      %v2490 = vlaneseq
      %v2491 = vshrl.u32 %v2490, 7
      %v2492 = vsub.s32 %v2489, %v2491
      %v2493 = vrot.slane %v2479, %v2492
      %v2494 = vcombine.low %v2438, %v2454
      %v2495 = vcombine.high %v2438, %v2454
      %v2497 = vunpack.c.l.s4 1934713408
      %v2498 = vunpack.c.0.s8 %v2497
      %v2499 = vlaneseq
      %v2500 = vshrl.u32 %v2499, 7
      %v2501 = vsub.s32 %v2498, %v2500
      %v2502 = vrot.slane %v2494, %v2501
      %v2504 = vunpack.c.l.s4 1934713408
      %v2505 = vunpack.c.0.s8 %v2504
      %v2506 = vlaneseq
      %v2507 = vshrl.u32 %v2506, 7
      %v2508 = vsub.s32 %v2505, %v2507
      %v2509 = vrot.slane %v2495, %v2508
      %v2510 = vcombine.low %v2445, %v2461
      %v2511 = vcombine.high %v2445, %v2461
      %v2513 = vunpack.c.l.s4 1934713408
      %v2514 = vunpack.c.0.s8 %v2513
      %v2515 = vlaneseq
      %v2516 = vshrl.u32 %v2515, 7
      %v2517 = vsub.s32 %v2514, %v2516
      %v2518 = vrot.slane %v2510, %v2517
      %v2520 = vunpack.c.l.s4 1934713408
      %v2521 = vunpack.c.0.s8 %v2520
      %v2522 = vlaneseq
      %v2523 = vshrl.u32 %v2522, 7
      %v2524 = vsub.s32 %v2521, %v2523
      %v2525 = vrot.slane %v2511, %v2524
      %v2526 = vcombine.low %v2470, %v2486
      %v2527 = vcombine.high %v2470, %v2486
      %v2529 = vunpack.c.l.s4 1934713408
      %v2530 = vunpack.c.0.s8 %v2529
      %v2531 = vlaneseq
      %v2532 = vshrl.u32 %v2531, 7
      %v2533 = vsub.s32 %v2530, %v2532
      %v2534 = vrot.slane %v2526, %v2533
      %v2536 = vunpack.c.l.s4 1934713408
      %v2537 = vunpack.c.0.s8 %v2536
      %v2538 = vlaneseq
      %v2539 = vshrl.u32 %v2538, 7
      %v2540 = vsub.s32 %v2537, %v2539
      %v2541 = vrot.slane %v2527, %v2540
      %v2542 = vcombine.low %v2477, %v2493
      %v2543 = vcombine.high %v2477, %v2493
      %v2545 = vunpack.c.l.s4 1934713408
      %v2546 = vunpack.c.0.s8 %v2545
      %v2547 = vlaneseq
      %v2548 = vshrl.u32 %v2547, 7
      %v2549 = vsub.s32 %v2546, %v2548
      %v2550 = vrot.slane %v2542, %v2549
      %v2552 = vunpack.c.l.s4 1934713408
      %v2553 = vunpack.c.0.s8 %v2552
      %v2554 = vlaneseq
      %v2555 = vshrl.u32 %v2554, 7
      %v2556 = vsub.s32 %v2553, %v2555
      %v2557 = vrot.slane %v2543, %v2556
      %v2558 = vcombine.low %v2502, %v2534
      %v2559 = vcombine.high %v2502, %v2534
      %v2560 = vcombine.low %v2509, %v2541
      %v2561 = vcombine.high %v2509, %v2541
      %v2562 = vcombine.low %v2518, %v2550
      %v2563 = vcombine.high %v2518, %v2550
      %v2564 = vcombine.low %v2525, %v2557
      %v2565 = vcombine.high %v2525, %v2557
      %v2566 = vcombine.low %v1719, %v1723
      %v2567 = vcombine.high %v1719, %v1723
      %v2569 = vunpack.c.l.s4 1983009808
      %v2570 = vunpack.c.0.s8 %v2569
      %v2571 = vlaneseq
      %v2572 = vshrl.u32 %v2571, 7
      %v2573 = vsub.s32 %v2570, %v2572
      %v2574 = vrot.slane %v2566, %v2573
      %v2576 = vunpack.c.l.s4 1983009808
      %v2577 = vunpack.c.0.s8 %v2576
      %v2578 = vlaneseq
      %v2579 = vshrl.u32 %v2578, 7
      %v2580 = vsub.s32 %v2577, %v2579
      %v2581 = vrot.slane %v2567, %v2580
      %v2582 = vcombine.low %v1721, %v1725
      %v2583 = vcombine.high %v1721, %v1725
      %v2585 = vunpack.c.l.s4 1983009808
      %v2586 = vunpack.c.0.s8 %v2585
      %v2587 = vlaneseq
      %v2588 = vshrl.u32 %v2587, 7
      %v2589 = vsub.s32 %v2586, %v2588
      %v2590 = vrot.slane %v2582, %v2589
      %v2592 = vunpack.c.l.s4 1983009808
      %v2593 = vunpack.c.0.s8 %v2592
      %v2594 = vlaneseq
      %v2595 = vshrl.u32 %v2594, 7
      %v2596 = vsub.s32 %v2593, %v2595
      %v2597 = vrot.slane %v2583, %v2596
      %v2598 = vcombine.low %v1727, %v1731
      %v2599 = vcombine.high %v1727, %v1731
      %v2601 = vunpack.c.l.s4 1983009808
      %v2602 = vunpack.c.0.s8 %v2601
      %v2603 = vlaneseq
      %v2604 = vshrl.u32 %v2603, 7
      %v2605 = vsub.s32 %v2602, %v2604
      %v2606 = vrot.slane %v2598, %v2605
      %v2608 = vunpack.c.l.s4 1983009808
      %v2609 = vunpack.c.0.s8 %v2608
      %v2610 = vlaneseq
      %v2611 = vshrl.u32 %v2610, 7
      %v2612 = vsub.s32 %v2609, %v2611
      %v2613 = vrot.slane %v2599, %v2612
      %v2614 = vcombine.low %v1729, %v1733
      %v2615 = vcombine.high %v1729, %v1733
      %v2617 = vunpack.c.l.s4 1983009808
      %v2618 = vunpack.c.0.s8 %v2617
      %v2619 = vlaneseq
      %v2620 = vshrl.u32 %v2619, 7
      %v2621 = vsub.s32 %v2618, %v2620
      %v2622 = vrot.slane %v2614, %v2621
      %v2624 = vunpack.c.l.s4 1983009808
      %v2625 = vunpack.c.0.s8 %v2624
      %v2626 = vlaneseq
      %v2627 = vshrl.u32 %v2626, 7
      %v2628 = vsub.s32 %v2625, %v2627
      %v2629 = vrot.slane %v2615, %v2628
      %v2630 = vcombine.low %v2574, %v2590
      %v2631 = vcombine.high %v2574, %v2590
      %v2633 = vunpack.c.l.s4 1934713408
      %v2634 = vunpack.c.0.s8 %v2633
      %v2635 = vlaneseq
      %v2636 = vshrl.u32 %v2635, 7
      %v2637 = vsub.s32 %v2634, %v2636
      %v2638 = vrot.slane %v2630, %v2637
      %v2640 = vunpack.c.l.s4 1934713408
      %v2641 = vunpack.c.0.s8 %v2640
      %v2642 = vlaneseq
      %v2643 = vshrl.u32 %v2642, 7
      %v2644 = vsub.s32 %v2641, %v2643
      %v2645 = vrot.slane %v2631, %v2644
      %v2646 = vcombine.low %v2581, %v2597
      %v2647 = vcombine.high %v2581, %v2597
      %v2649 = vunpack.c.l.s4 1934713408
      %v2650 = vunpack.c.0.s8 %v2649
      %v2651 = vlaneseq
      %v2652 = vshrl.u32 %v2651, 7
      %v2653 = vsub.s32 %v2650, %v2652
      %v2654 = vrot.slane %v2646, %v2653
      %v2656 = vunpack.c.l.s4 1934713408
      %v2657 = vunpack.c.0.s8 %v2656
      %v2658 = vlaneseq
      %v2659 = vshrl.u32 %v2658, 7
      %v2660 = vsub.s32 %v2657, %v2659
      %v2661 = vrot.slane %v2647, %v2660
      %v2662 = vcombine.low %v2606, %v2622
      %v2663 = vcombine.high %v2606, %v2622
      %v2665 = vunpack.c.l.s4 1934713408
      %v2666 = vunpack.c.0.s8 %v2665
      %v2667 = vlaneseq
      %v2668 = vshrl.u32 %v2667, 7
      %v2669 = vsub.s32 %v2666, %v2668
      %v2670 = vrot.slane %v2662, %v2669
      %v2672 = vunpack.c.l.s4 1934713408
      %v2673 = vunpack.c.0.s8 %v2672
      %v2674 = vlaneseq
      %v2675 = vshrl.u32 %v2674, 7
      %v2676 = vsub.s32 %v2673, %v2675
      %v2677 = vrot.slane %v2663, %v2676
      %v2678 = vcombine.low %v2613, %v2629
      %v2679 = vcombine.high %v2613, %v2629
      %v2681 = vunpack.c.l.s4 1934713408
      %v2682 = vunpack.c.0.s8 %v2681
      %v2683 = vlaneseq
      %v2684 = vshrl.u32 %v2683, 7
      %v2685 = vsub.s32 %v2682, %v2684
      %v2686 = vrot.slane %v2678, %v2685
      %v2688 = vunpack.c.l.s4 1934713408
      %v2689 = vunpack.c.0.s8 %v2688
      %v2690 = vlaneseq
      %v2691 = vshrl.u32 %v2690, 7
      %v2692 = vsub.s32 %v2689, %v2691
      %v2693 = vrot.slane %v2679, %v2692
      %v2694 = vcombine.low %v2638, %v2670
      %v2695 = vcombine.high %v2638, %v2670
      %v2696 = vcombine.low %v2645, %v2677
      %v2697 = vcombine.high %v2645, %v2677
      %v2698 = vcombine.low %v2654, %v2686
      %v2699 = vcombine.high %v2654, %v2686
      %v2700 = vcombine.low %v2661, %v2693
      %v2701 = vcombine.high %v2661, %v2693
      %v2702 = vcombine.low %v1735, %v1739
      %v2703 = vcombine.high %v1735, %v1739
      %v2705 = vunpack.c.l.s4 1983009808
      %v2706 = vunpack.c.0.s8 %v2705
      %v2707 = vlaneseq
      %v2708 = vshrl.u32 %v2707, 7
      %v2709 = vsub.s32 %v2706, %v2708
      %v2710 = vrot.slane %v2702, %v2709
      %v2712 = vunpack.c.l.s4 1983009808
      %v2713 = vunpack.c.0.s8 %v2712
      %v2714 = vlaneseq
      %v2715 = vshrl.u32 %v2714, 7
      %v2716 = vsub.s32 %v2713, %v2715
      %v2717 = vrot.slane %v2703, %v2716
      %v2718 = vcombine.low %v1737, %v1741
      %v2719 = vcombine.high %v1737, %v1741
      %v2721 = vunpack.c.l.s4 1983009808
      %v2722 = vunpack.c.0.s8 %v2721
      %v2723 = vlaneseq
      %v2724 = vshrl.u32 %v2723, 7
      %v2725 = vsub.s32 %v2722, %v2724
      %v2726 = vrot.slane %v2718, %v2725
      %v2728 = vunpack.c.l.s4 1983009808
      %v2729 = vunpack.c.0.s8 %v2728
      %v2730 = vlaneseq
      %v2731 = vshrl.u32 %v2730, 7
      %v2732 = vsub.s32 %v2729, %v2731
      %v2733 = vrot.slane %v2719, %v2732
      %v2734 = vcombine.low %v1743, %v1747
      %v2735 = vcombine.high %v1743, %v1747
      %v2737 = vunpack.c.l.s4 1983009808
      %v2738 = vunpack.c.0.s8 %v2737
      %v2739 = vlaneseq
      %v2740 = vshrl.u32 %v2739, 7
      %v2741 = vsub.s32 %v2738, %v2740
      %v2742 = vrot.slane %v2734, %v2741
      %v2744 = vunpack.c.l.s4 1983009808
      %v2745 = vunpack.c.0.s8 %v2744
      %v2746 = vlaneseq
      %v2747 = vshrl.u32 %v2746, 7
      %v2748 = vsub.s32 %v2745, %v2747
      %v2749 = vrot.slane %v2735, %v2748
      %v2750 = vcombine.low %v1745, %v1749
      %v2751 = vcombine.high %v1745, %v1749
      %v2753 = vunpack.c.l.s4 1983009808
      %v2754 = vunpack.c.0.s8 %v2753
      %v2755 = vlaneseq
      %v2756 = vshrl.u32 %v2755, 7
      %v2757 = vsub.s32 %v2754, %v2756
      %v2758 = vrot.slane %v2750, %v2757
      %v2760 = vunpack.c.l.s4 1983009808
      %v2761 = vunpack.c.0.s8 %v2760
      %v2762 = vlaneseq
      %v2763 = vshrl.u32 %v2762, 7
      %v2764 = vsub.s32 %v2761, %v2763
      %v2765 = vrot.slane %v2751, %v2764
      %v2766 = vcombine.low %v2710, %v2726
      %v2767 = vcombine.high %v2710, %v2726
      %v2769 = vunpack.c.l.s4 1934713408
      %v2770 = vunpack.c.0.s8 %v2769
      %v2771 = vlaneseq
      %v2772 = vshrl.u32 %v2771, 7
      %v2773 = vsub.s32 %v2770, %v2772
      %v2774 = vrot.slane %v2766, %v2773
      %v2776 = vunpack.c.l.s4 1934713408
      %v2777 = vunpack.c.0.s8 %v2776
      %v2778 = vlaneseq
      %v2779 = vshrl.u32 %v2778, 7
      %v2780 = vsub.s32 %v2777, %v2779
      %v2781 = vrot.slane %v2767, %v2780
      %v2782 = vcombine.low %v2717, %v2733
      %v2783 = vcombine.high %v2717, %v2733
      %v2785 = vunpack.c.l.s4 1934713408
      %v2786 = vunpack.c.0.s8 %v2785
      %v2787 = vlaneseq
      %v2788 = vshrl.u32 %v2787, 7
      %v2789 = vsub.s32 %v2786, %v2788
      %v2790 = vrot.slane %v2782, %v2789
      %v2792 = vunpack.c.l.s4 1934713408
      %v2793 = vunpack.c.0.s8 %v2792
      %v2794 = vlaneseq
      %v2795 = vshrl.u32 %v2794, 7
      %v2796 = vsub.s32 %v2793, %v2795
      %v2797 = vrot.slane %v2783, %v2796
      %v2798 = vcombine.low %v2742, %v2758
      %v2799 = vcombine.high %v2742, %v2758
      %v2801 = vunpack.c.l.s4 1934713408
      %v2802 = vunpack.c.0.s8 %v2801
      %v2803 = vlaneseq
      %v2804 = vshrl.u32 %v2803, 7
      %v2805 = vsub.s32 %v2802, %v2804
      %v2806 = vrot.slane %v2798, %v2805
      %v2808 = vunpack.c.l.s4 1934713408
      %v2809 = vunpack.c.0.s8 %v2808
      %v2810 = vlaneseq
      %v2811 = vshrl.u32 %v2810, 7
      %v2812 = vsub.s32 %v2809, %v2811
      %v2813 = vrot.slane %v2799, %v2812
      %v2814 = vcombine.low %v2749, %v2765
      %v2815 = vcombine.high %v2749, %v2765
      %v2817 = vunpack.c.l.s4 1934713408
      %v2818 = vunpack.c.0.s8 %v2817
      %v2819 = vlaneseq
      %v2820 = vshrl.u32 %v2819, 7
      %v2821 = vsub.s32 %v2818, %v2820
      %v2822 = vrot.slane %v2814, %v2821
      %v2824 = vunpack.c.l.s4 1934713408
      %v2825 = vunpack.c.0.s8 %v2824
      %v2826 = vlaneseq
      %v2827 = vshrl.u32 %v2826, 7
      %v2828 = vsub.s32 %v2825, %v2827
      %v2829 = vrot.slane %v2815, %v2828
      %v2830 = vcombine.low %v2774, %v2806
      %v2831 = vcombine.high %v2774, %v2806
      %v2832 = vcombine.low %v2781, %v2813
      %v2833 = vcombine.high %v2781, %v2813
      %v2834 = vcombine.low %v2790, %v2822
      %v2835 = vcombine.high %v2790, %v2822
      %v2836 = vcombine.low %v2797, %v2829
      %v2837 = vcombine.high %v2797, %v2829
      %v2838 = vld [vmem:[%s6] sm:$0xff]
      %v2839 = vld [vmem:[%s6 + $0x8] sm:$0xff]
      %v2840 = vld [vmem:[%s6 + $0x10] sm:$0xff]
      %v2841 = vld [vmem:[%s6 + $0x18] sm:$0xff]
      %v2842 = vld [vmem:[%s7] sm:$0xff]
      %v2843 = vld [vmem:[%s7 + $0x8] sm:$0xff]
      %v2844 = vld [vmem:[%s7 + $0x10] sm:$0xff]
      %v2845 = vld [vmem:[%s7 + $0x18] sm:$0xff]
      %2847 = vset.pattern.permute.xlu0 0
      %2848 = vperm.xlu0 %2847, %v2842
      %v2849 = vpop.permute.xlu0 %2848
      %2852 = vset.pattern.permute.xlu0 0
      %2853 = vperm.xlu0 %2852, %v2843
      %v2854 = vpop.permute.xlu0 %2853
      %2857 = vset.pattern.permute.xlu0 0
      %2858 = vperm.xlu0 %2857, %v2844
      %v2859 = vpop.permute.xlu0 %2858
      %2862 = vset.pattern.permute.xlu0 0
      %2863 = vperm.xlu0 %2862, %v2845
      %v2864 = vpop.permute.xlu0 %2863
      %2866 = vxpose.xlu0.b32.start [1/16] %v2838, 128
      %2867 = vxpose.xlu0.b32.cont [2/16] %v2839, 128
      %2868 = vxpose.xlu0.b32.cont [3/16] %v2840, 128
      %2869 = vxpose.xlu0.b32.cont [4/16] %v2841, 128
      %2870 = vxpose.xlu0.b32.cont [5/16] 0.0, 128
      %2871 = vxpose.xlu0.b32.cont [6/16] 0.0, 128
      %2872 = vxpose.xlu0.b32.cont [7/16] 0.0, 128
      %2873 = vxpose.xlu0.b32.cont [8/16] 0.0, 128
      %2874 = vxpose.xlu0.b32.cont [9/16] 0.0, 128
      %2875 = vxpose.xlu0.b32.cont [10/16] 0.0, 128
      %2876 = vxpose.xlu0.b32.cont [11/16] 0.0, 128
      %2877 = vxpose.xlu0.b32.cont [12/16] 0.0, 128
      %2878 = vxpose.xlu0.b32.cont [13/16] 0.0, 128
      %2879 = vxpose.xlu0.b32.cont [14/16] 0.0, 128
      %2880 = vxpose.xlu0.b32.cont [15/16] 0.0, 128
      %2881 = vxpose.xlu0.b32.end [16/16] 0.0, 128
      %v2882 = vpop.trf.xlu0
      %v2883 = vpop.trf.xlu0
      %v2884 = vpop.trf.xlu0
      %v2885 = vpop.trf.xlu0
      %v2886 = vpop.trf.xlu0
      %v2887 = vpop.trf.xlu0
      %v2888 = vpop.trf.xlu0
      %v2889 = vpop.trf.xlu0
      %v2890 = vpop.trf.xlu0
      %v2891 = vpop.trf.xlu0
      %v2892 = vpop.trf.xlu0
      %v2893 = vpop.trf.xlu0
      %v2894 = vpop.trf.xlu0
      %v2895 = vpop.trf.xlu0
      %v2896 = vpop.trf.xlu0
      %v2897 = vpop.trf.xlu0
      %vm2898 = vcmask 261120
      %v2900 = vsel %vm2898, %v2882, 0
      %v2903 = vsel %vm2898, %v2883, 0
      %v2906 = vsel %vm2898, %v2884, 0
      %v2909 = vsel %vm2898, %v2885, 0
      %2911 = vmatprep.subr.mxu0 %v2422
      %2912 = vmatpush1.msra.mxu0 %v1878
      %2913 = vmatprep.subr.mxu0 %v2558
      %2914 = vmatpush1.msra.mxu0 %v2014
      %2915 = vmatprep.subr.mxu0 %v2694
      %2916 = vmatpush1.msra.mxu0 %v2150
      %2917 = vmatprep.subr.mxu0 %v2830
      %2918 = vmatpush1.msra.mxu0 %v2286
      %2919 = vmatprep.subr.mxu0 0.0
      %2920 = vmatpush1.msra.mxu0 0.0
      %2921 = vmatprep.subr.mxu0 0.0
      %2922 = vmatpush1.msra.mxu0 0.0
      %2923 = vmatprep.subr.mxu0 0.0
      %2924 = vmatpush1.msra.mxu0 0.0
      %2925 = vmatprep.subr.mxu0 0.0
      %2926 = vmatpush1.msra.mxu0 0.0
      %2927 = vmatprep.subr.mxu0 0.0
      %2928 = vmatpush1.msra.mxu0 0.0
      %2929 = vmatprep.subr.mxu0 0.0
      %2930 = vmatpush1.msra.mxu0 0.0
      %2931 = vmatprep.subr.mxu0 0.0
      %2932 = vmatpush1.msra.mxu0 0.0
      %2933 = vmatprep.subr.mxu0 0.0
      %2934 = vmatpush1.msra.mxu0 0.0
      %2935 = vmatprep.subr.mxu0 0.0
      %2936 = vmatpush1.msra.mxu0 0.0
      %2937 = vmatprep.subr.mxu0 0.0
      %2938 = vmatpush1.msra.mxu0 0.0
      %2939 = vmatprep.subr.mxu0 0.0
      %2940 = vmatpush1.msra.mxu0 0.0
      %2941 = vmatprep.subr.mxu0 0.0
      %2942 = vmatpush1.msra.mxu0 0.0
      %2943 = vmatprep.subr.mxu0 0.0
      %2944 = vmatpush1.msra.mxu0 0.0
      %2945 = vmatprep.subr.mxu0 0.0
      %2946 = vmatpush1.msra.mxu0 0.0
      %2947 = vmatprep.subr.mxu0 0.0
      %2948 = vmatpush1.msra.mxu0 0.0
      %2949 = vmatprep.subr.mxu0 0.0
      %2950 = vmatpush1.msra.mxu0 0.0
      %2951 = vmatprep.subr.mxu0 0.0
      %2952 = vmatpush1.msra.mxu0 0.0
      %2953 = vmatprep.subr.mxu0 0.0
      %2954 = vmatpush1.msra.mxu0 0.0
      %2955 = vmatprep.subr.mxu0 0.0
      %2956 = vmatpush1.msra.mxu0 0.0
      %2957 = vmatprep.subr.mxu0 0.0
      %2958 = vmatpush1.msra.mxu0 0.0
      %2959 = vmatprep.subr.mxu0 0.0
      %2960 = vmatpush1.msra.mxu0 0.0
      %2961 = vmatprep.subr.mxu0 0.0
      %2962 = vmatpush1.msra.mxu0 0.0
      %2963 = vmatprep.subr.mxu0 0.0
      %2964 = vmatpush1.msra.mxu0 0.0
      %2965 = vmatprep.subr.mxu0 0.0
      %2966 = vmatpush1.msra.mxu0 0.0
      %2967 = vmatprep.subr.mxu0 0.0
      %2968 = vmatpush1.msra.mxu0 0.0
      %2969 = vmatprep.subr.mxu0 0.0
      %2970 = vmatpush1.msra.mxu0 0.0
      %2971 = vmatprep.subr.mxu0 0.0
      %2972 = vmatpush1.msra.mxu0 0.0
      %2973 = vmatprep.subr.mxu0 0.0
      %2974 = vmatpush1.msra.mxu0 0.0
      %2975 = vmatprep.mubr.f32.mxu0 0.0
      %2976 = vmatmul.mubr.f32.gmra.mrb[0].mxu0 %v2900
      %v2977 = vpop.f32.mrb[0].mxu0
      %v2978 = vadd.f32 %v2849, %v2977
      %v2979 = vpop.f32.mrb[0].mxu0
      %v2980 = vadd.f32 %v2849, %v2979
      %2981 = vmatprep.mubr.f32.mxu0 0.0
      %2982 = vmatmul.mubr.f32.gmra.mrb[0].mxu0 %v2903
      %v2983 = vpop.f32.mrb[0].mxu0
      %v2984 = vadd.f32 %v2854, %v2983
      %v2985 = vpop.f32.mrb[0].mxu0
      %v2986 = vadd.f32 %v2854, %v2985
      %2987 = vmatprep.mubr.f32.mxu0 0.0
      %2988 = vmatmul.mubr.f32.gmra.mrb[0].mxu0 %v2906
      %v2989 = vpop.f32.mrb[0].mxu0
      %v2990 = vadd.f32 %v2859, %v2989
      %v2991 = vpop.f32.mrb[0].mxu0
      %v2992 = vadd.f32 %v2859, %v2991
      %2993 = vmatprep.mubr.f32.mxu0 0.0
      %2994 = vmatmul.mubr.f32.gmra.mrb[0].mxu0 %v2909
      %v2995 = vpop.f32.mrb[0].mxu0
      %v2996 = vadd.f32 %v2864, %v2995
      %v2997 = vpop.f32.mrb[0].mxu0
      %v2998 = vadd.f32 %v2864, %v2997
      %2999 = vdwg.mxu0
      %3000 = vmatprep.subr.mxu0 %v2423
      %3001 = vmatpush1.msra.mxu0 %v1879
      %3002 = vmatprep.subr.mxu0 %v2559
      %3003 = vmatpush1.msra.mxu0 %v2015
      %3004 = vmatprep.subr.mxu0 %v2695
      %3005 = vmatpush1.msra.mxu0 %v2151
      %3006 = vmatprep.subr.mxu0 %v2831
      %3007 = vmatpush1.msra.mxu0 %v2287
      %3008 = vmatprep.subr.mxu0 0.0
      %3009 = vmatpush1.msra.mxu0 0.0
      %3010 = vmatprep.subr.mxu0 0.0
      %3011 = vmatpush1.msra.mxu0 0.0
      %3012 = vmatprep.subr.mxu0 0.0
      %3013 = vmatpush1.msra.mxu0 0.0
      %3014 = vmatprep.subr.mxu0 0.0
      %3015 = vmatpush1.msra.mxu0 0.0
      %3016 = vmatprep.subr.mxu0 0.0
      %3017 = vmatpush1.msra.mxu0 0.0
      %3018 = vmatprep.subr.mxu0 0.0
      %3019 = vmatpush1.msra.mxu0 0.0
      %3020 = vmatprep.subr.mxu0 0.0
      %3021 = vmatpush1.msra.mxu0 0.0
      %3022 = vmatprep.subr.mxu0 0.0
      %3023 = vmatpush1.msra.mxu0 0.0
      %3024 = vmatprep.subr.mxu0 0.0
      %3025 = vmatpush1.msra.mxu0 0.0
      %3026 = vmatprep.subr.mxu0 0.0
      %3027 = vmatpush1.msra.mxu0 0.0
      %3028 = vmatprep.subr.mxu0 0.0
      %3029 = vmatpush1.msra.mxu0 0.0
      %3030 = vmatprep.subr.mxu0 0.0
      %3031 = vmatpush1.msra.mxu0 0.0
      %3032 = vmatprep.subr.mxu0 0.0
      %3033 = vmatpush1.msra.mxu0 0.0
      %3034 = vmatprep.subr.mxu0 0.0
      %3035 = vmatpush1.msra.mxu0 0.0
      %3036 = vmatprep.subr.mxu0 0.0
      %3037 = vmatpush1.msra.mxu0 0.0
      %3038 = vmatprep.subr.mxu0 0.0
      %3039 = vmatpush1.msra.mxu0 0.0
      %3040 = vmatprep.subr.mxu0 0.0
      %3041 = vmatpush1.msra.mxu0 0.0
      %3042 = vmatprep.subr.mxu0 0.0
      %3043 = vmatpush1.msra.mxu0 0.0
      %3044 = vmatprep.subr.mxu0 0.0
      %3045 = vmatpush1.msra.mxu0 0.0
      %3046 = vmatprep.subr.mxu0 0.0
      %3047 = vmatpush1.msra.mxu0 0.0
      %3048 = vmatprep.subr.mxu0 0.0
      %3049 = vmatpush1.msra.mxu0 0.0
      %3050 = vmatprep.subr.mxu0 0.0
      %3051 = vmatpush1.msra.mxu0 0.0
      %3052 = vmatprep.subr.mxu0 0.0
      %3053 = vmatpush1.msra.mxu0 0.0
      %3054 = vmatprep.subr.mxu0 0.0
      %3055 = vmatpush1.msra.mxu0 0.0
      %3056 = vmatprep.subr.mxu0 0.0
      %3057 = vmatpush1.msra.mxu0 0.0
      %3058 = vmatprep.subr.mxu0 0.0
      %3059 = vmatpush1.msra.mxu0 0.0
      %3060 = vmatprep.subr.mxu0 0.0
      %3061 = vmatpush1.msra.mxu0 0.0
      %3062 = vmatprep.subr.mxu0 0.0
      %3063 = vmatpush1.msra.mxu0 0.0
      %3064 = vmatprep.mubr.f32.mxu0 0.0
      %3065 = vmatmul.mubr.f32.gmra.mrb[0].mxu0 %v2900
      %v3066 = vpop.f32.mrb[0].mxu0
      %v3067 = vadd.f32 %v2849, %v3066
      %v3068 = vpop.f32.mrb[0].mxu0
      %v3069 = vadd.f32 %v2849, %v3068
      %3070 = vmatprep.mubr.f32.mxu0 0.0
      %3071 = vmatmul.mubr.f32.gmra.mrb[0].mxu0 %v2903
      %v3072 = vpop.f32.mrb[0].mxu0
      %v3073 = vadd.f32 %v2854, %v3072
      %v3074 = vpop.f32.mrb[0].mxu0
      %v3075 = vadd.f32 %v2854, %v3074
      %3076 = vmatprep.mubr.f32.mxu0 0.0
      %3077 = vmatmul.mubr.f32.gmra.mrb[0].mxu0 %v2906
      %v3078 = vpop.f32.mrb[0].mxu0
      %v3079 = vadd.f32 %v2859, %v3078
      %v3080 = vpop.f32.mrb[0].mxu0
      %v3081 = vadd.f32 %v2859, %v3080
      %3082 = vmatprep.mubr.f32.mxu0 0.0
      %3083 = vmatmul.mubr.f32.gmra.mrb[0].mxu0 %v2909
      %v3084 = vpop.f32.mrb[0].mxu0
      %v3085 = vadd.f32 %v2864, %v3084
      %v3086 = vpop.f32.mrb[0].mxu0
      %v3087 = vadd.f32 %v2864, %v3086
      %3088 = vdwg.mxu0
      %3089 = vmatprep.subr.mxu0 %v2424
      %3090 = vmatpush1.msra.mxu0 %v1880
      %3091 = vmatprep.subr.mxu0 %v2560
      %3092 = vmatpush1.msra.mxu0 %v2016
      %3093 = vmatprep.subr.mxu0 %v2696
      %3094 = vmatpush1.msra.mxu0 %v2152
      %3095 = vmatprep.subr.mxu0 %v2832
      %3096 = vmatpush1.msra.mxu0 %v2288
      %3097 = vmatprep.subr.mxu0 0.0
      %3098 = vmatpush1.msra.mxu0 0.0
      %3099 = vmatprep.subr.mxu0 0.0
      %3100 = vmatpush1.msra.mxu0 0.0
      %3101 = vmatprep.subr.mxu0 0.0
      %3102 = vmatpush1.msra.mxu0 0.0
      %3103 = vmatprep.subr.mxu0 0.0
      %3104 = vmatpush1.msra.mxu0 0.0
      %3105 = vmatprep.subr.mxu0 0.0
      %3106 = vmatpush1.msra.mxu0 0.0
      %3107 = vmatprep.subr.mxu0 0.0
      %3108 = vmatpush1.msra.mxu0 0.0
      %3109 = vmatprep.subr.mxu0 0.0
      %3110 = vmatpush1.msra.mxu0 0.0
      %3111 = vmatprep.subr.mxu0 0.0
      %3112 = vmatpush1.msra.mxu0 0.0
      %3113 = vmatprep.subr.mxu0 0.0
      %3114 = vmatpush1.msra.mxu0 0.0
      %3115 = vmatprep.subr.mxu0 0.0
      %3116 = vmatpush1.msra.mxu0 0.0
      %3117 = vmatprep.subr.mxu0 0.0
      %3118 = vmatpush1.msra.mxu0 0.0
      %3119 = vmatprep.subr.mxu0 0.0
      %3120 = vmatpush1.msra.mxu0 0.0
      %3121 = vmatprep.subr.mxu0 0.0
      %3122 = vmatpush1.msra.mxu0 0.0
      %3123 = vmatprep.subr.mxu0 0.0
      %3124 = vmatpush1.msra.mxu0 0.0
      %3125 = vmatprep.subr.mxu0 0.0
      %3126 = vmatpush1.msra.mxu0 0.0
      %3127 = vmatprep.subr.mxu0 0.0
      %3128 = vmatpush1.msra.mxu0 0.0
      %3129 = vmatprep.subr.mxu0 0.0
      %3130 = vmatpush1.msra.mxu0 0.0
      %3131 = vmatprep.subr.mxu0 0.0
      %3132 = vmatpush1.msra.mxu0 0.0
      %3133 = vmatprep.subr.mxu0 0.0
      %3134 = vmatpush1.msra.mxu0 0.0
      %3135 = vmatprep.subr.mxu0 0.0
      %3136 = vmatpush1.msra.mxu0 0.0
      %3137 = vmatprep.subr.mxu0 0.0
      %3138 = vmatpush1.msra.mxu0 0.0
      %3139 = vmatprep.subr.mxu0 0.0
      %3140 = vmatpush1.msra.mxu0 0.0
      %3141 = vmatprep.subr.mxu0 0.0
      %3142 = vmatpush1.msra.mxu0 0.0
      %3143 = vmatprep.subr.mxu0 0.0
      %3144 = vmatpush1.msra.mxu0 0.0
      %3145 = vmatprep.subr.mxu0 0.0
      %3146 = vmatpush1.msra.mxu0 0.0
      %3147 = vmatprep.subr.mxu0 0.0
      %3148 = vmatpush1.msra.mxu0 0.0
      %3149 = vmatprep.subr.mxu0 0.0
      %3150 = vmatpush1.msra.mxu0 0.0
      %3151 = vmatprep.subr.mxu0 0.0
      %3152 = vmatpush1.msra.mxu0 0.0
      %3153 = vmatprep.mubr.f32.mxu0 0.0
      %3154 = vmatmul.mubr.f32.gmra.mrb[0].mxu0 %v2900
      %v3155 = vpop.f32.mrb[0].mxu0
      %v3156 = vadd.f32 %v2849, %v3155
      %v3157 = vpop.f32.mrb[0].mxu0
      %v3158 = vadd.f32 %v2849, %v3157
      %3159 = vmatprep.mubr.f32.mxu0 0.0
      %3160 = vmatmul.mubr.f32.gmra.mrb[0].mxu0 %v2903
      %v3161 = vpop.f32.mrb[0].mxu0
      %v3162 = vadd.f32 %v2854, %v3161
      %v3163 = vpop.f32.mrb[0].mxu0
      %v3164 = vadd.f32 %v2854, %v3163
      %3165 = vmatprep.mubr.f32.mxu0 0.0
      %3166 = vmatmul.mubr.f32.gmra.mrb[0].mxu0 %v2906
      %v3167 = vpop.f32.mrb[0].mxu0
      %v3168 = vadd.f32 %v2859, %v3167
      %v3169 = vpop.f32.mrb[0].mxu0
      %v3170 = vadd.f32 %v2859, %v3169
      %3171 = vmatprep.mubr.f32.mxu0 0.0
      %3172 = vmatmul.mubr.f32.gmra.mrb[0].mxu0 %v2909
      %v3173 = vpop.f32.mrb[0].mxu0
      %v3174 = vadd.f32 %v2864, %v3173
      %v3175 = vpop.f32.mrb[0].mxu0
      %v3176 = vadd.f32 %v2864, %v3175
      %3177 = vdwg.mxu0
      %3178 = vmatprep.subr.mxu0 %v2425
      %3179 = vmatpush1.msra.mxu0 %v1881
      %3180 = vmatprep.subr.mxu0 %v2561
      %3181 = vmatpush1.msra.mxu0 %v2017
      %3182 = vmatprep.subr.mxu0 %v2697
      %3183 = vmatpush1.msra.mxu0 %v2153
      %3184 = vmatprep.subr.mxu0 %v2833
      %3185 = vmatpush1.msra.mxu0 %v2289
      %3186 = vmatprep.subr.mxu0 0.0
      %3187 = vmatpush1.msra.mxu0 0.0
      %3188 = vmatprep.subr.mxu0 0.0
      %3189 = vmatpush1.msra.mxu0 0.0
      %3190 = vmatprep.subr.mxu0 0.0
      %3191 = vmatpush1.msra.mxu0 0.0
      %3192 = vmatprep.subr.mxu0 0.0
      %3193 = vmatpush1.msra.mxu0 0.0
      %3194 = vmatprep.subr.mxu0 0.0
      %3195 = vmatpush1.msra.mxu0 0.0
      %3196 = vmatprep.subr.mxu0 0.0
      %3197 = vmatpush1.msra.mxu0 0.0
      %3198 = vmatprep.subr.mxu0 0.0
      %3199 = vmatpush1.msra.mxu0 0.0
      %3200 = vmatprep.subr.mxu0 0.0
      %3201 = vmatpush1.msra.mxu0 0.0
      %3202 = vmatprep.subr.mxu0 0.0
      %3203 = vmatpush1.msra.mxu0 0.0
      %3204 = vmatprep.subr.mxu0 0.0
      %3205 = vmatpush1.msra.mxu0 0.0
      %3206 = vmatprep.subr.mxu0 0.0
      %3207 = vmatpush1.msra.mxu0 0.0
      %3208 = vmatprep.subr.mxu0 0.0
      %3209 = vmatpush1.msra.mxu0 0.0
      %3210 = vmatprep.subr.mxu0 0.0
      %3211 = vmatpush1.msra.mxu0 0.0
      %3212 = vmatprep.subr.mxu0 0.0
      %3213 = vmatpush1.msra.mxu0 0.0
      %3214 = vmatprep.subr.mxu0 0.0
      %3215 = vmatpush1.msra.mxu0 0.0
      %3216 = vmatprep.subr.mxu0 0.0
      %3217 = vmatpush1.msra.mxu0 0.0
      %3218 = vmatprep.subr.mxu0 0.0
      %3219 = vmatpush1.msra.mxu0 0.0
      %3220 = vmatprep.subr.mxu0 0.0
      %3221 = vmatpush1.msra.mxu0 0.0
      %3222 = vmatprep.subr.mxu0 0.0
      %3223 = vmatpush1.msra.mxu0 0.0
      %3224 = vmatprep.subr.mxu0 0.0
      %3225 = vmatpush1.msra.mxu0 0.0
      %3226 = vmatprep.subr.mxu0 0.0
      %3227 = vmatpush1.msra.mxu0 0.0
      %3228 = vmatprep.subr.mxu0 0.0
      %3229 = vmatpush1.msra.mxu0 0.0
      %3230 = vmatprep.subr.mxu0 0.0
      %3231 = vmatpush1.msra.mxu0 0.0
      %3232 = vmatprep.subr.mxu0 0.0
      %3233 = vmatpush1.msra.mxu0 0.0
      %3234 = vmatprep.subr.mxu0 0.0
      %3235 = vmatpush1.msra.mxu0 0.0
      %3236 = vmatprep.subr.mxu0 0.0
      %3237 = vmatpush1.msra.mxu0 0.0
      %3238 = vmatprep.subr.mxu0 0.0
      %3239 = vmatpush1.msra.mxu0 0.0
      %3240 = vmatprep.subr.mxu0 0.0
      %3241 = vmatpush1.msra.mxu0 0.0
      %3242 = vmatprep.mubr.f32.mxu0 0.0
      %3243 = vmatmul.mubr.f32.gmra.mrb[0].mxu0 %v2900
      %v3244 = vpop.f32.mrb[0].mxu0
      %v3245 = vadd.f32 %v2849, %v3244
      %v3246 = vpop.f32.mrb[0].mxu0
      %v3247 = vadd.f32 %v2849, %v3246
      %3248 = vmatprep.mubr.f32.mxu0 0.0
      %3249 = vmatmul.mubr.f32.gmra.mrb[0].mxu0 %v2903
      %v3250 = vpop.f32.mrb[0].mxu0
      %v3251 = vadd.f32 %v2854, %v3250
      %v3252 = vpop.f32.mrb[0].mxu0
      %v3253 = vadd.f32 %v2854, %v3252
      %3254 = vmatprep.mubr.f32.mxu0 0.0
      %3255 = vmatmul.mubr.f32.gmra.mrb[0].mxu0 %v2906
      %v3256 = vpop.f32.mrb[0].mxu0
      %v3257 = vadd.f32 %v2859, %v3256
      %v3258 = vpop.f32.mrb[0].mxu0
      %v3259 = vadd.f32 %v2859, %v3258
      %3260 = vmatprep.mubr.f32.mxu0 0.0
      %3261 = vmatmul.mubr.f32.gmra.mrb[0].mxu0 %v2909
      %v3262 = vpop.f32.mrb[0].mxu0
      %v3263 = vadd.f32 %v2864, %v3262
      %v3264 = vpop.f32.mrb[0].mxu0
      %v3265 = vadd.f32 %v2864, %v3264
      %3266 = vdwg.mxu0
      %3267 = vmatprep.subr.mxu0 %v2426
      %3268 = vmatpush1.msra.mxu0 %v1882
      %3269 = vmatprep.subr.mxu0 %v2562
      %3270 = vmatpush1.msra.mxu0 %v2018
      %3271 = vmatprep.subr.mxu0 %v2698
      %3272 = vmatpush1.msra.mxu0 %v2154
      %3273 = vmatprep.subr.mxu0 %v2834
      %3274 = vmatpush1.msra.mxu0 %v2290
      %3275 = vmatprep.subr.mxu0 0.0
      %3276 = vmatpush1.msra.mxu0 0.0
      %3277 = vmatprep.subr.mxu0 0.0
      %3278 = vmatpush1.msra.mxu0 0.0
      %3279 = vmatprep.subr.mxu0 0.0
      %3280 = vmatpush1.msra.mxu0 0.0
      %3281 = vmatprep.subr.mxu0 0.0
      %3282 = vmatpush1.msra.mxu0 0.0
      %3283 = vmatprep.subr.mxu0 0.0
      %3284 = vmatpush1.msra.mxu0 0.0
      %3285 = vmatprep.subr.mxu0 0.0
      %3286 = vmatpush1.msra.mxu0 0.0
      %3287 = vmatprep.subr.mxu0 0.0
      %3288 = vmatpush1.msra.mxu0 0.0
      %3289 = vmatprep.subr.mxu0 0.0
      %3290 = vmatpush1.msra.mxu0 0.0
      %3291 = vmatprep.subr.mxu0 0.0
      %3292 = vmatpush1.msra.mxu0 0.0
      %3293 = vmatprep.subr.mxu0 0.0
      %3294 = vmatpush1.msra.mxu0 0.0
      %3295 = vmatprep.subr.mxu0 0.0
      %3296 = vmatpush1.msra.mxu0 0.0
      %3297 = vmatprep.subr.mxu0 0.0
      %3298 = vmatpush1.msra.mxu0 0.0
      %3299 = vmatprep.subr.mxu0 0.0
      %3300 = vmatpush1.msra.mxu0 0.0
      %3301 = vmatprep.subr.mxu0 0.0
      %3302 = vmatpush1.msra.mxu0 0.0
      %3303 = vmatprep.subr.mxu0 0.0
      %3304 = vmatpush1.msra.mxu0 0.0
      %3305 = vmatprep.subr.mxu0 0.0
      %3306 = vmatpush1.msra.mxu0 0.0
      %3307 = vmatprep.subr.mxu0 0.0
      %3308 = vmatpush1.msra.mxu0 0.0
      %3309 = vmatprep.subr.mxu0 0.0
      %3310 = vmatpush1.msra.mxu0 0.0
      %3311 = vmatprep.subr.mxu0 0.0
      %3312 = vmatpush1.msra.mxu0 0.0
      %3313 = vmatprep.subr.mxu0 0.0
      %3314 = vmatpush1.msra.mxu0 0.0
      %3315 = vmatprep.subr.mxu0 0.0
      %3316 = vmatpush1.msra.mxu0 0.0
      %3317 = vmatprep.subr.mxu0 0.0
      %3318 = vmatpush1.msra.mxu0 0.0
      %3319 = vmatprep.subr.mxu0 0.0
      %3320 = vmatpush1.msra.mxu0 0.0
      %3321 = vmatprep.subr.mxu0 0.0
      %3322 = vmatpush1.msra.mxu0 0.0
      %3323 = vmatprep.subr.mxu0 0.0
      %3324 = vmatpush1.msra.mxu0 0.0
      %3325 = vmatprep.subr.mxu0 0.0
      %3326 = vmatpush1.msra.mxu0 0.0
      %3327 = vmatprep.subr.mxu0 0.0
      %3328 = vmatpush1.msra.mxu0 0.0
      %3329 = vmatprep.subr.mxu0 0.0
      %3330 = vmatpush1.msra.mxu0 0.0
      %3331 = vmatprep.mubr.f32.mxu0 0.0
      %3332 = vmatmul.mubr.f32.gmra.mrb[0].mxu0 %v2900
      %v3333 = vpop.f32.mrb[0].mxu0
      %v3334 = vadd.f32 %v2849, %v3333
      %v3335 = vpop.f32.mrb[0].mxu0
      %v3336 = vadd.f32 %v2849, %v3335
      %3337 = vmatprep.mubr.f32.mxu0 0.0
      %3338 = vmatmul.mubr.f32.gmra.mrb[0].mxu0 %v2903
      %v3339 = vpop.f32.mrb[0].mxu0
      %v3340 = vadd.f32 %v2854, %v3339
      %v3341 = vpop.f32.mrb[0].mxu0
      %v3342 = vadd.f32 %v2854, %v3341
      %3343 = vmatprep.mubr.f32.mxu0 0.0
      %3344 = vmatmul.mubr.f32.gmra.mrb[0].mxu0 %v2906
      %v3345 = vpop.f32.mrb[0].mxu0
      %v3346 = vadd.f32 %v2859, %v3345
      %v3347 = vpop.f32.mrb[0].mxu0
      %v3348 = vadd.f32 %v2859, %v3347
      %3349 = vmatprep.mubr.f32.mxu0 0.0
      %3350 = vmatmul.mubr.f32.gmra.mrb[0].mxu0 %v2909
      %v3351 = vpop.f32.mrb[0].mxu0
      %v3352 = vadd.f32 %v2864, %v3351
      %v3353 = vpop.f32.mrb[0].mxu0
      %v3354 = vadd.f32 %v2864, %v3353
      %3355 = vdwg.mxu0
      %3356 = vmatprep.subr.mxu0 %v2427
      %3357 = vmatpush1.msra.mxu0 %v1883
      %3358 = vmatprep.subr.mxu0 %v2563
      %3359 = vmatpush1.msra.mxu0 %v2019
      %3360 = vmatprep.subr.mxu0 %v2699
      %3361 = vmatpush1.msra.mxu0 %v2155
      %3362 = vmatprep.subr.mxu0 %v2835
      %3363 = vmatpush1.msra.mxu0 %v2291
      %3364 = vmatprep.subr.mxu0 0.0
      %3365 = vmatpush1.msra.mxu0 0.0
      %3366 = vmatprep.subr.mxu0 0.0
      %3367 = vmatpush1.msra.mxu0 0.0
      %3368 = vmatprep.subr.mxu0 0.0
      %3369 = vmatpush1.msra.mxu0 0.0
      %3370 = vmatprep.subr.mxu0 0.0
      %3371 = vmatpush1.msra.mxu0 0.0
      %3372 = vmatprep.subr.mxu0 0.0
      %3373 = vmatpush1.msra.mxu0 0.0
      %3374 = vmatprep.subr.mxu0 0.0
      %3375 = vmatpush1.msra.mxu0 0.0
      %3376 = vmatprep.subr.mxu0 0.0
      %3377 = vmatpush1.msra.mxu0 0.0
      %3378 = vmatprep.subr.mxu0 0.0
      %3379 = vmatpush1.msra.mxu0 0.0
      %3380 = vmatprep.subr.mxu0 0.0
      %3381 = vmatpush1.msra.mxu0 0.0
      %3382 = vmatprep.subr.mxu0 0.0
      %3383 = vmatpush1.msra.mxu0 0.0
      %3384 = vmatprep.subr.mxu0 0.0
      %3385 = vmatpush1.msra.mxu0 0.0
      %3386 = vmatprep.subr.mxu0 0.0
      %3387 = vmatpush1.msra.mxu0 0.0
      %3388 = vmatprep.subr.mxu0 0.0
      %3389 = vmatpush1.msra.mxu0 0.0
      %3390 = vmatprep.subr.mxu0 0.0
      %3391 = vmatpush1.msra.mxu0 0.0
      %3392 = vmatprep.subr.mxu0 0.0
      %3393 = vmatpush1.msra.mxu0 0.0
      %3394 = vmatprep.subr.mxu0 0.0
      %3395 = vmatpush1.msra.mxu0 0.0
      %3396 = vmatprep.subr.mxu0 0.0
      %3397 = vmatpush1.msra.mxu0 0.0
      %3398 = vmatprep.subr.mxu0 0.0
      %3399 = vmatpush1.msra.mxu0 0.0
      %3400 = vmatprep.subr.mxu0 0.0
      %3401 = vmatpush1.msra.mxu0 0.0
      %3402 = vmatprep.subr.mxu0 0.0
      %3403 = vmatpush1.msra.mxu0 0.0
      %3404 = vmatprep.subr.mxu0 0.0
      %3405 = vmatpush1.msra.mxu0 0.0
      %3406 = vmatprep.subr.mxu0 0.0
      %3407 = vmatpush1.msra.mxu0 0.0
      %3408 = vmatprep.subr.mxu0 0.0
      %3409 = vmatpush1.msra.mxu0 0.0
      %3410 = vmatprep.subr.mxu0 0.0
      %3411 = vmatpush1.msra.mxu0 0.0
      %3412 = vmatprep.subr.mxu0 0.0
      %3413 = vmatpush1.msra.mxu0 0.0
      %3414 = vmatprep.subr.mxu0 0.0
      %3415 = vmatpush1.msra.mxu0 0.0
      %3416 = vmatprep.subr.mxu0 0.0
      %3417 = vmatpush1.msra.mxu0 0.0
      %3418 = vmatprep.subr.mxu0 0.0
      %3419 = vmatpush1.msra.mxu0 0.0
      %3420 = vmatprep.mubr.f32.mxu0 0.0
      %3421 = vmatmul.mubr.f32.gmra.mrb[0].mxu0 %v2900
      %v3422 = vpop.f32.mrb[0].mxu0
      %v3423 = vadd.f32 %v2849, %v3422
      %v3424 = vpop.f32.mrb[0].mxu0
      %v3425 = vadd.f32 %v2849, %v3424
      %3426 = vmatprep.mubr.f32.mxu0 0.0
      %3427 = vmatmul.mubr.f32.gmra.mrb[0].mxu0 %v2903
      %v3428 = vpop.f32.mrb[0].mxu0
      %v3429 = vadd.f32 %v2854, %v3428
      %v3430 = vpop.f32.mrb[0].mxu0
      %v3431 = vadd.f32 %v2854, %v3430
      %3432 = vmatprep.mubr.f32.mxu0 0.0
      %3433 = vmatmul.mubr.f32.gmra.mrb[0].mxu0 %v2906
      %v3434 = vpop.f32.mrb[0].mxu0
      %v3435 = vadd.f32 %v2859, %v3434
      %v3436 = vpop.f32.mrb[0].mxu0
      %v3437 = vadd.f32 %v2859, %v3436
      %3438 = vmatprep.mubr.f32.mxu0 0.0
      %3439 = vmatmul.mubr.f32.gmra.mrb[0].mxu0 %v2909
      %v3440 = vpop.f32.mrb[0].mxu0
      %v3441 = vadd.f32 %v2864, %v3440
      %v3442 = vpop.f32.mrb[0].mxu0
      %v3443 = vadd.f32 %v2864, %v3442
      %3444 = vdwg.mxu0
      %3445 = vmatprep.subr.mxu0 %v2428
      %3446 = vmatpush1.msra.mxu0 %v1884
      %3447 = vmatprep.subr.mxu0 %v2564
      %3448 = vmatpush1.msra.mxu0 %v2020
      %3449 = vmatprep.subr.mxu0 %v2700
      %3450 = vmatpush1.msra.mxu0 %v2156
      %3451 = vmatprep.subr.mxu0 %v2836
      %3452 = vmatpush1.msra.mxu0 %v2292
      %3453 = vmatprep.subr.mxu0 0.0
      %3454 = vmatpush1.msra.mxu0 0.0
      %3455 = vmatprep.subr.mxu0 0.0
      %3456 = vmatpush1.msra.mxu0 0.0
      %3457 = vmatprep.subr.mxu0 0.0
      %3458 = vmatpush1.msra.mxu0 0.0
      %3459 = vmatprep.subr.mxu0 0.0
      %3460 = vmatpush1.msra.mxu0 0.0
      %3461 = vmatprep.subr.mxu0 0.0
      %3462 = vmatpush1.msra.mxu0 0.0
      %3463 = vmatprep.subr.mxu0 0.0
      %3464 = vmatpush1.msra.mxu0 0.0
      %3465 = vmatprep.subr.mxu0 0.0
      %3466 = vmatpush1.msra.mxu0 0.0
      %3467 = vmatprep.subr.mxu0 0.0
      %3468 = vmatpush1.msra.mxu0 0.0
      %3469 = vmatprep.subr.mxu0 0.0
      %3470 = vmatpush1.msra.mxu0 0.0
      %3471 = vmatprep.subr.mxu0 0.0
      %3472 = vmatpush1.msra.mxu0 0.0
      %3473 = vmatprep.subr.mxu0 0.0
      %3474 = vmatpush1.msra.mxu0 0.0
      %3475 = vmatprep.subr.mxu0 0.0
      %3476 = vmatpush1.msra.mxu0 0.0
      %3477 = vmatprep.subr.mxu0 0.0
      %3478 = vmatpush1.msra.mxu0 0.0
      %3479 = vmatprep.subr.mxu0 0.0
      %3480 = vmatpush1.msra.mxu0 0.0
      %3481 = vmatprep.subr.mxu0 0.0
      %3482 = vmatpush1.msra.mxu0 0.0
      %3483 = vmatprep.subr.mxu0 0.0
      %3484 = vmatpush1.msra.mxu0 0.0
      %3485 = vmatprep.subr.mxu0 0.0
      %3486 = vmatpush1.msra.mxu0 0.0
      %3487 = vmatprep.subr.mxu0 0.0
      %3488 = vmatpush1.msra.mxu0 0.0
      %3489 = vmatprep.subr.mxu0 0.0
      %3490 = vmatpush1.msra.mxu0 0.0
      %3491 = vmatprep.subr.mxu0 0.0
      %3492 = vmatpush1.msra.mxu0 0.0
      %3493 = vmatprep.subr.mxu0 0.0
      %3494 = vmatpush1.msra.mxu0 0.0
      %3495 = vmatprep.subr.mxu0 0.0
      %3496 = vmatpush1.msra.mxu0 0.0
      %3497 = vmatprep.subr.mxu0 0.0
      %3498 = vmatpush1.msra.mxu0 0.0
      %3499 = vmatprep.subr.mxu0 0.0
      %3500 = vmatpush1.msra.mxu0 0.0
      %3501 = vmatprep.subr.mxu0 0.0
      %3502 = vmatpush1.msra.mxu0 0.0
      %3503 = vmatprep.subr.mxu0 0.0
      %3504 = vmatpush1.msra.mxu0 0.0
      %3505 = vmatprep.subr.mxu0 0.0
      %3506 = vmatpush1.msra.mxu0 0.0
      %3507 = vmatprep.subr.mxu0 0.0
      %3508 = vmatpush1.msra.mxu0 0.0
      %3509 = vmatprep.mubr.f32.mxu0 0.0
      %3510 = vmatmul.mubr.f32.gmra.mrb[0].mxu0 %v2900
      %v3511 = vpop.f32.mrb[0].mxu0
      %v3512 = vadd.f32 %v2849, %v3511
      %v3513 = vpop.f32.mrb[0].mxu0
      %v3514 = vadd.f32 %v2849, %v3513
      %3515 = vmatprep.mubr.f32.mxu0 0.0
      %3516 = vmatmul.mubr.f32.gmra.mrb[0].mxu0 %v2903
      %v3517 = vpop.f32.mrb[0].mxu0
      %v3518 = vadd.f32 %v2854, %v3517
      %v3519 = vpop.f32.mrb[0].mxu0
      %v3520 = vadd.f32 %v2854, %v3519
      %3521 = vmatprep.mubr.f32.mxu0 0.0
      %3522 = vmatmul.mubr.f32.gmra.mrb[0].mxu0 %v2906
      %v3523 = vpop.f32.mrb[0].mxu0
      %v3524 = vadd.f32 %v2859, %v3523
      %v3525 = vpop.f32.mrb[0].mxu0
      %v3526 = vadd.f32 %v2859, %v3525
      %3527 = vmatprep.mubr.f32.mxu0 0.0
      %3528 = vmatmul.mubr.f32.gmra.mrb[0].mxu0 %v2909
      %v3529 = vpop.f32.mrb[0].mxu0
      %v3530 = vadd.f32 %v2864, %v3529
      %v3531 = vpop.f32.mrb[0].mxu0
      %v3532 = vadd.f32 %v2864, %v3531
      %3533 = vdwg.mxu0
      %3534 = vmatprep.subr.mxu0 %v2429
      %3535 = vmatpush1.msra.mxu0 %v1885
      %3536 = vmatprep.subr.mxu0 %v2565
      %3537 = vmatpush1.msra.mxu0 %v2021
      %3538 = vmatprep.subr.mxu0 %v2701
      %3539 = vmatpush1.msra.mxu0 %v2157
      %3540 = vmatprep.subr.mxu0 %v2837
      %3541 = vmatpush1.msra.mxu0 %v2293
      %3542 = vmatprep.subr.mxu0 0.0
      %3543 = vmatpush1.msra.mxu0 0.0
      %3544 = vmatprep.subr.mxu0 0.0
      %3545 = vmatpush1.msra.mxu0 0.0
      %3546 = vmatprep.subr.mxu0 0.0
      %3547 = vmatpush1.msra.mxu0 0.0
      %3548 = vmatprep.subr.mxu0 0.0
      %3549 = vmatpush1.msra.mxu0 0.0
      %3550 = vmatprep.subr.mxu0 0.0
      %3551 = vmatpush1.msra.mxu0 0.0
      %3552 = vmatprep.subr.mxu0 0.0
      %3553 = vmatpush1.msra.mxu0 0.0
      %3554 = vmatprep.subr.mxu0 0.0
      %3555 = vmatpush1.msra.mxu0 0.0
      %3556 = vmatprep.subr.mxu0 0.0
      %3557 = vmatpush1.msra.mxu0 0.0
      %3558 = vmatprep.subr.mxu0 0.0
      %3559 = vmatpush1.msra.mxu0 0.0
      %3560 = vmatprep.subr.mxu0 0.0
      %3561 = vmatpush1.msra.mxu0 0.0
      %3562 = vmatprep.subr.mxu0 0.0
      %3563 = vmatpush1.msra.mxu0 0.0
      %3564 = vmatprep.subr.mxu0 0.0
      %3565 = vmatpush1.msra.mxu0 0.0
      %3566 = vmatprep.subr.mxu0 0.0
      %3567 = vmatpush1.msra.mxu0 0.0
      %3568 = vmatprep.subr.mxu0 0.0
      %3569 = vmatpush1.msra.mxu0 0.0
      %3570 = vmatprep.subr.mxu0 0.0
      %3571 = vmatpush1.msra.mxu0 0.0
      %3572 = vmatprep.subr.mxu0 0.0
      %3573 = vmatpush1.msra.mxu0 0.0
      %3574 = vmatprep.subr.mxu0 0.0
      %3575 = vmatpush1.msra.mxu0 0.0
      %3576 = vmatprep.subr.mxu0 0.0
      %3577 = vmatpush1.msra.mxu0 0.0
      %3578 = vmatprep.subr.mxu0 0.0
      %3579 = vmatpush1.msra.mxu0 0.0
      %3580 = vmatprep.subr.mxu0 0.0
      %3581 = vmatpush1.msra.mxu0 0.0
      %3582 = vmatprep.subr.mxu0 0.0
      %3583 = vmatpush1.msra.mxu0 0.0
      %3584 = vmatprep.subr.mxu0 0.0
      %3585 = vmatpush1.msra.mxu0 0.0
      %3586 = vmatprep.subr.mxu0 0.0
      %3587 = vmatpush1.msra.mxu0 0.0
      %3588 = vmatprep.subr.mxu0 0.0
      %3589 = vmatpush1.msra.mxu0 0.0
      %3590 = vmatprep.subr.mxu0 0.0
      %3591 = vmatpush1.msra.mxu0 0.0
      %3592 = vmatprep.subr.mxu0 0.0
      %3593 = vmatpush1.msra.mxu0 0.0
      %3594 = vmatprep.subr.mxu0 0.0
      %3595 = vmatpush1.msra.mxu0 0.0
      %3596 = vmatprep.subr.mxu0 0.0
      %3597 = vmatpush1.msra.mxu0 0.0
      %3598 = vmatprep.mubr.f32.mxu0 0.0
      %3599 = vmatmul.mubr.f32.gmra.mrb[0].mxu0 %v2900
      %v3600 = vpop.f32.mrb[0].mxu0
      %v3601 = vadd.f32 %v2849, %v3600
      %v3602 = vpop.f32.mrb[0].mxu0
      %v3603 = vadd.f32 %v2849, %v3602
      %3604 = vmatprep.mubr.f32.mxu0 0.0
      %3605 = vmatmul.mubr.f32.gmra.mrb[0].mxu0 %v2903
      %v3606 = vpop.f32.mrb[0].mxu0
      %v3607 = vadd.f32 %v2854, %v3606
      %v3608 = vpop.f32.mrb[0].mxu0
      %v3609 = vadd.f32 %v2854, %v3608
      %3610 = vmatprep.mubr.f32.mxu0 0.0
      %3611 = vmatmul.mubr.f32.gmra.mrb[0].mxu0 %v2906
      %v3612 = vpop.f32.mrb[0].mxu0
      %v3613 = vadd.f32 %v2859, %v3612
      %v3614 = vpop.f32.mrb[0].mxu0
      %v3615 = vadd.f32 %v2859, %v3614
      %3616 = vmatprep.mubr.f32.mxu0 0.0
      %3617 = vmatmul.mubr.f32.gmra.mrb[0].mxu0 %v2909
      %v3618 = vpop.f32.mrb[0].mxu0
      %v3619 = vadd.f32 %v2864, %v3618
      %v3620 = vpop.f32.mrb[0].mxu0
      %v3621 = vadd.f32 %v2864, %v3620
      %3622 = vdwg.mxu0
      %v3623 = vmax.f32 %v2978, 0.0
      %v3624 = vmax.f32 %v2980, 0.0
      %v3625 = vmax.f32 %v3067, 0.0
      %v3626 = vmax.f32 %v3069, 0.0
      %v3627 = vmax.f32 %v3156, 0.0
      %v3628 = vmax.f32 %v3158, 0.0
      %v3629 = vmax.f32 %v3245, 0.0
      %v3630 = vmax.f32 %v3247, 0.0
      %v3631 = vmax.f32 %v3334, 0.0
      %v3632 = vmax.f32 %v3336, 0.0
      %v3633 = vmax.f32 %v3423, 0.0
      %v3634 = vmax.f32 %v3425, 0.0
      %v3635 = vmax.f32 %v3512, 0.0
      %v3636 = vmax.f32 %v3514, 0.0
      %v3637 = vmax.f32 %v3601, 0.0
      %v3638 = vmax.f32 %v3603, 0.0
      %v3639 = vmax.f32 %v2984, 0.0
      %v3640 = vmax.f32 %v2986, 0.0
      %v3641 = vmax.f32 %v3073, 0.0
      %v3642 = vmax.f32 %v3075, 0.0
      %v3643 = vmax.f32 %v3162, 0.0
      %v3644 = vmax.f32 %v3164, 0.0
      %v3645 = vmax.f32 %v3251, 0.0
      %v3646 = vmax.f32 %v3253, 0.0
      %v3647 = vmax.f32 %v3340, 0.0
      %v3648 = vmax.f32 %v3342, 0.0
      %v3649 = vmax.f32 %v3429, 0.0
      %v3650 = vmax.f32 %v3431, 0.0
      %v3651 = vmax.f32 %v3518, 0.0
      %v3652 = vmax.f32 %v3520, 0.0
      %v3653 = vmax.f32 %v3607, 0.0
      %v3654 = vmax.f32 %v3609, 0.0
      %v3655 = vmax.f32 %v2990, 0.0
      %v3656 = vmax.f32 %v2992, 0.0
      %v3657 = vmax.f32 %v3079, 0.0
      %v3658 = vmax.f32 %v3081, 0.0
      %v3659 = vmax.f32 %v3168, 0.0
      %v3660 = vmax.f32 %v3170, 0.0
      %v3661 = vmax.f32 %v3257, 0.0
      %v3662 = vmax.f32 %v3259, 0.0
      %v3663 = vmax.f32 %v3346, 0.0
      %v3664 = vmax.f32 %v3348, 0.0
      %v3665 = vmax.f32 %v3435, 0.0
      %v3666 = vmax.f32 %v3437, 0.0
      %v3667 = vmax.f32 %v3524, 0.0
      %v3668 = vmax.f32 %v3526, 0.0
      %v3669 = vmax.f32 %v3613, 0.0
      %v3670 = vmax.f32 %v3615, 0.0
      %v3671 = vmax.f32 %v2996, 0.0
      %v3672 = vmax.f32 %v2998, 0.0
      %v3673 = vmax.f32 %v3085, 0.0
      %v3674 = vmax.f32 %v3087, 0.0
      %v3675 = vmax.f32 %v3174, 0.0
      %v3676 = vmax.f32 %v3176, 0.0
      %v3677 = vmax.f32 %v3263, 0.0
      %v3678 = vmax.f32 %v3265, 0.0
      %v3679 = vmax.f32 %v3352, 0.0
      %v3680 = vmax.f32 %v3354, 0.0
      %v3681 = vmax.f32 %v3441, 0.0
      %v3682 = vmax.f32 %v3443, 0.0
      %v3683 = vmax.f32 %v3530, 0.0
      %v3684 = vmax.f32 %v3532, 0.0
      %v3685 = vmax.f32 %v3619, 0.0
      %v3686 = vmax.f32 %v3621, 0.0
      %v3687 = vld [vmem:[%s8] sm:$0xff]
      %v3688 = vld [vmem:[%s8 + $0x8] sm:$0xff]
      %v3689 = vld [vmem:[%s8 + $0x10] sm:$0xff]
      %v3690 = vld [vmem:[%s8 + $0x18] sm:$0xff]
      %v3691 = vld [vmem:[%s9] sm:$0xff]
      %v3692 = vld [vmem:[%s9 + $0x8] sm:$0xff]
      %v3693 = vld [vmem:[%s9 + $0x10] sm:$0xff]
      %v3694 = vld [vmem:[%s9 + $0x18] sm:$0xff]
      %3696 = vset.pattern.permute.xlu0 0
      %3697 = vperm.xlu0 %3696, %v3691
      %v3698 = vpop.permute.xlu0 %3697
      %3701 = vset.pattern.permute.xlu0 0
      %3702 = vperm.xlu0 %3701, %v3692
      %v3703 = vpop.permute.xlu0 %3702
      %3706 = vset.pattern.permute.xlu0 0
      %3707 = vperm.xlu0 %3706, %v3693
      %v3708 = vpop.permute.xlu0 %3707
      %3711 = vset.pattern.permute.xlu0 0
      %3712 = vperm.xlu0 %3711, %v3694
      %v3713 = vpop.permute.xlu0 %3712
      %3715 = vxpose.xlu0.b32.start [1/16] %v3687, 128
      %3716 = vxpose.xlu0.b32.cont [2/16] %v3688, 128
      %3717 = vxpose.xlu0.b32.cont [3/16] %v3689, 128
      %3718 = vxpose.xlu0.b32.cont [4/16] %v3690, 128
      %3719 = vxpose.xlu0.b32.cont [5/16] 0.0, 128
      %3720 = vxpose.xlu0.b32.cont [6/16] 0.0, 128
      %3721 = vxpose.xlu0.b32.cont [7/16] 0.0, 128
      %3722 = vxpose.xlu0.b32.cont [8/16] 0.0, 128
      %3723 = vxpose.xlu0.b32.cont [9/16] 0.0, 128
      %3724 = vxpose.xlu0.b32.cont [10/16] 0.0, 128
      %3725 = vxpose.xlu0.b32.cont [11/16] 0.0, 128
      %3726 = vxpose.xlu0.b32.cont [12/16] 0.0, 128
      %3727 = vxpose.xlu0.b32.cont [13/16] 0.0, 128
      %3728 = vxpose.xlu0.b32.cont [14/16] 0.0, 128
      %3729 = vxpose.xlu0.b32.cont [15/16] 0.0, 128
      %3730 = vxpose.xlu0.b32.end [16/16] 0.0, 128
      %v3731 = vpop.trf.xlu0
      %v3732 = vpop.trf.xlu0
      %v3733 = vpop.trf.xlu0
      %v3734 = vpop.trf.xlu0
      %v3735 = vpop.trf.xlu0
      %v3736 = vpop.trf.xlu0
      %v3737 = vpop.trf.xlu0
      %v3738 = vpop.trf.xlu0
      %v3739 = vpop.trf.xlu0
      %v3740 = vpop.trf.xlu0
      %v3741 = vpop.trf.xlu0
      %v3742 = vpop.trf.xlu0
      %v3743 = vpop.trf.xlu0
      %v3744 = vpop.trf.xlu0
      %v3745 = vpop.trf.xlu0
      %v3746 = vpop.trf.xlu0
      %v3748 = vsel %vm2898, %v3731, 0
      %v3751 = vsel %vm2898, %v3732, 0
      %v3754 = vsel %vm2898, %v3733, 0
      %v3757 = vsel %vm2898, %v3734, 0
      %3759 = vmatprep.subr.mxu0 %v3624
      %3760 = vmatpush1.msra.mxu0 %v3623
      %3761 = vmatprep.subr.mxu0 %v3640
      %3762 = vmatpush1.msra.mxu0 %v3639
      %3763 = vmatprep.subr.mxu0 %v3656
      %3764 = vmatpush1.msra.mxu0 %v3655
      %3765 = vmatprep.subr.mxu0 %v3672
      %3766 = vmatpush1.msra.mxu0 %v3671
      %3767 = vmatprep.subr.mxu0 0.0
      %3768 = vmatpush1.msra.mxu0 0.0
      %3769 = vmatprep.subr.mxu0 0.0
      %3770 = vmatpush1.msra.mxu0 0.0
      %3771 = vmatprep.subr.mxu0 0.0
      %3772 = vmatpush1.msra.mxu0 0.0
      %3773 = vmatprep.subr.mxu0 0.0
      %3774 = vmatpush1.msra.mxu0 0.0
      %3775 = vmatprep.subr.mxu0 0.0
      %3776 = vmatpush1.msra.mxu0 0.0
      %3777 = vmatprep.subr.mxu0 0.0
      %3778 = vmatpush1.msra.mxu0 0.0
      %3779 = vmatprep.subr.mxu0 0.0
      %3780 = vmatpush1.msra.mxu0 0.0
      %3781 = vmatprep.subr.mxu0 0.0
      %3782 = vmatpush1.msra.mxu0 0.0
      %3783 = vmatprep.subr.mxu0 0.0
      %3784 = vmatpush1.msra.mxu0 0.0
      %3785 = vmatprep.subr.mxu0 0.0
      %3786 = vmatpush1.msra.mxu0 0.0
      %3787 = vmatprep.subr.mxu0 0.0
      %3788 = vmatpush1.msra.mxu0 0.0
      %3789 = vmatprep.subr.mxu0 0.0
      %3790 = vmatpush1.msra.mxu0 0.0
      %3791 = vmatprep.subr.mxu0 0.0
      %3792 = vmatpush1.msra.mxu0 0.0
      %3793 = vmatprep.subr.mxu0 0.0
      %3794 = vmatpush1.msra.mxu0 0.0
      %3795 = vmatprep.subr.mxu0 0.0
      %3796 = vmatpush1.msra.mxu0 0.0
      %3797 = vmatprep.subr.mxu0 0.0
      %3798 = vmatpush1.msra.mxu0 0.0
      %3799 = vmatprep.subr.mxu0 0.0
      %3800 = vmatpush1.msra.mxu0 0.0
      %3801 = vmatprep.subr.mxu0 0.0
      %3802 = vmatpush1.msra.mxu0 0.0
      %3803 = vmatprep.subr.mxu0 0.0
      %3804 = vmatpush1.msra.mxu0 0.0
      %3805 = vmatprep.subr.mxu0 0.0
      %3806 = vmatpush1.msra.mxu0 0.0
      %3807 = vmatprep.subr.mxu0 0.0
      %3808 = vmatpush1.msra.mxu0 0.0
      %3809 = vmatprep.subr.mxu0 0.0
      %3810 = vmatpush1.msra.mxu0 0.0
      %3811 = vmatprep.subr.mxu0 0.0
      %3812 = vmatpush1.msra.mxu0 0.0
      %3813 = vmatprep.subr.mxu0 0.0
      %3814 = vmatpush1.msra.mxu0 0.0
      %3815 = vmatprep.subr.mxu0 0.0
      %3816 = vmatpush1.msra.mxu0 0.0
      %3817 = vmatprep.subr.mxu0 0.0
      %3818 = vmatpush1.msra.mxu0 0.0
      %3819 = vmatprep.subr.mxu0 0.0
      %3820 = vmatpush1.msra.mxu0 0.0
      %3821 = vmatprep.subr.mxu0 0.0
      %3822 = vmatpush1.msra.mxu0 0.0
      %3823 = vmatprep.mubr.f32.mxu0 0.0
      %3824 = vmatmul.mubr.f32.gmra.mrb[0].mxu0 %v3748
      %v3825 = vpop.f32.mrb[0].mxu0
      %v3826 = vadd.f32 %v3698, %v3825
      %v3827 = vpop.f32.mrb[0].mxu0
      %v3828 = vadd.f32 %v3698, %v3827
      %3829 = vmatprep.mubr.f32.mxu0 0.0
      %3830 = vmatmul.mubr.f32.gmra.mrb[0].mxu0 %v3751
      %v3831 = vpop.f32.mrb[0].mxu0
      %v3832 = vadd.f32 %v3703, %v3831
      %v3833 = vpop.f32.mrb[0].mxu0
      %v3834 = vadd.f32 %v3703, %v3833
      %3835 = vmatprep.mubr.f32.mxu0 0.0
      %3836 = vmatmul.mubr.f32.gmra.mrb[0].mxu0 %v3754
      %v3837 = vpop.f32.mrb[0].mxu0
      %v3838 = vadd.f32 %v3708, %v3837
      %v3839 = vpop.f32.mrb[0].mxu0
      %v3840 = vadd.f32 %v3708, %v3839
      %3841 = vmatprep.mubr.f32.mxu0 0.0
      %3842 = vmatmul.mubr.f32.gmra.mrb[0].mxu0 %v3757
      %v3843 = vpop.f32.mrb[0].mxu0
      %v3844 = vadd.f32 %v3713, %v3843
      %v3845 = vpop.f32.mrb[0].mxu0
      %v3846 = vadd.f32 %v3713, %v3845
      %3847 = vdwg.mxu0
      %3848 = vmatprep.subr.mxu0 %v3626
      %3849 = vmatpush1.msra.mxu0 %v3625
      %3850 = vmatprep.subr.mxu0 %v3642
      %3851 = vmatpush1.msra.mxu0 %v3641
      %3852 = vmatprep.subr.mxu0 %v3658
      %3853 = vmatpush1.msra.mxu0 %v3657
      %3854 = vmatprep.subr.mxu0 %v3674
      %3855 = vmatpush1.msra.mxu0 %v3673
      %3856 = vmatprep.subr.mxu0 0.0
      %3857 = vmatpush1.msra.mxu0 0.0
      %3858 = vmatprep.subr.mxu0 0.0
      %3859 = vmatpush1.msra.mxu0 0.0
      %3860 = vmatprep.subr.mxu0 0.0
      %3861 = vmatpush1.msra.mxu0 0.0
      %3862 = vmatprep.subr.mxu0 0.0
      %3863 = vmatpush1.msra.mxu0 0.0
      %3864 = vmatprep.subr.mxu0 0.0
      %3865 = vmatpush1.msra.mxu0 0.0
      %3866 = vmatprep.subr.mxu0 0.0
      %3867 = vmatpush1.msra.mxu0 0.0
      %3868 = vmatprep.subr.mxu0 0.0
      %3869 = vmatpush1.msra.mxu0 0.0
      %3870 = vmatprep.subr.mxu0 0.0
      %3871 = vmatpush1.msra.mxu0 0.0
      %3872 = vmatprep.subr.mxu0 0.0
      %3873 = vmatpush1.msra.mxu0 0.0
      %3874 = vmatprep.subr.mxu0 0.0
      %3875 = vmatpush1.msra.mxu0 0.0
      %3876 = vmatprep.subr.mxu0 0.0
      %3877 = vmatpush1.msra.mxu0 0.0
      %3878 = vmatprep.subr.mxu0 0.0
      %3879 = vmatpush1.msra.mxu0 0.0
      %3880 = vmatprep.subr.mxu0 0.0
      %3881 = vmatpush1.msra.mxu0 0.0
      %3882 = vmatprep.subr.mxu0 0.0
      %3883 = vmatpush1.msra.mxu0 0.0
      %3884 = vmatprep.subr.mxu0 0.0
      %3885 = vmatpush1.msra.mxu0 0.0
      %3886 = vmatprep.subr.mxu0 0.0
      %3887 = vmatpush1.msra.mxu0 0.0
      %3888 = vmatprep.subr.mxu0 0.0
      %3889 = vmatpush1.msra.mxu0 0.0
      %3890 = vmatprep.subr.mxu0 0.0
      %3891 = vmatpush1.msra.mxu0 0.0
      %3892 = vmatprep.subr.mxu0 0.0
      %3893 = vmatpush1.msra.mxu0 0.0
      %3894 = vmatprep.subr.mxu0 0.0
      %3895 = vmatpush1.msra.mxu0 0.0
      %3896 = vmatprep.subr.mxu0 0.0
      %3897 = vmatpush1.msra.mxu0 0.0
      %3898 = vmatprep.subr.mxu0 0.0
      %3899 = vmatpush1.msra.mxu0 0.0
      %3900 = vmatprep.subr.mxu0 0.0
      %3901 = vmatpush1.msra.mxu0 0.0
      %3902 = vmatprep.subr.mxu0 0.0
      %3903 = vmatpush1.msra.mxu0 0.0
      %3904 = vmatprep.subr.mxu0 0.0
      %3905 = vmatpush1.msra.mxu0 0.0
      %3906 = vmatprep.subr.mxu0 0.0
      %3907 = vmatpush1.msra.mxu0 0.0
      %3908 = vmatprep.subr.mxu0 0.0
      %3909 = vmatpush1.msra.mxu0 0.0
      %3910 = vmatprep.subr.mxu0 0.0
      %3911 = vmatpush1.msra.mxu0 0.0
      %3912 = vmatprep.mubr.f32.mxu0 0.0
      %3913 = vmatmul.mubr.f32.gmra.mrb[0].mxu0 %v3748
      %v3914 = vpop.f32.mrb[0].mxu0
      %v3915 = vadd.f32 %v3698, %v3914
      %v3916 = vpop.f32.mrb[0].mxu0
      %v3917 = vadd.f32 %v3698, %v3916
      %3918 = vmatprep.mubr.f32.mxu0 0.0
      %3919 = vmatmul.mubr.f32.gmra.mrb[0].mxu0 %v3751
      %v3920 = vpop.f32.mrb[0].mxu0
      %v3921 = vadd.f32 %v3703, %v3920
      %v3922 = vpop.f32.mrb[0].mxu0
      %v3923 = vadd.f32 %v3703, %v3922
      %3924 = vmatprep.mubr.f32.mxu0 0.0
      %3925 = vmatmul.mubr.f32.gmra.mrb[0].mxu0 %v3754
      %v3926 = vpop.f32.mrb[0].mxu0
      %v3927 = vadd.f32 %v3708, %v3926
      %v3928 = vpop.f32.mrb[0].mxu0
      %v3929 = vadd.f32 %v3708, %v3928
      %3930 = vmatprep.mubr.f32.mxu0 0.0
      %3931 = vmatmul.mubr.f32.gmra.mrb[0].mxu0 %v3757
      %v3932 = vpop.f32.mrb[0].mxu0
      %v3933 = vadd.f32 %v3713, %v3932
      %v3934 = vpop.f32.mrb[0].mxu0
      %v3935 = vadd.f32 %v3713, %v3934
      %3936 = vdwg.mxu0
      %3937 = vmatprep.subr.mxu0 %v3628
      %3938 = vmatpush1.msra.mxu0 %v3627
      %3939 = vmatprep.subr.mxu0 %v3644
      %3940 = vmatpush1.msra.mxu0 %v3643
      %3941 = vmatprep.subr.mxu0 %v3660
      %3942 = vmatpush1.msra.mxu0 %v3659
      %3943 = vmatprep.subr.mxu0 %v3676
      %3944 = vmatpush1.msra.mxu0 %v3675
      %3945 = vmatprep.subr.mxu0 0.0
      %3946 = vmatpush1.msra.mxu0 0.0
      %3947 = vmatprep.subr.mxu0 0.0
      %3948 = vmatpush1.msra.mxu0 0.0
      %3949 = vmatprep.subr.mxu0 0.0
      %3950 = vmatpush1.msra.mxu0 0.0
      %3951 = vmatprep.subr.mxu0 0.0
      %3952 = vmatpush1.msra.mxu0 0.0
      %3953 = vmatprep.subr.mxu0 0.0
      %3954 = vmatpush1.msra.mxu0 0.0
      %3955 = vmatprep.subr.mxu0 0.0
      %3956 = vmatpush1.msra.mxu0 0.0
      %3957 = vmatprep.subr.mxu0 0.0
      %3958 = vmatpush1.msra.mxu0 0.0
      %3959 = vmatprep.subr.mxu0 0.0
      %3960 = vmatpush1.msra.mxu0 0.0
      %3961 = vmatprep.subr.mxu0 0.0
      %3962 = vmatpush1.msra.mxu0 0.0
      %3963 = vmatprep.subr.mxu0 0.0
      %3964 = vmatpush1.msra.mxu0 0.0
      %3965 = vmatprep.subr.mxu0 0.0
      %3966 = vmatpush1.msra.mxu0 0.0
      %3967 = vmatprep.subr.mxu0 0.0
      %3968 = vmatpush1.msra.mxu0 0.0
      %3969 = vmatprep.subr.mxu0 0.0
      %3970 = vmatpush1.msra.mxu0 0.0
      %3971 = vmatprep.subr.mxu0 0.0
      %3972 = vmatpush1.msra.mxu0 0.0
      %3973 = vmatprep.subr.mxu0 0.0
      %3974 = vmatpush1.msra.mxu0 0.0
      %3975 = vmatprep.subr.mxu0 0.0
      %3976 = vmatpush1.msra.mxu0 0.0
      %3977 = vmatprep.subr.mxu0 0.0
      %3978 = vmatpush1.msra.mxu0 0.0
      %3979 = vmatprep.subr.mxu0 0.0
      %3980 = vmatpush1.msra.mxu0 0.0
      %3981 = vmatprep.subr.mxu0 0.0
      %3982 = vmatpush1.msra.mxu0 0.0
      %3983 = vmatprep.subr.mxu0 0.0
      %3984 = vmatpush1.msra.mxu0 0.0
      %3985 = vmatprep.subr.mxu0 0.0
      %3986 = vmatpush1.msra.mxu0 0.0
      %3987 = vmatprep.subr.mxu0 0.0
      %3988 = vmatpush1.msra.mxu0 0.0
      %3989 = vmatprep.subr.mxu0 0.0
      %3990 = vmatpush1.msra.mxu0 0.0
      %3991 = vmatprep.subr.mxu0 0.0
      %3992 = vmatpush1.msra.mxu0 0.0
      %3993 = vmatprep.subr.mxu0 0.0
      %3994 = vmatpush1.msra.mxu0 0.0
      %3995 = vmatprep.subr.mxu0 0.0
      %3996 = vmatpush1.msra.mxu0 0.0
      %3997 = vmatprep.subr.mxu0 0.0
      %3998 = vmatpush1.msra.mxu0 0.0
      %3999 = vmatprep.subr.mxu0 0.0
      %4000 = vmatpush1.msra.mxu0 0.0
      %4001 = vmatprep.mubr.f32.mxu0 0.0
      %4002 = vmatmul.mubr.f32.gmra.mrb[0].mxu0 %v3748
      %v4003 = vpop.f32.mrb[0].mxu0
      %v4004 = vadd.f32 %v3698, %v4003
      %v4005 = vpop.f32.mrb[0].mxu0
      %v4006 = vadd.f32 %v3698, %v4005
      %4007 = vmatprep.mubr.f32.mxu0 0.0
      %4008 = vmatmul.mubr.f32.gmra.mrb[0].mxu0 %v3751
      %v4009 = vpop.f32.mrb[0].mxu0
      %v4010 = vadd.f32 %v3703, %v4009
      %v4011 = vpop.f32.mrb[0].mxu0
      %v4012 = vadd.f32 %v3703, %v4011
      %4013 = vmatprep.mubr.f32.mxu0 0.0
      %4014 = vmatmul.mubr.f32.gmra.mrb[0].mxu0 %v3754
      %v4015 = vpop.f32.mrb[0].mxu0
      %v4016 = vadd.f32 %v3708, %v4015
      %v4017 = vpop.f32.mrb[0].mxu0
      %v4018 = vadd.f32 %v3708, %v4017
      %4019 = vmatprep.mubr.f32.mxu0 0.0
      %4020 = vmatmul.mubr.f32.gmra.mrb[0].mxu0 %v3757
      %v4021 = vpop.f32.mrb[0].mxu0
      %v4022 = vadd.f32 %v3713, %v4021
      %v4023 = vpop.f32.mrb[0].mxu0
      %v4024 = vadd.f32 %v3713, %v4023
      %4025 = vdwg.mxu0
      %4026 = vmatprep.subr.mxu0 %v3630
      %4027 = vmatpush1.msra.mxu0 %v3629
      %4028 = vmatprep.subr.mxu0 %v3646
      %4029 = vmatpush1.msra.mxu0 %v3645
      %4030 = vmatprep.subr.mxu0 %v3662
      %4031 = vmatpush1.msra.mxu0 %v3661
      %4032 = vmatprep.subr.mxu0 %v3678
      %4033 = vmatpush1.msra.mxu0 %v3677
      %4034 = vmatprep.subr.mxu0 0.0
      %4035 = vmatpush1.msra.mxu0 0.0
      %4036 = vmatprep.subr.mxu0 0.0
      %4037 = vmatpush1.msra.mxu0 0.0
      %4038 = vmatprep.subr.mxu0 0.0
      %4039 = vmatpush1.msra.mxu0 0.0
      %4040 = vmatprep.subr.mxu0 0.0
      %4041 = vmatpush1.msra.mxu0 0.0
      %4042 = vmatprep.subr.mxu0 0.0
      %4043 = vmatpush1.msra.mxu0 0.0
      %4044 = vmatprep.subr.mxu0 0.0
      %4045 = vmatpush1.msra.mxu0 0.0
      %4046 = vmatprep.subr.mxu0 0.0
      %4047 = vmatpush1.msra.mxu0 0.0
      %4048 = vmatprep.subr.mxu0 0.0
      %4049 = vmatpush1.msra.mxu0 0.0
      %4050 = vmatprep.subr.mxu0 0.0
      %4051 = vmatpush1.msra.mxu0 0.0
      %4052 = vmatprep.subr.mxu0 0.0
      %4053 = vmatpush1.msra.mxu0 0.0
      %4054 = vmatprep.subr.mxu0 0.0
      %4055 = vmatpush1.msra.mxu0 0.0
      %4056 = vmatprep.subr.mxu0 0.0
      %4057 = vmatpush1.msra.mxu0 0.0
      %4058 = vmatprep.subr.mxu0 0.0
      %4059 = vmatpush1.msra.mxu0 0.0
      %4060 = vmatprep.subr.mxu0 0.0
      %4061 = vmatpush1.msra.mxu0 0.0
      %4062 = vmatprep.subr.mxu0 0.0
      %4063 = vmatpush1.msra.mxu0 0.0
      %4064 = vmatprep.subr.mxu0 0.0
      %4065 = vmatpush1.msra.mxu0 0.0
      %4066 = vmatprep.subr.mxu0 0.0
      %4067 = vmatpush1.msra.mxu0 0.0
      %4068 = vmatprep.subr.mxu0 0.0
      %4069 = vmatpush1.msra.mxu0 0.0
      %4070 = vmatprep.subr.mxu0 0.0
      %4071 = vmatpush1.msra.mxu0 0.0
      %4072 = vmatprep.subr.mxu0 0.0
      %4073 = vmatpush1.msra.mxu0 0.0
      %4074 = vmatprep.subr.mxu0 0.0
      %4075 = vmatpush1.msra.mxu0 0.0
      %4076 = vmatprep.subr.mxu0 0.0
      %4077 = vmatpush1.msra.mxu0 0.0
      %4078 = vmatprep.subr.mxu0 0.0
      %4079 = vmatpush1.msra.mxu0 0.0
      %4080 = vmatprep.subr.mxu0 0.0
      %4081 = vmatpush1.msra.mxu0 0.0
      %4082 = vmatprep.subr.mxu0 0.0
      %4083 = vmatpush1.msra.mxu0 0.0
      %4084 = vmatprep.subr.mxu0 0.0
      %4085 = vmatpush1.msra.mxu0 0.0
      %4086 = vmatprep.subr.mxu0 0.0
      %4087 = vmatpush1.msra.mxu0 0.0
      %4088 = vmatprep.subr.mxu0 0.0
      %4089 = vmatpush1.msra.mxu0 0.0
      %4090 = vmatprep.mubr.f32.mxu0 0.0
      %4091 = vmatmul.mubr.f32.gmra.mrb[0].mxu0 %v3748
      %v4092 = vpop.f32.mrb[0].mxu0
      %v4093 = vadd.f32 %v3698, %v4092
      %v4094 = vpop.f32.mrb[0].mxu0
      %v4095 = vadd.f32 %v3698, %v4094
      %4096 = vmatprep.mubr.f32.mxu0 0.0
      %4097 = vmatmul.mubr.f32.gmra.mrb[0].mxu0 %v3751
      %v4098 = vpop.f32.mrb[0].mxu0
      %v4099 = vadd.f32 %v3703, %v4098
      %v4100 = vpop.f32.mrb[0].mxu0
      %v4101 = vadd.f32 %v3703, %v4100
      %4102 = vmatprep.mubr.f32.mxu0 0.0
      %4103 = vmatmul.mubr.f32.gmra.mrb[0].mxu0 %v3754
      %v4104 = vpop.f32.mrb[0].mxu0
      %v4105 = vadd.f32 %v3708, %v4104
      %v4106 = vpop.f32.mrb[0].mxu0
      %v4107 = vadd.f32 %v3708, %v4106
      %4108 = vmatprep.mubr.f32.mxu0 0.0
      %4109 = vmatmul.mubr.f32.gmra.mrb[0].mxu0 %v3757
      %v4110 = vpop.f32.mrb[0].mxu0
      %v4111 = vadd.f32 %v3713, %v4110
      %v4112 = vpop.f32.mrb[0].mxu0
      %v4113 = vadd.f32 %v3713, %v4112
      %4114 = vdwg.mxu0
      %4115 = vmatprep.subr.mxu0 %v3632
      %4116 = vmatpush1.msra.mxu0 %v3631
      %4117 = vmatprep.subr.mxu0 %v3648
      %4118 = vmatpush1.msra.mxu0 %v3647
      %4119 = vmatprep.subr.mxu0 %v3664
      %4120 = vmatpush1.msra.mxu0 %v3663
      %4121 = vmatprep.subr.mxu0 %v3680
      %4122 = vmatpush1.msra.mxu0 %v3679
      %4123 = vmatprep.subr.mxu0 0.0
      %4124 = vmatpush1.msra.mxu0 0.0
      %4125 = vmatprep.subr.mxu0 0.0
      %4126 = vmatpush1.msra.mxu0 0.0
      %4127 = vmatprep.subr.mxu0 0.0
      %4128 = vmatpush1.msra.mxu0 0.0
      %4129 = vmatprep.subr.mxu0 0.0
      %4130 = vmatpush1.msra.mxu0 0.0
      %4131 = vmatprep.subr.mxu0 0.0
      %4132 = vmatpush1.msra.mxu0 0.0
      %4133 = vmatprep.subr.mxu0 0.0
      %4134 = vmatpush1.msra.mxu0 0.0
      %4135 = vmatprep.subr.mxu0 0.0
      %4136 = vmatpush1.msra.mxu0 0.0
      %4137 = vmatprep.subr.mxu0 0.0
      %4138 = vmatpush1.msra.mxu0 0.0
      %4139 = vmatprep.subr.mxu0 0.0
      %4140 = vmatpush1.msra.mxu0 0.0
      %4141 = vmatprep.subr.mxu0 0.0
      %4142 = vmatpush1.msra.mxu0 0.0
      %4143 = vmatprep.subr.mxu0 0.0
      %4144 = vmatpush1.msra.mxu0 0.0
      %4145 = vmatprep.subr.mxu0 0.0
      %4146 = vmatpush1.msra.mxu0 0.0
      %4147 = vmatprep.subr.mxu0 0.0
      %4148 = vmatpush1.msra.mxu0 0.0
      %4149 = vmatprep.subr.mxu0 0.0
      %4150 = vmatpush1.msra.mxu0 0.0
      %4151 = vmatprep.subr.mxu0 0.0
      %4152 = vmatpush1.msra.mxu0 0.0
      %4153 = vmatprep.subr.mxu0 0.0
      %4154 = vmatpush1.msra.mxu0 0.0
      %4155 = vmatprep.subr.mxu0 0.0
      %4156 = vmatpush1.msra.mxu0 0.0
      %4157 = vmatprep.subr.mxu0 0.0
      %4158 = vmatpush1.msra.mxu0 0.0
      %4159 = vmatprep.subr.mxu0 0.0
      %4160 = vmatpush1.msra.mxu0 0.0
      %4161 = vmatprep.subr.mxu0 0.0
      %4162 = vmatpush1.msra.mxu0 0.0
      %4163 = vmatprep.subr.mxu0 0.0
      %4164 = vmatpush1.msra.mxu0 0.0
      %4165 = vmatprep.subr.mxu0 0.0
      %4166 = vmatpush1.msra.mxu0 0.0
      %4167 = vmatprep.subr.mxu0 0.0
      %4168 = vmatpush1.msra.mxu0 0.0
      %4169 = vmatprep.subr.mxu0 0.0
      %4170 = vmatpush1.msra.mxu0 0.0
      %4171 = vmatprep.subr.mxu0 0.0
      %4172 = vmatpush1.msra.mxu0 0.0
      %4173 = vmatprep.subr.mxu0 0.0
      %4174 = vmatpush1.msra.mxu0 0.0
      %4175 = vmatprep.subr.mxu0 0.0
      %4176 = vmatpush1.msra.mxu0 0.0
      %4177 = vmatprep.subr.mxu0 0.0
      %4178 = vmatpush1.msra.mxu0 0.0
      %4179 = vmatprep.mubr.f32.mxu0 0.0
      %4180 = vmatmul.mubr.f32.gmra.mrb[0].mxu0 %v3748
      %v4181 = vpop.f32.mrb[0].mxu0
      %v4182 = vadd.f32 %v3698, %v4181
      %v4183 = vpop.f32.mrb[0].mxu0
      %v4184 = vadd.f32 %v3698, %v4183
      %4185 = vmatprep.mubr.f32.mxu0 0.0
      %4186 = vmatmul.mubr.f32.gmra.mrb[0].mxu0 %v3751
      %v4187 = vpop.f32.mrb[0].mxu0
      %v4188 = vadd.f32 %v3703, %v4187
      %v4189 = vpop.f32.mrb[0].mxu0
      %v4190 = vadd.f32 %v3703, %v4189
      %4191 = vmatprep.mubr.f32.mxu0 0.0
      %4192 = vmatmul.mubr.f32.gmra.mrb[0].mxu0 %v3754
      %v4193 = vpop.f32.mrb[0].mxu0
      %v4194 = vadd.f32 %v3708, %v4193
      %v4195 = vpop.f32.mrb[0].mxu0
      %v4196 = vadd.f32 %v3708, %v4195
      %4197 = vmatprep.mubr.f32.mxu0 0.0
      %4198 = vmatmul.mubr.f32.gmra.mrb[0].mxu0 %v3757
      %v4199 = vpop.f32.mrb[0].mxu0
      %v4200 = vadd.f32 %v3713, %v4199
      %v4201 = vpop.f32.mrb[0].mxu0
      %v4202 = vadd.f32 %v3713, %v4201
      %4203 = vdwg.mxu0
      %4204 = vmatprep.subr.mxu0 %v3634
      %4205 = vmatpush1.msra.mxu0 %v3633
      %4206 = vmatprep.subr.mxu0 %v3650
      %4207 = vmatpush1.msra.mxu0 %v3649
      %4208 = vmatprep.subr.mxu0 %v3666
      %4209 = vmatpush1.msra.mxu0 %v3665
      %4210 = vmatprep.subr.mxu0 %v3682
      %4211 = vmatpush1.msra.mxu0 %v3681
      %4212 = vmatprep.subr.mxu0 0.0
      %4213 = vmatpush1.msra.mxu0 0.0
      %4214 = vmatprep.subr.mxu0 0.0
      %4215 = vmatpush1.msra.mxu0 0.0
      %4216 = vmatprep.subr.mxu0 0.0
      %4217 = vmatpush1.msra.mxu0 0.0
      %4218 = vmatprep.subr.mxu0 0.0
      %4219 = vmatpush1.msra.mxu0 0.0
      %4220 = vmatprep.subr.mxu0 0.0
      %4221 = vmatpush1.msra.mxu0 0.0
      %4222 = vmatprep.subr.mxu0 0.0
      %4223 = vmatpush1.msra.mxu0 0.0
      %4224 = vmatprep.subr.mxu0 0.0
      %4225 = vmatpush1.msra.mxu0 0.0
      %4226 = vmatprep.subr.mxu0 0.0
      %4227 = vmatpush1.msra.mxu0 0.0
      %4228 = vmatprep.subr.mxu0 0.0
      %4229 = vmatpush1.msra.mxu0 0.0
      %4230 = vmatprep.subr.mxu0 0.0
      %4231 = vmatpush1.msra.mxu0 0.0
      %4232 = vmatprep.subr.mxu0 0.0
      %4233 = vmatpush1.msra.mxu0 0.0
      %4234 = vmatprep.subr.mxu0 0.0
      %4235 = vmatpush1.msra.mxu0 0.0
      %4236 = vmatprep.subr.mxu0 0.0
      %4237 = vmatpush1.msra.mxu0 0.0
      %4238 = vmatprep.subr.mxu0 0.0
      %4239 = vmatpush1.msra.mxu0 0.0
      %4240 = vmatprep.subr.mxu0 0.0
      %4241 = vmatpush1.msra.mxu0 0.0
      %4242 = vmatprep.subr.mxu0 0.0
      %4243 = vmatpush1.msra.mxu0 0.0
      %4244 = vmatprep.subr.mxu0 0.0
      %4245 = vmatpush1.msra.mxu0 0.0
      %4246 = vmatprep.subr.mxu0 0.0
      %4247 = vmatpush1.msra.mxu0 0.0
      %4248 = vmatprep.subr.mxu0 0.0
      %4249 = vmatpush1.msra.mxu0 0.0
      %4250 = vmatprep.subr.mxu0 0.0
      %4251 = vmatpush1.msra.mxu0 0.0
      %4252 = vmatprep.subr.mxu0 0.0
      %4253 = vmatpush1.msra.mxu0 0.0
      %4254 = vmatprep.subr.mxu0 0.0
      %4255 = vmatpush1.msra.mxu0 0.0
      %4256 = vmatprep.subr.mxu0 0.0
      %4257 = vmatpush1.msra.mxu0 0.0
      %4258 = vmatprep.subr.mxu0 0.0
      %4259 = vmatpush1.msra.mxu0 0.0
      %4260 = vmatprep.subr.mxu0 0.0
      %4261 = vmatpush1.msra.mxu0 0.0
      %4262 = vmatprep.subr.mxu0 0.0
      %4263 = vmatpush1.msra.mxu0 0.0
      %4264 = vmatprep.subr.mxu0 0.0
      %4265 = vmatpush1.msra.mxu0 0.0
      %4266 = vmatprep.subr.mxu0 0.0
      %4267 = vmatpush1.msra.mxu0 0.0
      %4268 = vmatprep.mubr.f32.mxu0 0.0
      %4269 = vmatmul.mubr.f32.gmra.mrb[0].mxu0 %v3748
      %v4270 = vpop.f32.mrb[0].mxu0
      %v4271 = vadd.f32 %v3698, %v4270
      %v4272 = vpop.f32.mrb[0].mxu0
      %v4273 = vadd.f32 %v3698, %v4272
      %4274 = vmatprep.mubr.f32.mxu0 0.0
      %4275 = vmatmul.mubr.f32.gmra.mrb[0].mxu0 %v3751
      %v4276 = vpop.f32.mrb[0].mxu0
      %v4277 = vadd.f32 %v3703, %v4276
      %v4278 = vpop.f32.mrb[0].mxu0
      %v4279 = vadd.f32 %v3703, %v4278
      %4280 = vmatprep.mubr.f32.mxu0 0.0
      %4281 = vmatmul.mubr.f32.gmra.mrb[0].mxu0 %v3754
      %v4282 = vpop.f32.mrb[0].mxu0
      %v4283 = vadd.f32 %v3708, %v4282
      %v4284 = vpop.f32.mrb[0].mxu0
      %v4285 = vadd.f32 %v3708, %v4284
      %4286 = vmatprep.mubr.f32.mxu0 0.0
      %4287 = vmatmul.mubr.f32.gmra.mrb[0].mxu0 %v3757
      %v4288 = vpop.f32.mrb[0].mxu0
      %v4289 = vadd.f32 %v3713, %v4288
      %v4290 = vpop.f32.mrb[0].mxu0
      %v4291 = vadd.f32 %v3713, %v4290
      %4292 = vdwg.mxu0
      %4293 = vmatprep.subr.mxu0 %v3636
      %4294 = vmatpush1.msra.mxu0 %v3635
      %4295 = vmatprep.subr.mxu0 %v3652
      %4296 = vmatpush1.msra.mxu0 %v3651
      %4297 = vmatprep.subr.mxu0 %v3668
      %4298 = vmatpush1.msra.mxu0 %v3667
      %4299 = vmatprep.subr.mxu0 %v3684
      %4300 = vmatpush1.msra.mxu0 %v3683
      %4301 = vmatprep.subr.mxu0 0.0
      %4302 = vmatpush1.msra.mxu0 0.0
      %4303 = vmatprep.subr.mxu0 0.0
      %4304 = vmatpush1.msra.mxu0 0.0
      %4305 = vmatprep.subr.mxu0 0.0
      %4306 = vmatpush1.msra.mxu0 0.0
      %4307 = vmatprep.subr.mxu0 0.0
      %4308 = vmatpush1.msra.mxu0 0.0
      %4309 = vmatprep.subr.mxu0 0.0
      %4310 = vmatpush1.msra.mxu0 0.0
      %4311 = vmatprep.subr.mxu0 0.0
      %4312 = vmatpush1.msra.mxu0 0.0
      %4313 = vmatprep.subr.mxu0 0.0
      %4314 = vmatpush1.msra.mxu0 0.0
      %4315 = vmatprep.subr.mxu0 0.0
      %4316 = vmatpush1.msra.mxu0 0.0
      %4317 = vmatprep.subr.mxu0 0.0
      %4318 = vmatpush1.msra.mxu0 0.0
      %4319 = vmatprep.subr.mxu0 0.0
      %4320 = vmatpush1.msra.mxu0 0.0
      %4321 = vmatprep.subr.mxu0 0.0
      %4322 = vmatpush1.msra.mxu0 0.0
      %4323 = vmatprep.subr.mxu0 0.0
      %4324 = vmatpush1.msra.mxu0 0.0
      %4325 = vmatprep.subr.mxu0 0.0
      %4326 = vmatpush1.msra.mxu0 0.0
      %4327 = vmatprep.subr.mxu0 0.0
      %4328 = vmatpush1.msra.mxu0 0.0
      %4329 = vmatprep.subr.mxu0 0.0
      %4330 = vmatpush1.msra.mxu0 0.0
      %4331 = vmatprep.subr.mxu0 0.0
      %4332 = vmatpush1.msra.mxu0 0.0
      %4333 = vmatprep.subr.mxu0 0.0
      %4334 = vmatpush1.msra.mxu0 0.0
      %4335 = vmatprep.subr.mxu0 0.0
      %4336 = vmatpush1.msra.mxu0 0.0
      %4337 = vmatprep.subr.mxu0 0.0
      %4338 = vmatpush1.msra.mxu0 0.0
      %4339 = vmatprep.subr.mxu0 0.0
      %4340 = vmatpush1.msra.mxu0 0.0
      %4341 = vmatprep.subr.mxu0 0.0
      %4342 = vmatpush1.msra.mxu0 0.0
      %4343 = vmatprep.subr.mxu0 0.0
      %4344 = vmatpush1.msra.mxu0 0.0
      %4345 = vmatprep.subr.mxu0 0.0
      %4346 = vmatpush1.msra.mxu0 0.0
      %4347 = vmatprep.subr.mxu0 0.0
      %4348 = vmatpush1.msra.mxu0 0.0
      %4349 = vmatprep.subr.mxu0 0.0
      %4350 = vmatpush1.msra.mxu0 0.0
      %4351 = vmatprep.subr.mxu0 0.0
      %4352 = vmatpush1.msra.mxu0 0.0
      %4353 = vmatprep.subr.mxu0 0.0
      %4354 = vmatpush1.msra.mxu0 0.0
      %4355 = vmatprep.subr.mxu0 0.0
      %4356 = vmatpush1.msra.mxu0 0.0
      %4357 = vmatprep.mubr.f32.mxu0 0.0
      %4358 = vmatmul.mubr.f32.gmra.mrb[0].mxu0 %v3748
      %v4359 = vpop.f32.mrb[0].mxu0
      %v4360 = vadd.f32 %v3698, %v4359
      %v4361 = vpop.f32.mrb[0].mxu0
      %v4362 = vadd.f32 %v3698, %v4361
      %4363 = vmatprep.mubr.f32.mxu0 0.0
      %4364 = vmatmul.mubr.f32.gmra.mrb[0].mxu0 %v3751
      %v4365 = vpop.f32.mrb[0].mxu0
      %v4366 = vadd.f32 %v3703, %v4365
      %v4367 = vpop.f32.mrb[0].mxu0
      %v4368 = vadd.f32 %v3703, %v4367
      %4369 = vmatprep.mubr.f32.mxu0 0.0
      %4370 = vmatmul.mubr.f32.gmra.mrb[0].mxu0 %v3754
      %v4371 = vpop.f32.mrb[0].mxu0
      %v4372 = vadd.f32 %v3708, %v4371
      %v4373 = vpop.f32.mrb[0].mxu0
      %v4374 = vadd.f32 %v3708, %v4373
      %4375 = vmatprep.mubr.f32.mxu0 0.0
      %4376 = vmatmul.mubr.f32.gmra.mrb[0].mxu0 %v3757
      %v4377 = vpop.f32.mrb[0].mxu0
      %v4378 = vadd.f32 %v3713, %v4377
      %v4379 = vpop.f32.mrb[0].mxu0
      %v4380 = vadd.f32 %v3713, %v4379
      %4381 = vdwg.mxu0
      %4382 = vmatprep.subr.mxu0 %v3638
      %4383 = vmatpush1.msra.mxu0 %v3637
      %4384 = vmatprep.subr.mxu0 %v3654
      %4385 = vmatpush1.msra.mxu0 %v3653
      %4386 = vmatprep.subr.mxu0 %v3670
      %4387 = vmatpush1.msra.mxu0 %v3669
      %4388 = vmatprep.subr.mxu0 %v3686
      %4389 = vmatpush1.msra.mxu0 %v3685
      %4390 = vmatprep.subr.mxu0 0.0
      %4391 = vmatpush1.msra.mxu0 0.0
      %4392 = vmatprep.subr.mxu0 0.0
      %4393 = vmatpush1.msra.mxu0 0.0
      %4394 = vmatprep.subr.mxu0 0.0
      %4395 = vmatpush1.msra.mxu0 0.0
      %4396 = vmatprep.subr.mxu0 0.0
      %4397 = vmatpush1.msra.mxu0 0.0
      %4398 = vmatprep.subr.mxu0 0.0
      %4399 = vmatpush1.msra.mxu0 0.0
      %4400 = vmatprep.subr.mxu0 0.0
      %4401 = vmatpush1.msra.mxu0 0.0
      %4402 = vmatprep.subr.mxu0 0.0
      %4403 = vmatpush1.msra.mxu0 0.0
      %4404 = vmatprep.subr.mxu0 0.0
      %4405 = vmatpush1.msra.mxu0 0.0
      %4406 = vmatprep.subr.mxu0 0.0
      %4407 = vmatpush1.msra.mxu0 0.0
      %4408 = vmatprep.subr.mxu0 0.0
      %4409 = vmatpush1.msra.mxu0 0.0
      %4410 = vmatprep.subr.mxu0 0.0
      %4411 = vmatpush1.msra.mxu0 0.0
      %4412 = vmatprep.subr.mxu0 0.0
      %4413 = vmatpush1.msra.mxu0 0.0
      %4414 = vmatprep.subr.mxu0 0.0
      %4415 = vmatpush1.msra.mxu0 0.0
      %4416 = vmatprep.subr.mxu0 0.0
      %4417 = vmatpush1.msra.mxu0 0.0
      %4418 = vmatprep.subr.mxu0 0.0
      %4419 = vmatpush1.msra.mxu0 0.0
      %4420 = vmatprep.subr.mxu0 0.0
      %4421 = vmatpush1.msra.mxu0 0.0
      %4422 = vmatprep.subr.mxu0 0.0
      %4423 = vmatpush1.msra.mxu0 0.0
      %4424 = vmatprep.subr.mxu0 0.0
      %4425 = vmatpush1.msra.mxu0 0.0
      %4426 = vmatprep.subr.mxu0 0.0
      %4427 = vmatpush1.msra.mxu0 0.0
      %4428 = vmatprep.subr.mxu0 0.0
      %4429 = vmatpush1.msra.mxu0 0.0
      %4430 = vmatprep.subr.mxu0 0.0
      %4431 = vmatpush1.msra.mxu0 0.0
      %4432 = vmatprep.subr.mxu0 0.0
      %4433 = vmatpush1.msra.mxu0 0.0
      %4434 = vmatprep.subr.mxu0 0.0
      %4435 = vmatpush1.msra.mxu0 0.0
      %4436 = vmatprep.subr.mxu0 0.0
      %4437 = vmatpush1.msra.mxu0 0.0
      %4438 = vmatprep.subr.mxu0 0.0
      %4439 = vmatpush1.msra.mxu0 0.0
      %4440 = vmatprep.subr.mxu0 0.0
      %4441 = vmatpush1.msra.mxu0 0.0
      %4442 = vmatprep.subr.mxu0 0.0
      %4443 = vmatpush1.msra.mxu0 0.0
      %4444 = vmatprep.subr.mxu0 0.0
      %4445 = vmatpush1.msra.mxu0 0.0
      %4446 = vmatprep.mubr.f32.mxu0 0.0
      %4447 = vmatmul.mubr.f32.gmra.mrb[0].mxu0 %v3748
      %v4448 = vpop.f32.mrb[0].mxu0
      %v4449 = vadd.f32 %v3698, %v4448
      %v4450 = vpop.f32.mrb[0].mxu0
      %v4451 = vadd.f32 %v3698, %v4450
      %4452 = vmatprep.mubr.f32.mxu0 0.0
      %4453 = vmatmul.mubr.f32.gmra.mrb[0].mxu0 %v3751
      %v4454 = vpop.f32.mrb[0].mxu0
      %v4455 = vadd.f32 %v3703, %v4454
      %v4456 = vpop.f32.mrb[0].mxu0
      %v4457 = vadd.f32 %v3703, %v4456
      %4458 = vmatprep.mubr.f32.mxu0 0.0
      %4459 = vmatmul.mubr.f32.gmra.mrb[0].mxu0 %v3754
      %v4460 = vpop.f32.mrb[0].mxu0
      %v4461 = vadd.f32 %v3708, %v4460
      %v4462 = vpop.f32.mrb[0].mxu0
      %v4463 = vadd.f32 %v3708, %v4462
      %4464 = vmatprep.mubr.f32.mxu0 0.0
      %4465 = vmatmul.mubr.f32.gmra.mrb[0].mxu0 %v3757
      %v4466 = vpop.f32.mrb[0].mxu0
      %v4467 = vadd.f32 %v3713, %v4466
      %v4468 = vpop.f32.mrb[0].mxu0
      %v4469 = vadd.f32 %v3713, %v4468
      %4470 = vdwg.mxu0
      %v4471 = vmax.f32 %v3826, 0.0
      %v4472 = vmax.f32 %v3828, 0.0
      %v4473 = vmax.f32 %v3915, 0.0
      %v4474 = vmax.f32 %v3917, 0.0
      %v4475 = vmax.f32 %v4004, 0.0
      %v4476 = vmax.f32 %v4006, 0.0
      %v4477 = vmax.f32 %v4093, 0.0
      %v4478 = vmax.f32 %v4095, 0.0
      %v4479 = vmax.f32 %v4182, 0.0
      %v4480 = vmax.f32 %v4184, 0.0
      %v4481 = vmax.f32 %v4271, 0.0
      %v4482 = vmax.f32 %v4273, 0.0
      %v4483 = vmax.f32 %v4360, 0.0
      %v4484 = vmax.f32 %v4362, 0.0
      %v4485 = vmax.f32 %v4449, 0.0
      %v4486 = vmax.f32 %v4451, 0.0
      %v4487 = vmax.f32 %v3832, 0.0
      %v4488 = vmax.f32 %v3834, 0.0
      %v4489 = vmax.f32 %v3921, 0.0
      %v4490 = vmax.f32 %v3923, 0.0
      %v4491 = vmax.f32 %v4010, 0.0
      %v4492 = vmax.f32 %v4012, 0.0
      %v4493 = vmax.f32 %v4099, 0.0
      %v4494 = vmax.f32 %v4101, 0.0
      %v4495 = vmax.f32 %v4188, 0.0
      %v4496 = vmax.f32 %v4190, 0.0
      %v4497 = vmax.f32 %v4277, 0.0
      %v4498 = vmax.f32 %v4279, 0.0
      %v4499 = vmax.f32 %v4366, 0.0
      %v4500 = vmax.f32 %v4368, 0.0
      %v4501 = vmax.f32 %v4455, 0.0
      %v4502 = vmax.f32 %v4457, 0.0
      %v4503 = vmax.f32 %v3838, 0.0
      %v4504 = vmax.f32 %v3840, 0.0
      %v4505 = vmax.f32 %v3927, 0.0
      %v4506 = vmax.f32 %v3929, 0.0
      %v4507 = vmax.f32 %v4016, 0.0
      %v4508 = vmax.f32 %v4018, 0.0
      %v4509 = vmax.f32 %v4105, 0.0
      %v4510 = vmax.f32 %v4107, 0.0
      %v4511 = vmax.f32 %v4194, 0.0
      %v4512 = vmax.f32 %v4196, 0.0
      %v4513 = vmax.f32 %v4283, 0.0
      %v4514 = vmax.f32 %v4285, 0.0
      %v4515 = vmax.f32 %v4372, 0.0
      %v4516 = vmax.f32 %v4374, 0.0
      %v4517 = vmax.f32 %v4461, 0.0
      %v4518 = vmax.f32 %v4463, 0.0
      %v4519 = vmax.f32 %v3844, 0.0
      %v4520 = vmax.f32 %v3846, 0.0
      %v4521 = vmax.f32 %v3933, 0.0
      %v4522 = vmax.f32 %v3935, 0.0
      %v4523 = vmax.f32 %v4022, 0.0
      %v4524 = vmax.f32 %v4024, 0.0
      %v4525 = vmax.f32 %v4111, 0.0
      %v4526 = vmax.f32 %v4113, 0.0
      %v4527 = vmax.f32 %v4200, 0.0
      %v4528 = vmax.f32 %v4202, 0.0
      %v4529 = vmax.f32 %v4289, 0.0
      %v4530 = vmax.f32 %v4291, 0.0
      %v4531 = vmax.f32 %v4378, 0.0
      %v4532 = vmax.f32 %v4380, 0.0
      %v4533 = vmax.f32 %v4467, 0.0
      %v4534 = vmax.f32 %v4469, 0.0
      %v4535 = vld [vmem:[%s10] sm:$0xff]
      %v4536 = vld [vmem:[%s10 + $0x8] sm:$0xff]
      %v4537 = vld [vmem:[%s10 + $0x10] sm:$0xff]
      %v4538 = vld [vmem:[%s10 + $0x18] sm:$0xff]
      %v4539 = vld [vmem:[%s11] sm:$0x3]
      %4541 = vset.pattern.permute.xlu0 0
      %4542 = vperm.xlu0 %4541, %v4539
      %v4543 = vpop.permute.xlu0 %4542
      %4545 = vxpose.xlu0.b32.start [1/16] %v4535, 128
      %4546 = vxpose.xlu0.b32.cont [2/16] %v4536, 128
      %4547 = vxpose.xlu0.b32.cont [3/16] %v4537, 128
      %4548 = vxpose.xlu0.b32.cont [4/16] %v4538, 128
      %4549 = vxpose.xlu0.b32.cont [5/16] 0.0, 128
      %4550 = vxpose.xlu0.b32.cont [6/16] 0.0, 128
      %4551 = vxpose.xlu0.b32.cont [7/16] 0.0, 128
      %4552 = vxpose.xlu0.b32.cont [8/16] 0.0, 128
      %4553 = vxpose.xlu0.b32.cont [9/16] 0.0, 128
      %4554 = vxpose.xlu0.b32.cont [10/16] 0.0, 128
      %4555 = vxpose.xlu0.b32.cont [11/16] 0.0, 128
      %4556 = vxpose.xlu0.b32.cont [12/16] 0.0, 128
      %4557 = vxpose.xlu0.b32.cont [13/16] 0.0, 128
      %4558 = vxpose.xlu0.b32.cont [14/16] 0.0, 128
      %4559 = vxpose.xlu0.b32.cont [15/16] 0.0, 128
      %4560 = vxpose.xlu0.b32.end [16/16] 0.0, 128
      %v4561 = vpop.trf.xlu0
      %v4562 = vpop.trf.xlu0
      %v4563 = vpop.trf.xlu0
      %v4564 = vpop.trf.xlu0
      %v4565 = vpop.trf.xlu0
      %v4566 = vpop.trf.xlu0
      %v4567 = vpop.trf.xlu0
      %v4568 = vpop.trf.xlu0
      %v4569 = vpop.trf.xlu0
      %v4570 = vpop.trf.xlu0
      %v4571 = vpop.trf.xlu0
      %v4572 = vpop.trf.xlu0
      %v4573 = vpop.trf.xlu0
      %v4574 = vpop.trf.xlu0
      %v4575 = vpop.trf.xlu0
      %v4576 = vpop.trf.xlu0
      %v4578 = vsel %vm2898, %v4561, 0
      %4580 = vmatprep.subr.mxu0 %v4472
      %4581 = vmatpush1.msra.mxu0 %v4471
      %4582 = vmatprep.subr.mxu0 %v4488
      %4583 = vmatpush1.msra.mxu0 %v4487
      %4584 = vmatprep.subr.mxu0 %v4504
      %4585 = vmatpush1.msra.mxu0 %v4503
      %4586 = vmatprep.subr.mxu0 %v4520
      %4587 = vmatpush1.msra.mxu0 %v4519
      %4588 = vmatprep.subr.mxu0 0.0
      %4589 = vmatpush1.msra.mxu0 0.0
      %4590 = vmatprep.subr.mxu0 0.0
      %4591 = vmatpush1.msra.mxu0 0.0
      %4592 = vmatprep.subr.mxu0 0.0
      %4593 = vmatpush1.msra.mxu0 0.0
      %4594 = vmatprep.subr.mxu0 0.0
      %4595 = vmatpush1.msra.mxu0 0.0
      %4596 = vmatprep.subr.mxu0 0.0
      %4597 = vmatpush1.msra.mxu0 0.0
      %4598 = vmatprep.subr.mxu0 0.0
      %4599 = vmatpush1.msra.mxu0 0.0
      %4600 = vmatprep.subr.mxu0 0.0
      %4601 = vmatpush1.msra.mxu0 0.0
      %4602 = vmatprep.subr.mxu0 0.0
      %4603 = vmatpush1.msra.mxu0 0.0
      %4604 = vmatprep.subr.mxu0 0.0
      %4605 = vmatpush1.msra.mxu0 0.0
      %4606 = vmatprep.subr.mxu0 0.0
      %4607 = vmatpush1.msra.mxu0 0.0
      %4608 = vmatprep.subr.mxu0 0.0
      %4609 = vmatpush1.msra.mxu0 0.0
      %4610 = vmatprep.subr.mxu0 0.0
      %4611 = vmatpush1.msra.mxu0 0.0
      %4612 = vmatprep.subr.mxu0 0.0
      %4613 = vmatpush1.msra.mxu0 0.0
      %4614 = vmatprep.subr.mxu0 0.0
      %4615 = vmatpush1.msra.mxu0 0.0
      %4616 = vmatprep.subr.mxu0 0.0
      %4617 = vmatpush1.msra.mxu0 0.0
      %4618 = vmatprep.subr.mxu0 0.0
      %4619 = vmatpush1.msra.mxu0 0.0
      %4620 = vmatprep.subr.mxu0 0.0
      %4621 = vmatpush1.msra.mxu0 0.0
      %4622 = vmatprep.subr.mxu0 0.0
      %4623 = vmatpush1.msra.mxu0 0.0
      %4624 = vmatprep.subr.mxu0 0.0
      %4625 = vmatpush1.msra.mxu0 0.0
      %4626 = vmatprep.subr.mxu0 0.0
      %4627 = vmatpush1.msra.mxu0 0.0
      %4628 = vmatprep.subr.mxu0 0.0
      %4629 = vmatpush1.msra.mxu0 0.0
      %4630 = vmatprep.subr.mxu0 0.0
      %4631 = vmatpush1.msra.mxu0 0.0
      %4632 = vmatprep.subr.mxu0 0.0
      %4633 = vmatpush1.msra.mxu0 0.0
      %4634 = vmatprep.subr.mxu0 0.0
      %4635 = vmatpush1.msra.mxu0 0.0
      %4636 = vmatprep.subr.mxu0 0.0
      %4637 = vmatpush1.msra.mxu0 0.0
      %4638 = vmatprep.subr.mxu0 0.0
      %4639 = vmatpush1.msra.mxu0 0.0
      %4640 = vmatprep.subr.mxu0 0.0
      %4641 = vmatpush1.msra.mxu0 0.0
      %4642 = vmatprep.subr.mxu0 0.0
      %4643 = vmatpush1.msra.mxu0 0.0
      %4644 = vmatprep.mubr.f32.mxu0 0.0
      %4645 = vmatmul.mubr.f32.gmra.mrb[0].mxu0 %v4578
      %v4646 = vpop.f32.mrb[0].mxu0
      %v4647 = vadd.f32 %v4543, %v4646
      %v4648 = vpop.f32.mrb[0].mxu0
      %v4649 = vadd.f32 %v4543, %v4648
      %4650 = vdwg.mxu0
      %4651 = vmatprep.subr.mxu0 %v4474
      %4652 = vmatpush1.msra.mxu0 %v4473
      %4653 = vmatprep.subr.mxu0 %v4490
      %4654 = vmatpush1.msra.mxu0 %v4489
      %4655 = vmatprep.subr.mxu0 %v4506
      %4656 = vmatpush1.msra.mxu0 %v4505
      %4657 = vmatprep.subr.mxu0 %v4522
      %4658 = vmatpush1.msra.mxu0 %v4521
      %4659 = vmatprep.subr.mxu0 0.0
      %4660 = vmatpush1.msra.mxu0 0.0
      %4661 = vmatprep.subr.mxu0 0.0
      %4662 = vmatpush1.msra.mxu0 0.0
      %4663 = vmatprep.subr.mxu0 0.0
      %4664 = vmatpush1.msra.mxu0 0.0
      %4665 = vmatprep.subr.mxu0 0.0
      %4666 = vmatpush1.msra.mxu0 0.0
      %4667 = vmatprep.subr.mxu0 0.0
      %4668 = vmatpush1.msra.mxu0 0.0
      %4669 = vmatprep.subr.mxu0 0.0
      %4670 = vmatpush1.msra.mxu0 0.0
      %4671 = vmatprep.subr.mxu0 0.0
      %4672 = vmatpush1.msra.mxu0 0.0
      %4673 = vmatprep.subr.mxu0 0.0
      %4674 = vmatpush1.msra.mxu0 0.0
      %4675 = vmatprep.subr.mxu0 0.0
      %4676 = vmatpush1.msra.mxu0 0.0
      %4677 = vmatprep.subr.mxu0 0.0
      %4678 = vmatpush1.msra.mxu0 0.0
      %4679 = vmatprep.subr.mxu0 0.0
      %4680 = vmatpush1.msra.mxu0 0.0
      %4681 = vmatprep.subr.mxu0 0.0
      %4682 = vmatpush1.msra.mxu0 0.0
      %4683 = vmatprep.subr.mxu0 0.0
      %4684 = vmatpush1.msra.mxu0 0.0
      %4685 = vmatprep.subr.mxu0 0.0
      %4686 = vmatpush1.msra.mxu0 0.0
      %4687 = vmatprep.subr.mxu0 0.0
      %4688 = vmatpush1.msra.mxu0 0.0
      %4689 = vmatprep.subr.mxu0 0.0
      %4690 = vmatpush1.msra.mxu0 0.0
      %4691 = vmatprep.subr.mxu0 0.0
      %4692 = vmatpush1.msra.mxu0 0.0
      %4693 = vmatprep.subr.mxu0 0.0
      %4694 = vmatpush1.msra.mxu0 0.0
      %4695 = vmatprep.subr.mxu0 0.0
      %4696 = vmatpush1.msra.mxu0 0.0
      %4697 = vmatprep.subr.mxu0 0.0
      %4698 = vmatpush1.msra.mxu0 0.0
      %4699 = vmatprep.subr.mxu0 0.0
      %4700 = vmatpush1.msra.mxu0 0.0
      %4701 = vmatprep.subr.mxu0 0.0
      %4702 = vmatpush1.msra.mxu0 0.0
      %4703 = vmatprep.subr.mxu0 0.0
      %4704 = vmatpush1.msra.mxu0 0.0
      %4705 = vmatprep.subr.mxu0 0.0
      %4706 = vmatpush1.msra.mxu0 0.0
      %4707 = vmatprep.subr.mxu0 0.0
      %4708 = vmatpush1.msra.mxu0 0.0
      %4709 = vmatprep.subr.mxu0 0.0
      %4710 = vmatpush1.msra.mxu0 0.0
      %4711 = vmatprep.subr.mxu0 0.0
      %4712 = vmatpush1.msra.mxu0 0.0
      %4713 = vmatprep.subr.mxu0 0.0
      %4714 = vmatpush1.msra.mxu0 0.0
      %4715 = vmatprep.mubr.f32.mxu0 0.0
      %4716 = vmatmul.mubr.f32.gmra.mrb[0].mxu0 %v4578
      %v4717 = vpop.f32.mrb[0].mxu0
      %v4718 = vadd.f32 %v4543, %v4717
      %v4719 = vpop.f32.mrb[0].mxu0
      %v4720 = vadd.f32 %v4543, %v4719
      %4721 = vdwg.mxu0
      %4722 = vmatprep.subr.mxu0 %v4476
      %4723 = vmatpush1.msra.mxu0 %v4475
      %4724 = vmatprep.subr.mxu0 %v4492
      %4725 = vmatpush1.msra.mxu0 %v4491
      %4726 = vmatprep.subr.mxu0 %v4508
      %4727 = vmatpush1.msra.mxu0 %v4507
      %4728 = vmatprep.subr.mxu0 %v4524
      %4729 = vmatpush1.msra.mxu0 %v4523
      %4730 = vmatprep.subr.mxu0 0.0
      %4731 = vmatpush1.msra.mxu0 0.0
      %4732 = vmatprep.subr.mxu0 0.0
      %4733 = vmatpush1.msra.mxu0 0.0
      %4734 = vmatprep.subr.mxu0 0.0
      %4735 = vmatpush1.msra.mxu0 0.0
      %4736 = vmatprep.subr.mxu0 0.0
      %4737 = vmatpush1.msra.mxu0 0.0
      %4738 = vmatprep.subr.mxu0 0.0
      %4739 = vmatpush1.msra.mxu0 0.0
      %4740 = vmatprep.subr.mxu0 0.0
      %4741 = vmatpush1.msra.mxu0 0.0
      %4742 = vmatprep.subr.mxu0 0.0
      %4743 = vmatpush1.msra.mxu0 0.0
      %4744 = vmatprep.subr.mxu0 0.0
      %4745 = vmatpush1.msra.mxu0 0.0
      %4746 = vmatprep.subr.mxu0 0.0
      %4747 = vmatpush1.msra.mxu0 0.0
      %4748 = vmatprep.subr.mxu0 0.0
      %4749 = vmatpush1.msra.mxu0 0.0
      %4750 = vmatprep.subr.mxu0 0.0
      %4751 = vmatpush1.msra.mxu0 0.0
      %4752 = vmatprep.subr.mxu0 0.0
      %4753 = vmatpush1.msra.mxu0 0.0
      %4754 = vmatprep.subr.mxu0 0.0
      %4755 = vmatpush1.msra.mxu0 0.0
      %4756 = vmatprep.subr.mxu0 0.0
      %4757 = vmatpush1.msra.mxu0 0.0
      %4758 = vmatprep.subr.mxu0 0.0
      %4759 = vmatpush1.msra.mxu0 0.0
      %4760 = vmatprep.subr.mxu0 0.0
      %4761 = vmatpush1.msra.mxu0 0.0
      %4762 = vmatprep.subr.mxu0 0.0
      %4763 = vmatpush1.msra.mxu0 0.0
      %4764 = vmatprep.subr.mxu0 0.0
      %4765 = vmatpush1.msra.mxu0 0.0
      %4766 = vmatprep.subr.mxu0 0.0
      %4767 = vmatpush1.msra.mxu0 0.0
      %4768 = vmatprep.subr.mxu0 0.0
      %4769 = vmatpush1.msra.mxu0 0.0
      %4770 = vmatprep.subr.mxu0 0.0
      %4771 = vmatpush1.msra.mxu0 0.0
      %4772 = vmatprep.subr.mxu0 0.0
      %4773 = vmatpush1.msra.mxu0 0.0
      %4774 = vmatprep.subr.mxu0 0.0
      %4775 = vmatpush1.msra.mxu0 0.0
      %4776 = vmatprep.subr.mxu0 0.0
      %4777 = vmatpush1.msra.mxu0 0.0
      %4778 = vmatprep.subr.mxu0 0.0
      %4779 = vmatpush1.msra.mxu0 0.0
      %4780 = vmatprep.subr.mxu0 0.0
      %4781 = vmatpush1.msra.mxu0 0.0
      %4782 = vmatprep.subr.mxu0 0.0
      %4783 = vmatpush1.msra.mxu0 0.0
      %4784 = vmatprep.subr.mxu0 0.0
      %4785 = vmatpush1.msra.mxu0 0.0
      %4786 = vmatprep.mubr.f32.mxu0 0.0
      %4787 = vmatmul.mubr.f32.gmra.mrb[0].mxu0 %v4578
      %v4788 = vpop.f32.mrb[0].mxu0
      %v4789 = vadd.f32 %v4543, %v4788
      %v4790 = vpop.f32.mrb[0].mxu0
      %v4791 = vadd.f32 %v4543, %v4790
      %4792 = vdwg.mxu0
      %4793 = vmatprep.subr.mxu0 %v4478
      %4794 = vmatpush1.msra.mxu0 %v4477
      %4795 = vmatprep.subr.mxu0 %v4494
      %4796 = vmatpush1.msra.mxu0 %v4493
      %4797 = vmatprep.subr.mxu0 %v4510
      %4798 = vmatpush1.msra.mxu0 %v4509
      %4799 = vmatprep.subr.mxu0 %v4526
      %4800 = vmatpush1.msra.mxu0 %v4525
      %4801 = vmatprep.subr.mxu0 0.0
      %4802 = vmatpush1.msra.mxu0 0.0
      %4803 = vmatprep.subr.mxu0 0.0
      %4804 = vmatpush1.msra.mxu0 0.0
      %4805 = vmatprep.subr.mxu0 0.0
      %4806 = vmatpush1.msra.mxu0 0.0
      %4807 = vmatprep.subr.mxu0 0.0
      %4808 = vmatpush1.msra.mxu0 0.0
      %4809 = vmatprep.subr.mxu0 0.0
      %4810 = vmatpush1.msra.mxu0 0.0
      %4811 = vmatprep.subr.mxu0 0.0
      %4812 = vmatpush1.msra.mxu0 0.0
      %4813 = vmatprep.subr.mxu0 0.0
      %4814 = vmatpush1.msra.mxu0 0.0
      %4815 = vmatprep.subr.mxu0 0.0
      %4816 = vmatpush1.msra.mxu0 0.0
      %4817 = vmatprep.subr.mxu0 0.0
      %4818 = vmatpush1.msra.mxu0 0.0
      %4819 = vmatprep.subr.mxu0 0.0
      %4820 = vmatpush1.msra.mxu0 0.0
      %4821 = vmatprep.subr.mxu0 0.0
      %4822 = vmatpush1.msra.mxu0 0.0
      %4823 = vmatprep.subr.mxu0 0.0
      %4824 = vmatpush1.msra.mxu0 0.0
      %4825 = vmatprep.subr.mxu0 0.0
      %4826 = vmatpush1.msra.mxu0 0.0
      %4827 = vmatprep.subr.mxu0 0.0
      %4828 = vmatpush1.msra.mxu0 0.0
      %4829 = vmatprep.subr.mxu0 0.0
      %4830 = vmatpush1.msra.mxu0 0.0
      %4831 = vmatprep.subr.mxu0 0.0
      %4832 = vmatpush1.msra.mxu0 0.0
      %4833 = vmatprep.subr.mxu0 0.0
      %4834 = vmatpush1.msra.mxu0 0.0
      %4835 = vmatprep.subr.mxu0 0.0
      %4836 = vmatpush1.msra.mxu0 0.0
      %4837 = vmatprep.subr.mxu0 0.0
      %4838 = vmatpush1.msra.mxu0 0.0
      %4839 = vmatprep.subr.mxu0 0.0
      %4840 = vmatpush1.msra.mxu0 0.0
      %4841 = vmatprep.subr.mxu0 0.0
      %4842 = vmatpush1.msra.mxu0 0.0
      %4843 = vmatprep.subr.mxu0 0.0
      %4844 = vmatpush1.msra.mxu0 0.0
      %4845 = vmatprep.subr.mxu0 0.0
      %4846 = vmatpush1.msra.mxu0 0.0
      %4847 = vmatprep.subr.mxu0 0.0
      %4848 = vmatpush1.msra.mxu0 0.0
      %4849 = vmatprep.subr.mxu0 0.0
      %4850 = vmatpush1.msra.mxu0 0.0
      %4851 = vmatprep.subr.mxu0 0.0
      %4852 = vmatpush1.msra.mxu0 0.0
      %4853 = vmatprep.subr.mxu0 0.0
      %4854 = vmatpush1.msra.mxu0 0.0
      %4855 = vmatprep.subr.mxu0 0.0
      %4856 = vmatpush1.msra.mxu0 0.0
      %4857 = vmatprep.mubr.f32.mxu0 0.0
      %4858 = vmatmul.mubr.f32.gmra.mrb[0].mxu0 %v4578
      %v4859 = vpop.f32.mrb[0].mxu0
      %v4860 = vadd.f32 %v4543, %v4859
      %v4861 = vpop.f32.mrb[0].mxu0
      %v4862 = vadd.f32 %v4543, %v4861
      %4863 = vdwg.mxu0
      %4864 = vmatprep.subr.mxu0 %v4480
      %4865 = vmatpush1.msra.mxu0 %v4479
      %4866 = vmatprep.subr.mxu0 %v4496
      %4867 = vmatpush1.msra.mxu0 %v4495
      %4868 = vmatprep.subr.mxu0 %v4512
      %4869 = vmatpush1.msra.mxu0 %v4511
      %4870 = vmatprep.subr.mxu0 %v4528
      %4871 = vmatpush1.msra.mxu0 %v4527
      %4872 = vmatprep.subr.mxu0 0.0
      %4873 = vmatpush1.msra.mxu0 0.0
      %4874 = vmatprep.subr.mxu0 0.0
      %4875 = vmatpush1.msra.mxu0 0.0
      %4876 = vmatprep.subr.mxu0 0.0
      %4877 = vmatpush1.msra.mxu0 0.0
      %4878 = vmatprep.subr.mxu0 0.0
      %4879 = vmatpush1.msra.mxu0 0.0
      %4880 = vmatprep.subr.mxu0 0.0
      %4881 = vmatpush1.msra.mxu0 0.0
      %4882 = vmatprep.subr.mxu0 0.0
      %4883 = vmatpush1.msra.mxu0 0.0
      %4884 = vmatprep.subr.mxu0 0.0
      %4885 = vmatpush1.msra.mxu0 0.0
      %4886 = vmatprep.subr.mxu0 0.0
      %4887 = vmatpush1.msra.mxu0 0.0
      %4888 = vmatprep.subr.mxu0 0.0
      %4889 = vmatpush1.msra.mxu0 0.0
      %4890 = vmatprep.subr.mxu0 0.0
      %4891 = vmatpush1.msra.mxu0 0.0
      %4892 = vmatprep.subr.mxu0 0.0
      %4893 = vmatpush1.msra.mxu0 0.0
      %4894 = vmatprep.subr.mxu0 0.0
      %4895 = vmatpush1.msra.mxu0 0.0
      %4896 = vmatprep.subr.mxu0 0.0
      %4897 = vmatpush1.msra.mxu0 0.0
      %4898 = vmatprep.subr.mxu0 0.0
      %4899 = vmatpush1.msra.mxu0 0.0
      %4900 = vmatprep.subr.mxu0 0.0
      %4901 = vmatpush1.msra.mxu0 0.0
      %4902 = vmatprep.subr.mxu0 0.0
      %4903 = vmatpush1.msra.mxu0 0.0
      %4904 = vmatprep.subr.mxu0 0.0
      %4905 = vmatpush1.msra.mxu0 0.0
      %4906 = vmatprep.subr.mxu0 0.0
      %4907 = vmatpush1.msra.mxu0 0.0
      %4908 = vmatprep.subr.mxu0 0.0
      %4909 = vmatpush1.msra.mxu0 0.0
      %4910 = vmatprep.subr.mxu0 0.0
      %4911 = vmatpush1.msra.mxu0 0.0
      %4912 = vmatprep.subr.mxu0 0.0
      %4913 = vmatpush1.msra.mxu0 0.0
      %4914 = vmatprep.subr.mxu0 0.0
      %4915 = vmatpush1.msra.mxu0 0.0
      %4916 = vmatprep.subr.mxu0 0.0
      %4917 = vmatpush1.msra.mxu0 0.0
      %4918 = vmatprep.subr.mxu0 0.0
      %4919 = vmatpush1.msra.mxu0 0.0
      %4920 = vmatprep.subr.mxu0 0.0
      %4921 = vmatpush1.msra.mxu0 0.0
      %4922 = vmatprep.subr.mxu0 0.0
      %4923 = vmatpush1.msra.mxu0 0.0
      %4924 = vmatprep.subr.mxu0 0.0
      %4925 = vmatpush1.msra.mxu0 0.0
      %4926 = vmatprep.subr.mxu0 0.0
      %4927 = vmatpush1.msra.mxu0 0.0
      %4928 = vmatprep.mubr.f32.mxu0 0.0
      %4929 = vmatmul.mubr.f32.gmra.mrb[0].mxu0 %v4578
      %v4930 = vpop.f32.mrb[0].mxu0
      %v4931 = vadd.f32 %v4543, %v4930
      %v4932 = vpop.f32.mrb[0].mxu0
      %v4933 = vadd.f32 %v4543, %v4932
      %4934 = vdwg.mxu0
      %4935 = vmatprep.subr.mxu0 %v4482
      %4936 = vmatpush1.msra.mxu0 %v4481
      %4937 = vmatprep.subr.mxu0 %v4498
      %4938 = vmatpush1.msra.mxu0 %v4497
      %4939 = vmatprep.subr.mxu0 %v4514
      %4940 = vmatpush1.msra.mxu0 %v4513
      %4941 = vmatprep.subr.mxu0 %v4530
      %4942 = vmatpush1.msra.mxu0 %v4529
      %4943 = vmatprep.subr.mxu0 0.0
      %4944 = vmatpush1.msra.mxu0 0.0
      %4945 = vmatprep.subr.mxu0 0.0
      %4946 = vmatpush1.msra.mxu0 0.0
      %4947 = vmatprep.subr.mxu0 0.0
      %4948 = vmatpush1.msra.mxu0 0.0
      %4949 = vmatprep.subr.mxu0 0.0
      %4950 = vmatpush1.msra.mxu0 0.0
      %4951 = vmatprep.subr.mxu0 0.0
      %4952 = vmatpush1.msra.mxu0 0.0
      %4953 = vmatprep.subr.mxu0 0.0
      %4954 = vmatpush1.msra.mxu0 0.0
      %4955 = vmatprep.subr.mxu0 0.0
      %4956 = vmatpush1.msra.mxu0 0.0
      %4957 = vmatprep.subr.mxu0 0.0
      %4958 = vmatpush1.msra.mxu0 0.0
      %4959 = vmatprep.subr.mxu0 0.0
      %4960 = vmatpush1.msra.mxu0 0.0
      %4961 = vmatprep.subr.mxu0 0.0
      %4962 = vmatpush1.msra.mxu0 0.0
      %4963 = vmatprep.subr.mxu0 0.0
      %4964 = vmatpush1.msra.mxu0 0.0
      %4965 = vmatprep.subr.mxu0 0.0
      %4966 = vmatpush1.msra.mxu0 0.0
      %4967 = vmatprep.subr.mxu0 0.0
      %4968 = vmatpush1.msra.mxu0 0.0
      %4969 = vmatprep.subr.mxu0 0.0
      %4970 = vmatpush1.msra.mxu0 0.0
      %4971 = vmatprep.subr.mxu0 0.0
      %4972 = vmatpush1.msra.mxu0 0.0
      %4973 = vmatprep.subr.mxu0 0.0
      %4974 = vmatpush1.msra.mxu0 0.0
      %4975 = vmatprep.subr.mxu0 0.0
      %4976 = vmatpush1.msra.mxu0 0.0
      %4977 = vmatprep.subr.mxu0 0.0
      %4978 = vmatpush1.msra.mxu0 0.0
      %4979 = vmatprep.subr.mxu0 0.0
      %4980 = vmatpush1.msra.mxu0 0.0
      %4981 = vmatprep.subr.mxu0 0.0
      %4982 = vmatpush1.msra.mxu0 0.0
      %4983 = vmatprep.subr.mxu0 0.0
      %4984 = vmatpush1.msra.mxu0 0.0
      %4985 = vmatprep.subr.mxu0 0.0
      %4986 = vmatpush1.msra.mxu0 0.0
      %4987 = vmatprep.subr.mxu0 0.0
      %4988 = vmatpush1.msra.mxu0 0.0
      %4989 = vmatprep.subr.mxu0 0.0
      %4990 = vmatpush1.msra.mxu0 0.0
      %4991 = vmatprep.subr.mxu0 0.0
      %4992 = vmatpush1.msra.mxu0 0.0
      %4993 = vmatprep.subr.mxu0 0.0
      %4994 = vmatpush1.msra.mxu0 0.0
      %4995 = vmatprep.subr.mxu0 0.0
      %4996 = vmatpush1.msra.mxu0 0.0
      %4997 = vmatprep.subr.mxu0 0.0
      %4998 = vmatpush1.msra.mxu0 0.0
      %4999 = vmatprep.mubr.f32.mxu0 0.0
      %5000 = vmatmul.mubr.f32.gmra.mrb[0].mxu0 %v4578
      %v5001 = vpop.f32.mrb[0].mxu0
      %v5002 = vadd.f32 %v4543, %v5001
      %v5003 = vpop.f32.mrb[0].mxu0
      %v5004 = vadd.f32 %v4543, %v5003
      %5005 = vdwg.mxu0
      %5006 = vmatprep.subr.mxu0 %v4484
      %5007 = vmatpush1.msra.mxu0 %v4483
      %5008 = vmatprep.subr.mxu0 %v4500
      %5009 = vmatpush1.msra.mxu0 %v4499
      %5010 = vmatprep.subr.mxu0 %v4516
      %5011 = vmatpush1.msra.mxu0 %v4515
      %5012 = vmatprep.subr.mxu0 %v4532
      %5013 = vmatpush1.msra.mxu0 %v4531
      %5014 = vmatprep.subr.mxu0 0.0
      %5015 = vmatpush1.msra.mxu0 0.0
      %5016 = vmatprep.subr.mxu0 0.0
      %5017 = vmatpush1.msra.mxu0 0.0
      %5018 = vmatprep.subr.mxu0 0.0
      %5019 = vmatpush1.msra.mxu0 0.0
      %5020 = vmatprep.subr.mxu0 0.0
      %5021 = vmatpush1.msra.mxu0 0.0
      %5022 = vmatprep.subr.mxu0 0.0
      %5023 = vmatpush1.msra.mxu0 0.0
      %5024 = vmatprep.subr.mxu0 0.0
      %5025 = vmatpush1.msra.mxu0 0.0
      %5026 = vmatprep.subr.mxu0 0.0
      %5027 = vmatpush1.msra.mxu0 0.0
      %5028 = vmatprep.subr.mxu0 0.0
      %5029 = vmatpush1.msra.mxu0 0.0
      %5030 = vmatprep.subr.mxu0 0.0
      %5031 = vmatpush1.msra.mxu0 0.0
      %5032 = vmatprep.subr.mxu0 0.0
      %5033 = vmatpush1.msra.mxu0 0.0
      %5034 = vmatprep.subr.mxu0 0.0
      %5035 = vmatpush1.msra.mxu0 0.0
      %5036 = vmatprep.subr.mxu0 0.0
      %5037 = vmatpush1.msra.mxu0 0.0
      %5038 = vmatprep.subr.mxu0 0.0
      %5039 = vmatpush1.msra.mxu0 0.0
      %5040 = vmatprep.subr.mxu0 0.0
      %5041 = vmatpush1.msra.mxu0 0.0
      %5042 = vmatprep.subr.mxu0 0.0
      %5043 = vmatpush1.msra.mxu0 0.0
      %5044 = vmatprep.subr.mxu0 0.0
      %5045 = vmatpush1.msra.mxu0 0.0
      %5046 = vmatprep.subr.mxu0 0.0
      %5047 = vmatpush1.msra.mxu0 0.0
      %5048 = vmatprep.subr.mxu0 0.0
      %5049 = vmatpush1.msra.mxu0 0.0
      %5050 = vmatprep.subr.mxu0 0.0
      %5051 = vmatpush1.msra.mxu0 0.0
      %5052 = vmatprep.subr.mxu0 0.0
      %5053 = vmatpush1.msra.mxu0 0.0
      %5054 = vmatprep.subr.mxu0 0.0
      %5055 = vmatpush1.msra.mxu0 0.0
      %5056 = vmatprep.subr.mxu0 0.0
      %5057 = vmatpush1.msra.mxu0 0.0
      %5058 = vmatprep.subr.mxu0 0.0
      %5059 = vmatpush1.msra.mxu0 0.0
      %5060 = vmatprep.subr.mxu0 0.0
      %5061 = vmatpush1.msra.mxu0 0.0
      %5062 = vmatprep.subr.mxu0 0.0
      %5063 = vmatpush1.msra.mxu0 0.0
      %5064 = vmatprep.subr.mxu0 0.0
      %5065 = vmatpush1.msra.mxu0 0.0
      %5066 = vmatprep.subr.mxu0 0.0
      %5067 = vmatpush1.msra.mxu0 0.0
      %5068 = vmatprep.subr.mxu0 0.0
      %5069 = vmatpush1.msra.mxu0 0.0
      %5070 = vmatprep.mubr.f32.mxu0 0.0
      %5071 = vmatmul.mubr.f32.gmra.mrb[0].mxu0 %v4578
      %v5072 = vpop.f32.mrb[0].mxu0
      %v5073 = vadd.f32 %v4543, %v5072
      %v5074 = vpop.f32.mrb[0].mxu0
      %v5075 = vadd.f32 %v4543, %v5074
      %5076 = vdwg.mxu0
      %5077 = vmatprep.subr.mxu0 %v4486
      %5078 = vmatpush1.msra.mxu0 %v4485
      %5079 = vmatprep.subr.mxu0 %v4502
      %5080 = vmatpush1.msra.mxu0 %v4501
      %5081 = vmatprep.subr.mxu0 %v4518
      %5082 = vmatpush1.msra.mxu0 %v4517
      %5083 = vmatprep.subr.mxu0 %v4534
      %5084 = vmatpush1.msra.mxu0 %v4533
      %5085 = vmatprep.subr.mxu0 0.0
      %5086 = vmatpush1.msra.mxu0 0.0
      %5087 = vmatprep.subr.mxu0 0.0
      %5088 = vmatpush1.msra.mxu0 0.0
      %5089 = vmatprep.subr.mxu0 0.0
      %5090 = vmatpush1.msra.mxu0 0.0
      %5091 = vmatprep.subr.mxu0 0.0
      %5092 = vmatpush1.msra.mxu0 0.0
      %5093 = vmatprep.subr.mxu0 0.0
      %5094 = vmatpush1.msra.mxu0 0.0
      %5095 = vmatprep.subr.mxu0 0.0
      %5096 = vmatpush1.msra.mxu0 0.0
      %5097 = vmatprep.subr.mxu0 0.0
      %5098 = vmatpush1.msra.mxu0 0.0
      %5099 = vmatprep.subr.mxu0 0.0
      %5100 = vmatpush1.msra.mxu0 0.0
      %5101 = vmatprep.subr.mxu0 0.0
      %5102 = vmatpush1.msra.mxu0 0.0
      %5103 = vmatprep.subr.mxu0 0.0
      %5104 = vmatpush1.msra.mxu0 0.0
      %5105 = vmatprep.subr.mxu0 0.0
      %5106 = vmatpush1.msra.mxu0 0.0
      %5107 = vmatprep.subr.mxu0 0.0
      %5108 = vmatpush1.msra.mxu0 0.0
      %5109 = vmatprep.subr.mxu0 0.0
      %5110 = vmatpush1.msra.mxu0 0.0
      %5111 = vmatprep.subr.mxu0 0.0
      %5112 = vmatpush1.msra.mxu0 0.0
      %5113 = vmatprep.subr.mxu0 0.0
      %5114 = vmatpush1.msra.mxu0 0.0
      %5115 = vmatprep.subr.mxu0 0.0
      %5116 = vmatpush1.msra.mxu0 0.0
      %5117 = vmatprep.subr.mxu0 0.0
      %5118 = vmatpush1.msra.mxu0 0.0
      %5119 = vmatprep.subr.mxu0 0.0
      %5120 = vmatpush1.msra.mxu0 0.0
      %5121 = vmatprep.subr.mxu0 0.0
      %5122 = vmatpush1.msra.mxu0 0.0
      %5123 = vmatprep.subr.mxu0 0.0
      %5124 = vmatpush1.msra.mxu0 0.0
      %5125 = vmatprep.subr.mxu0 0.0
      %5126 = vmatpush1.msra.mxu0 0.0
      %5127 = vmatprep.subr.mxu0 0.0
      %5128 = vmatpush1.msra.mxu0 0.0
      %5129 = vmatprep.subr.mxu0 0.0
      %5130 = vmatpush1.msra.mxu0 0.0
      %5131 = vmatprep.subr.mxu0 0.0
      %5132 = vmatpush1.msra.mxu0 0.0
      %5133 = vmatprep.subr.mxu0 0.0
      %5134 = vmatpush1.msra.mxu0 0.0
      %5135 = vmatprep.subr.mxu0 0.0
      %5136 = vmatpush1.msra.mxu0 0.0
      %5137 = vmatprep.subr.mxu0 0.0
      %5138 = vmatpush1.msra.mxu0 0.0
      %5139 = vmatprep.subr.mxu0 0.0
      %5140 = vmatpush1.msra.mxu0 0.0
      %5141 = vmatprep.mubr.f32.mxu0 0.0
      %5142 = vmatmul.mubr.f32.gmra.mrb[0].mxu0 %v4578
      %v5143 = vpop.f32.mrb[0].mxu0
      %v5144 = vadd.f32 %v4543, %v5143
      %v5145 = vpop.f32.mrb[0].mxu0
      %v5146 = vadd.f32 %v4543, %v5145
      %5147 = vdwg.mxu0
      %vm5148 = vcmask 1041408
      %v5149 = vsel %vm5148, %v4647, -inf
      %v5150 = vrot.slane %v5149, 4
      %v5151 = vmax.f32 %v5149, %v5150
      %v5152 = vrot.slane %v5151, 2
      %v5153 = vmax.f32 %v5151, %v5152
      %v5154 = vrot.slane %v5153, 1
      %v5155 = vmax.f32 %v5153, %v5154
      %v5156 = vsel %vm5148, %v4649, -inf
      %v5157 = vrot.slane %v5156, 4
      %v5158 = vmax.f32 %v5156, %v5157
      %v5159 = vrot.slane %v5158, 2
      %v5160 = vmax.f32 %v5158, %v5159
      %v5161 = vrot.slane %v5160, 1
      %v5162 = vmax.f32 %v5160, %v5161
      %v5163 = vsel %vm5148, %v4718, -inf
      %v5164 = vrot.slane %v5163, 4
      %v5165 = vmax.f32 %v5163, %v5164
      %v5166 = vrot.slane %v5165, 2
      %v5167 = vmax.f32 %v5165, %v5166
      %v5168 = vrot.slane %v5167, 1
      %v5169 = vmax.f32 %v5167, %v5168
      %v5170 = vsel %vm5148, %v4720, -inf
      %v5171 = vrot.slane %v5170, 4
      %v5172 = vmax.f32 %v5170, %v5171
      %v5173 = vrot.slane %v5172, 2
      %v5174 = vmax.f32 %v5172, %v5173
      %v5175 = vrot.slane %v5174, 1
      %v5176 = vmax.f32 %v5174, %v5175
      %v5177 = vsel %vm5148, %v4789, -inf
      %v5178 = vrot.slane %v5177, 4
      %v5179 = vmax.f32 %v5177, %v5178
      %v5180 = vrot.slane %v5179, 2
      %v5181 = vmax.f32 %v5179, %v5180
      %v5182 = vrot.slane %v5181, 1
      %v5183 = vmax.f32 %v5181, %v5182
      %v5184 = vsel %vm5148, %v4791, -inf
      %v5185 = vrot.slane %v5184, 4
      %v5186 = vmax.f32 %v5184, %v5185
      %v5187 = vrot.slane %v5186, 2
      %v5188 = vmax.f32 %v5186, %v5187
      %v5189 = vrot.slane %v5188, 1
      %v5190 = vmax.f32 %v5188, %v5189
      %v5191 = vsel %vm5148, %v4860, -inf
      %v5192 = vrot.slane %v5191, 4
      %v5193 = vmax.f32 %v5191, %v5192
      %v5194 = vrot.slane %v5193, 2
      %v5195 = vmax.f32 %v5193, %v5194
      %v5196 = vrot.slane %v5195, 1
      %v5197 = vmax.f32 %v5195, %v5196
      %v5198 = vsel %vm5148, %v4862, -inf
      %v5199 = vrot.slane %v5198, 4
      %v5200 = vmax.f32 %v5198, %v5199
      %v5201 = vrot.slane %v5200, 2
      %v5202 = vmax.f32 %v5200, %v5201
      %v5203 = vrot.slane %v5202, 1
      %v5204 = vmax.f32 %v5202, %v5203
      %v5205 = vsel %vm5148, %v4931, -inf
      %v5206 = vrot.slane %v5205, 4
      %v5207 = vmax.f32 %v5205, %v5206
      %v5208 = vrot.slane %v5207, 2
      %v5209 = vmax.f32 %v5207, %v5208
      %v5210 = vrot.slane %v5209, 1
      %v5211 = vmax.f32 %v5209, %v5210
      %v5212 = vsel %vm5148, %v4933, -inf
      %v5213 = vrot.slane %v5212, 4
      %v5214 = vmax.f32 %v5212, %v5213
      %v5215 = vrot.slane %v5214, 2
      %v5216 = vmax.f32 %v5214, %v5215
      %v5217 = vrot.slane %v5216, 1
      %v5218 = vmax.f32 %v5216, %v5217
      %v5219 = vsel %vm5148, %v5002, -inf
      %v5220 = vrot.slane %v5219, 4
      %v5221 = vmax.f32 %v5219, %v5220
      %v5222 = vrot.slane %v5221, 2
      %v5223 = vmax.f32 %v5221, %v5222
      %v5224 = vrot.slane %v5223, 1
      %v5225 = vmax.f32 %v5223, %v5224
      %v5226 = vsel %vm5148, %v5004, -inf
      %v5227 = vrot.slane %v5226, 4
      %v5228 = vmax.f32 %v5226, %v5227
      %v5229 = vrot.slane %v5228, 2
      %v5230 = vmax.f32 %v5228, %v5229
      %v5231 = vrot.slane %v5230, 1
      %v5232 = vmax.f32 %v5230, %v5231
      %v5233 = vsel %vm5148, %v5073, -inf
      %v5234 = vrot.slane %v5233, 4
      %v5235 = vmax.f32 %v5233, %v5234
      %v5236 = vrot.slane %v5235, 2
      %v5237 = vmax.f32 %v5235, %v5236
      %v5238 = vrot.slane %v5237, 1
      %v5239 = vmax.f32 %v5237, %v5238
      %v5240 = vsel %vm5148, %v5075, -inf
      %v5241 = vrot.slane %v5240, 4
      %v5242 = vmax.f32 %v5240, %v5241
      %v5243 = vrot.slane %v5242, 2
      %v5244 = vmax.f32 %v5242, %v5243
      %v5245 = vrot.slane %v5244, 1
      %v5246 = vmax.f32 %v5244, %v5245
      %v5247 = vsel %vm5148, %v5144, -inf
      %v5248 = vrot.slane %v5247, 4
      %v5249 = vmax.f32 %v5247, %v5248
      %v5250 = vrot.slane %v5249, 2
      %v5251 = vmax.f32 %v5249, %v5250
      %v5252 = vrot.slane %v5251, 1
      %v5253 = vmax.f32 %v5251, %v5252
      %v5254 = vsel %vm5148, %v5146, -inf
      %v5255 = vrot.slane %v5254, 4
      %v5256 = vmax.f32 %v5254, %v5255
      %v5257 = vrot.slane %v5256, 2
      %v5258 = vmax.f32 %v5256, %v5257
      %v5259 = vrot.slane %v5258, 1
      %v5260 = vmax.f32 %v5258, %v5259
      %v5261 = vsub.f32 %v4647, %v5155
      %v5262 = vsub.f32 %v4649, %v5162
      %v5263 = vsub.f32 %v4718, %v5169
      %v5264 = vsub.f32 %v4720, %v5176
      %v5265 = vsub.f32 %v4789, %v5183
      %v5266 = vsub.f32 %v4791, %v5190
      %v5267 = vsub.f32 %v4860, %v5197
      %v5268 = vsub.f32 %v4862, %v5204
      %v5269 = vsub.f32 %v4931, %v5211
      %v5270 = vsub.f32 %v4933, %v5218
      %v5271 = vsub.f32 %v5002, %v5225
      %v5272 = vsub.f32 %v5004, %v5232
      %v5273 = vsub.f32 %v5073, %v5239
      %v5274 = vsub.f32 %v5075, %v5246
      %v5275 = vsub.f32 %v5144, %v5253
      %v5276 = vsub.f32 %v5146, %v5260
      %v5277 = vmul.f32 %v5261, 1.442695
      %v5278 = vpow.pop %v5277
      %v5279 = vmul.f32 %v5262, 1.442695
      %v5280 = vpow.pop %v5279
      %v5281 = vmul.f32 %v5263, 1.442695
      %v5282 = vpow.pop %v5281
      %v5283 = vmul.f32 %v5264, 1.442695
      %v5284 = vpow.pop %v5283
      %v5285 = vmul.f32 %v5265, 1.442695
      %v5286 = vpow.pop %v5285
      %v5287 = vmul.f32 %v5266, 1.442695
      %v5288 = vpow.pop %v5287
      %v5289 = vmul.f32 %v5267, 1.442695
      %v5290 = vpow.pop %v5289
      %v5291 = vmul.f32 %v5268, 1.442695
      %v5292 = vpow.pop %v5291
      %v5293 = vmul.f32 %v5269, 1.442695
      %v5294 = vpow.pop %v5293
      %v5295 = vmul.f32 %v5270, 1.442695
      %v5296 = vpow.pop %v5295
      %v5297 = vmul.f32 %v5271, 1.442695
      %v5298 = vpow.pop %v5297
      %v5299 = vmul.f32 %v5272, 1.442695
      %v5300 = vpow.pop %v5299
      %v5301 = vmul.f32 %v5273, 1.442695
      %v5302 = vpow.pop %v5301
      %v5303 = vmul.f32 %v5274, 1.442695
      %v5304 = vpow.pop %v5303
      %v5305 = vmul.f32 %v5275, 1.442695
      %v5306 = vpow.pop %v5305
      %v5307 = vmul.f32 %v5276, 1.442695
      %v5308 = vpow.pop %v5307
      %v5309 = vsel %vm5148, %v5278, 0.0
      %v5310 = vrot.slane %v5309, 4
      %v5311 = vadd.f32 %v5309, %v5310
      %v5312 = vrot.slane %v5311, 2
      %v5313 = vadd.f32 %v5311, %v5312
      %v5314 = vrot.slane %v5313, 1
      %v5315 = vadd.f32 %v5313, %v5314
      %v5316 = vsel %vm5148, %v5280, 0.0
      %v5317 = vrot.slane %v5316, 4
      %v5318 = vadd.f32 %v5316, %v5317
      %v5319 = vrot.slane %v5318, 2
      %v5320 = vadd.f32 %v5318, %v5319
      %v5321 = vrot.slane %v5320, 1
      %v5322 = vadd.f32 %v5320, %v5321
      %v5323 = vsel %vm5148, %v5282, 0.0
      %v5324 = vrot.slane %v5323, 4
      %v5325 = vadd.f32 %v5323, %v5324
      %v5326 = vrot.slane %v5325, 2
      %v5327 = vadd.f32 %v5325, %v5326
      %v5328 = vrot.slane %v5327, 1
      %v5329 = vadd.f32 %v5327, %v5328
      %v5330 = vsel %vm5148, %v5284, 0.0
      %v5331 = vrot.slane %v5330, 4
      %v5332 = vadd.f32 %v5330, %v5331
      %v5333 = vrot.slane %v5332, 2
      %v5334 = vadd.f32 %v5332, %v5333
      %v5335 = vrot.slane %v5334, 1
      %v5336 = vadd.f32 %v5334, %v5335
      %v5337 = vsel %vm5148, %v5286, 0.0
      %v5338 = vrot.slane %v5337, 4
      %v5339 = vadd.f32 %v5337, %v5338
      %v5340 = vrot.slane %v5339, 2
      %v5341 = vadd.f32 %v5339, %v5340
      %v5342 = vrot.slane %v5341, 1
      %v5343 = vadd.f32 %v5341, %v5342
      %v5344 = vsel %vm5148, %v5288, 0.0
      %v5345 = vrot.slane %v5344, 4
      %v5346 = vadd.f32 %v5344, %v5345
      %v5347 = vrot.slane %v5346, 2
      %v5348 = vadd.f32 %v5346, %v5347
      %v5349 = vrot.slane %v5348, 1
      %v5350 = vadd.f32 %v5348, %v5349
      %v5351 = vsel %vm5148, %v5290, 0.0
      %v5352 = vrot.slane %v5351, 4
      %v5353 = vadd.f32 %v5351, %v5352
      %v5354 = vrot.slane %v5353, 2
      %v5355 = vadd.f32 %v5353, %v5354
      %v5356 = vrot.slane %v5355, 1
      %v5357 = vadd.f32 %v5355, %v5356
      %v5358 = vsel %vm5148, %v5292, 0.0
      %v5359 = vrot.slane %v5358, 4
      %v5360 = vadd.f32 %v5358, %v5359
      %v5361 = vrot.slane %v5360, 2
      %v5362 = vadd.f32 %v5360, %v5361
      %v5363 = vrot.slane %v5362, 1
      %v5364 = vadd.f32 %v5362, %v5363
      %v5365 = vsel %vm5148, %v5294, 0.0
      %v5366 = vrot.slane %v5365, 4
      %v5367 = vadd.f32 %v5365, %v5366
      %v5368 = vrot.slane %v5367, 2
      %v5369 = vadd.f32 %v5367, %v5368
      %v5370 = vrot.slane %v5369, 1
      %v5371 = vadd.f32 %v5369, %v5370
      %v5372 = vsel %vm5148, %v5296, 0.0
      %v5373 = vrot.slane %v5372, 4
      %v5374 = vadd.f32 %v5372, %v5373
      %v5375 = vrot.slane %v5374, 2
      %v5376 = vadd.f32 %v5374, %v5375
      %v5377 = vrot.slane %v5376, 1
      %v5378 = vadd.f32 %v5376, %v5377
      %v5379 = vsel %vm5148, %v5298, 0.0
      %v5380 = vrot.slane %v5379, 4
      %v5381 = vadd.f32 %v5379, %v5380
      %v5382 = vrot.slane %v5381, 2
      %v5383 = vadd.f32 %v5381, %v5382
      %v5384 = vrot.slane %v5383, 1
      %v5385 = vadd.f32 %v5383, %v5384
      %v5386 = vsel %vm5148, %v5300, 0.0
      %v5387 = vrot.slane %v5386, 4
      %v5388 = vadd.f32 %v5386, %v5387
      %v5389 = vrot.slane %v5388, 2
      %v5390 = vadd.f32 %v5388, %v5389
      %v5391 = vrot.slane %v5390, 1
      %v5392 = vadd.f32 %v5390, %v5391
      %v5393 = vsel %vm5148, %v5302, 0.0
      %v5394 = vrot.slane %v5393, 4
      %v5395 = vadd.f32 %v5393, %v5394
      %v5396 = vrot.slane %v5395, 2
      %v5397 = vadd.f32 %v5395, %v5396
      %v5398 = vrot.slane %v5397, 1
      %v5399 = vadd.f32 %v5397, %v5398
      %v5400 = vsel %vm5148, %v5304, 0.0
      %v5401 = vrot.slane %v5400, 4
      %v5402 = vadd.f32 %v5400, %v5401
      %v5403 = vrot.slane %v5402, 2
      %v5404 = vadd.f32 %v5402, %v5403
      %v5405 = vrot.slane %v5404, 1
      %v5406 = vadd.f32 %v5404, %v5405
      %v5407 = vsel %vm5148, %v5306, 0.0
      %v5408 = vrot.slane %v5407, 4
      %v5409 = vadd.f32 %v5407, %v5408
      %v5410 = vrot.slane %v5409, 2
      %v5411 = vadd.f32 %v5409, %v5410
      %v5412 = vrot.slane %v5411, 1
      %v5413 = vadd.f32 %v5411, %v5412
      %v5414 = vsel %vm5148, %v5308, 0.0
      %v5415 = vrot.slane %v5414, 4
      %v5416 = vadd.f32 %v5414, %v5415
      %v5417 = vrot.slane %v5416, 2
      %v5418 = vadd.f32 %v5416, %v5417
      %v5419 = vrot.slane %v5418, 1
      %v5420 = vadd.f32 %v5418, %v5419
      %v5421 = vrcp.pop %v5315
      %v5422 = vmul.f32 %v5278, %v5421
      %v5423 = vrcp.pop %v5322
      %v5424 = vmul.f32 %v5280, %v5423
      %v5425 = vrcp.pop %v5329
      %v5426 = vmul.f32 %v5282, %v5425
      %v5427 = vrcp.pop %v5336
      %v5428 = vmul.f32 %v5284, %v5427
      %v5429 = vrcp.pop %v5343
      %v5430 = vmul.f32 %v5286, %v5429
      %v5431 = vrcp.pop %v5350
      %v5432 = vmul.f32 %v5288, %v5431
      %v5433 = vrcp.pop %v5357
      %v5434 = vmul.f32 %v5290, %v5433
      %v5435 = vrcp.pop %v5364
      %v5436 = vmul.f32 %v5292, %v5435
      %v5437 = vrcp.pop %v5371
      %v5438 = vmul.f32 %v5294, %v5437
      %v5439 = vrcp.pop %v5378
      %v5440 = vmul.f32 %v5296, %v5439
      %v5441 = vrcp.pop %v5385
      %v5442 = vmul.f32 %v5298, %v5441
      %v5443 = vrcp.pop %v5392
      %v5444 = vmul.f32 %v5300, %v5443
      %v5445 = vrcp.pop %v5399
      %v5446 = vmul.f32 %v5302, %v5445
      %v5447 = vrcp.pop %v5406
      %v5448 = vmul.f32 %v5304, %v5447
      %v5449 = vrcp.pop %v5413
      %v5450 = vmul.f32 %v5306, %v5449
      %v5451 = vrcp.pop %v5420
      %v5452 = vmul.f32 %v5308, %v5451
      %v5453 = vcombine.low %v5422, %v5430
      %v5455 = vunpack.c.l.s4 1983009808
      %v5456 = vunpack.c.0.s8 %v5455
      %v5457 = vlaneseq
      %v5458 = vshrl.u32 %v5457, 7
      %v5459 = vsub.s32 %v5456, %v5458
      %v5460 = vrot.slane %v5453, %v5459
      %v5461 = vcombine.low %v5426, %v5434
      %v5463 = vunpack.c.l.s4 1983009808
      %v5464 = vunpack.c.0.s8 %v5463
      %v5465 = vlaneseq
      %v5466 = vshrl.u32 %v5465, 7
      %v5467 = vsub.s32 %v5464, %v5466
      %v5468 = vrot.slane %v5461, %v5467
      %v5469 = vcombine.low %v5438, %v5446
      %v5471 = vunpack.c.l.s4 1983009808
      %v5472 = vunpack.c.0.s8 %v5471
      %v5473 = vlaneseq
      %v5474 = vshrl.u32 %v5473, 7
      %v5475 = vsub.s32 %v5472, %v5474
      %v5476 = vrot.slane %v5469, %v5475
      %v5477 = vcombine.low %v5442, %v5450
      %v5479 = vunpack.c.l.s4 1983009808
      %v5480 = vunpack.c.0.s8 %v5479
      %v5481 = vlaneseq
      %v5482 = vshrl.u32 %v5481, 7
      %v5483 = vsub.s32 %v5480, %v5482
      %v5484 = vrot.slane %v5477, %v5483
      %v5485 = vcombine.low %v5460, %v5468
      %v5487 = vunpack.c.l.s4 1934713408
      %v5488 = vunpack.c.0.s8 %v5487
      %v5489 = vlaneseq
      %v5490 = vshrl.u32 %v5489, 7
      %v5491 = vsub.s32 %v5488, %v5490
      %v5492 = vrot.slane %v5485, %v5491
      %v5493 = vcombine.low %v5476, %v5484
      %v5495 = vunpack.c.l.s4 1934713408
      %v5496 = vunpack.c.0.s8 %v5495
      %v5497 = vlaneseq
      %v5498 = vshrl.u32 %v5497, 7
      %v5499 = vsub.s32 %v5496, %v5498
      %v5500 = vrot.slane %v5493, %v5499
      %v5501 = vcombine.low %v5492, %v5500
      %v5502 = vcombine.high %v5492, %v5500
      %v5503 = vcombine.low %v5424, %v5432
      %v5505 = vunpack.c.l.s4 1983009808
      %v5506 = vunpack.c.0.s8 %v5505
      %v5507 = vlaneseq
      %v5508 = vshrl.u32 %v5507, 7
      %v5509 = vsub.s32 %v5506, %v5508
      %v5510 = vrot.slane %v5503, %v5509
      %v5511 = vcombine.low %v5428, %v5436
      %v5513 = vunpack.c.l.s4 1983009808
      %v5514 = vunpack.c.0.s8 %v5513
      %v5515 = vlaneseq
      %v5516 = vshrl.u32 %v5515, 7
      %v5517 = vsub.s32 %v5514, %v5516
      %v5518 = vrot.slane %v5511, %v5517
      %v5519 = vcombine.low %v5440, %v5448
      %v5521 = vunpack.c.l.s4 1983009808
      %v5522 = vunpack.c.0.s8 %v5521
      %v5523 = vlaneseq
      %v5524 = vshrl.u32 %v5523, 7
      %v5525 = vsub.s32 %v5522, %v5524
      %v5526 = vrot.slane %v5519, %v5525
      %v5527 = vcombine.low %v5444, %v5452
      %v5529 = vunpack.c.l.s4 1983009808
      %v5530 = vunpack.c.0.s8 %v5529
      %v5531 = vlaneseq
      %v5532 = vshrl.u32 %v5531, 7
      %v5533 = vsub.s32 %v5530, %v5532
      %v5534 = vrot.slane %v5527, %v5533
      %v5535 = vcombine.low %v5510, %v5518
      %v5537 = vunpack.c.l.s4 1934713408
      %v5538 = vunpack.c.0.s8 %v5537
      %v5539 = vlaneseq
      %v5540 = vshrl.u32 %v5539, 7
      %v5541 = vsub.s32 %v5538, %v5540
      %v5542 = vrot.slane %v5535, %v5541
      %v5543 = vcombine.low %v5526, %v5534
      %v5545 = vunpack.c.l.s4 1934713408
      %v5546 = vunpack.c.0.s8 %v5545
      %v5547 = vlaneseq
      %v5548 = vshrl.u32 %v5547, 7
      %v5549 = vsub.s32 %v5546, %v5548
      %v5550 = vrot.slane %v5543, %v5549
      %v5551 = vcombine.low %v5542, %v5550
      %v5552 = vcombine.high %v5542, %v5550
      %v5553 = vcombine.high %v5501, 0.0
      %v5555 = vunpack.c.l.s4 1983009808
      %v5556 = vunpack.c.0.s8 %v5555
      %v5557 = vlaneseq
      %v5558 = vshrl.u32 %v5557, 7
      %v5559 = vsub.s32 %v5556, %v5558
      %v5560 = vrot.slane %v5501, %v5559
      %v5562 = vunpack.c.l.s4 1983009808
      %v5563 = vunpack.c.0.s8 %v5562
      %v5564 = vlaneseq
      %v5565 = vshrl.u32 %v5564, 7
      %v5566 = vsub.s32 %v5563, %v5565
      %v5567 = vrot.slane %v5553, %v5566
      %v5568 = vcombine.high %v5502, 0.0
      %v5570 = vunpack.c.l.s4 1983009808
      %v5571 = vunpack.c.0.s8 %v5570
      %v5572 = vlaneseq
      %v5573 = vshrl.u32 %v5572, 7
      %v5574 = vsub.s32 %v5571, %v5573
      %v5575 = vrot.slane %v5502, %v5574
      %v5577 = vunpack.c.l.s4 1983009808
      %v5578 = vunpack.c.0.s8 %v5577
      %v5579 = vlaneseq
      %v5580 = vshrl.u32 %v5579, 7
      %v5581 = vsub.s32 %v5578, %v5580
      %v5582 = vrot.slane %v5568, %v5581
      %v5583 = vcombine.low %v5560, %v5575
      %v5584 = vcombine.high %v5560, %v5575
      %v5586 = vunpack.c.l.s4 1934713408
      %v5587 = vunpack.c.0.s8 %v5586
      %v5588 = vlaneseq
      %v5589 = vshrl.u32 %v5588, 7
      %v5590 = vsub.s32 %v5587, %v5589
      %v5591 = vrot.slane %v5583, %v5590
      %v5593 = vunpack.c.l.s4 1934713408
      %v5594 = vunpack.c.0.s8 %v5593
      %v5595 = vlaneseq
      %v5596 = vshrl.u32 %v5595, 7
      %v5597 = vsub.s32 %v5594, %v5596
      %v5598 = vrot.slane %v5584, %v5597
      %v5599 = vcombine.low %v5567, %v5582
      %v5600 = vcombine.high %v5567, %v5582
      %v5602 = vunpack.c.l.s4 1934713408
      %v5603 = vunpack.c.0.s8 %v5602
      %v5604 = vlaneseq
      %v5605 = vshrl.u32 %v5604, 7
      %v5606 = vsub.s32 %v5603, %v5605
      %v5607 = vrot.slane %v5599, %v5606
      %v5609 = vunpack.c.l.s4 1934713408
      %v5610 = vunpack.c.0.s8 %v5609
      %v5611 = vlaneseq
      %v5612 = vshrl.u32 %v5611, 7
      %v5613 = vsub.s32 %v5610, %v5612
      %v5614 = vrot.slane %v5600, %v5613
      %v5615 = vcombine.high %v5591, 0.0
      %v5616 = vcombine.high %v5598, 0.0
      %v5617 = vcombine.high %v5607, 0.0
      %v5618 = vcombine.high %v5614, 0.0
      %v5619 = vcombine.high %v5551, 0.0
      %v5621 = vunpack.c.l.s4 1983009808
      %v5622 = vunpack.c.0.s8 %v5621
      %v5623 = vlaneseq
      %v5624 = vshrl.u32 %v5623, 7
      %v5625 = vsub.s32 %v5622, %v5624
      %v5626 = vrot.slane %v5551, %v5625
      %v5628 = vunpack.c.l.s4 1983009808
      %v5629 = vunpack.c.0.s8 %v5628
      %v5630 = vlaneseq
      %v5631 = vshrl.u32 %v5630, 7
      %v5632 = vsub.s32 %v5629, %v5631
      %v5633 = vrot.slane %v5619, %v5632
      %v5634 = vcombine.high %v5552, 0.0
      %v5636 = vunpack.c.l.s4 1983009808
      %v5637 = vunpack.c.0.s8 %v5636
      %v5638 = vlaneseq
      %v5639 = vshrl.u32 %v5638, 7
      %v5640 = vsub.s32 %v5637, %v5639
      %v5641 = vrot.slane %v5552, %v5640
      %v5643 = vunpack.c.l.s4 1983009808
      %v5644 = vunpack.c.0.s8 %v5643
      %v5645 = vlaneseq
      %v5646 = vshrl.u32 %v5645, 7
      %v5647 = vsub.s32 %v5644, %v5646
      %v5648 = vrot.slane %v5634, %v5647
      %v5649 = vcombine.low %v5626, %v5641
      %v5650 = vcombine.high %v5626, %v5641
      %v5652 = vunpack.c.l.s4 1934713408
      %v5653 = vunpack.c.0.s8 %v5652
      %v5654 = vlaneseq
      %v5655 = vshrl.u32 %v5654, 7
      %v5656 = vsub.s32 %v5653, %v5655
      %v5657 = vrot.slane %v5649, %v5656
      %v5659 = vunpack.c.l.s4 1934713408
      %v5660 = vunpack.c.0.s8 %v5659
      %v5661 = vlaneseq
      %v5662 = vshrl.u32 %v5661, 7
      %v5663 = vsub.s32 %v5660, %v5662
      %v5664 = vrot.slane %v5650, %v5663
      %v5665 = vcombine.low %v5633, %v5648
      %v5666 = vcombine.high %v5633, %v5648
      %v5668 = vunpack.c.l.s4 1934713408
      %v5669 = vunpack.c.0.s8 %v5668
      %v5670 = vlaneseq
      %v5671 = vshrl.u32 %v5670, 7
      %v5672 = vsub.s32 %v5669, %v5671
      %v5673 = vrot.slane %v5665, %v5672
      %v5675 = vunpack.c.l.s4 1934713408
      %v5676 = vunpack.c.0.s8 %v5675
      %v5677 = vlaneseq
      %v5678 = vshrl.u32 %v5677, 7
      %v5679 = vsub.s32 %v5676, %v5678
      %v5680 = vrot.slane %v5666, %v5679
      %v5681 = vcombine.high %v5657, 0.0
      %v5682 = vcombine.high %v5664, 0.0
      %v5683 = vcombine.high %v5673, 0.0
      %v5684 = vcombine.high %v5680, 0.0
      %v5701 = vcombine.low %v5591, %v5657
      %v5703 = vunpack.c.l.s4 1983009808
      %v5704 = vunpack.c.0.s8 %v5703
      %v5705 = vlaneseq
      %v5706 = vshrl.u32 %v5705, 7
      %v5707 = vsub.s32 %v5704, %v5706
      %v5708 = vrot.slane %v5701, %v5707
      %v5709 = vcombine.low %v5615, %v5681
      %v5711 = vunpack.c.l.s4 1983009808
      %v5712 = vunpack.c.0.s8 %v5711
      %v5713 = vlaneseq
      %v5714 = vshrl.u32 %v5713, 7
      %v5715 = vsub.s32 %v5712, %v5714
      %v5716 = vrot.slane %v5709, %v5715
      %v5717 = vcombine.low %v5598, %v5664
      %v5719 = vunpack.c.l.s4 1983009808
      %v5720 = vunpack.c.0.s8 %v5719
      %v5721 = vlaneseq
      %v5722 = vshrl.u32 %v5721, 7
      %v5723 = vsub.s32 %v5720, %v5722
      %v5724 = vrot.slane %v5717, %v5723
      %v5725 = vcombine.low %v5616, %v5682
      %v5727 = vunpack.c.l.s4 1983009808
      %v5728 = vunpack.c.0.s8 %v5727
      %v5729 = vlaneseq
      %v5730 = vshrl.u32 %v5729, 7
      %v5731 = vsub.s32 %v5728, %v5730
      %v5732 = vrot.slane %v5725, %v5731
      %v5733 = vcombine.low %v5607, %v5673
      %v5735 = vunpack.c.l.s4 1983009808
      %v5736 = vunpack.c.0.s8 %v5735
      %v5737 = vlaneseq
      %v5738 = vshrl.u32 %v5737, 7
      %v5739 = vsub.s32 %v5736, %v5738
      %v5740 = vrot.slane %v5733, %v5739
      %v5741 = vcombine.low %v5617, %v5683
      %v5743 = vunpack.c.l.s4 1983009808
      %v5744 = vunpack.c.0.s8 %v5743
      %v5745 = vlaneseq
      %v5746 = vshrl.u32 %v5745, 7
      %v5747 = vsub.s32 %v5744, %v5746
      %v5748 = vrot.slane %v5741, %v5747
      %v5749 = vcombine.low %v5614, %v5680
      %v5751 = vunpack.c.l.s4 1983009808
      %v5752 = vunpack.c.0.s8 %v5751
      %v5753 = vlaneseq
      %v5754 = vshrl.u32 %v5753, 7
      %v5755 = vsub.s32 %v5752, %v5754
      %v5756 = vrot.slane %v5749, %v5755
      %v5757 = vcombine.low %v5618, %v5684
      %v5759 = vunpack.c.l.s4 1983009808
      %v5760 = vunpack.c.0.s8 %v5759
      %v5761 = vlaneseq
      %v5762 = vshrl.u32 %v5761, 7
      %v5763 = vsub.s32 %v5760, %v5762
      %v5764 = vrot.slane %v5757, %v5763
      %v5765 = vcombine.low %v5708, %v5716
      %v5766 = vcombine.low %v5724, %v5732
      %v5768 = vunpack.c.l.s4 1983009808
      %v5769 = vunpack.c.0.s8 %v5768
      %v5770 = vlaneseq
      %v5771 = vshrl.u32 %v5770, 7
      %v5772 = vsub.s32 %v5769, %v5771
      %v5773 = vrot.slane %v5765, %v5772
      %v5775 = vunpack.c.l.s4 1983009808
      %v5776 = vunpack.c.0.s8 %v5775
      %v5777 = vlaneseq
      %v5778 = vshrl.u32 %v5777, 7
      %v5779 = vsub.s32 %v5776, %v5778
      %v5780 = vrot.slane %v5766, %v5779
      %v5781 = vcombine.low %v5773, %v5780
      %v5782 = vcombine.high %v5773, %v5780
      %v5783 = vcombine.low %v5740, %v5748
      %v5784 = vcombine.low %v5756, %v5764
      %v5786 = vunpack.c.l.s4 1983009808
      %v5787 = vunpack.c.0.s8 %v5786
      %v5788 = vlaneseq
      %v5789 = vshrl.u32 %v5788, 7
      %v5790 = vsub.s32 %v5787, %v5789
      %v5791 = vrot.slane %v5783, %v5790
      %v5793 = vunpack.c.l.s4 1983009808
      %v5794 = vunpack.c.0.s8 %v5793
      %v5795 = vlaneseq
      %v5796 = vshrl.u32 %v5795, 7
      %v5797 = vsub.s32 %v5794, %v5796
      %v5798 = vrot.slane %v5784, %v5797
      %v5799 = vcombine.low %v5791, %v5798
      %v5800 = vcombine.high %v5791, %v5798
      %5805 = vst [vmem:[%s468] sm:$0xff] %v5781
      %5806 = vst [vmem:[%s468 + $0x8] sm:$0xff] %v5782
      %5807 = vst [vmem:[%s468 + $0x10] sm:$0xff] %v5799
      %5808 = vst [vmem:[%s468 + $0x18] sm:$0xff] %v5800
      %s5809 = smul.u32 2, %s28
      %p5810 = scmp.lt.s32.totalorder %s27, 1
      %s5811 = scalar_select %p5810, %s27, 1
      %p5812 = scmp.lt.s32.totalorder %s5809, 3
      %s5813 = scalar_select %p5812, %s5809, 3
      %s5814 = smul.addr %s5813, 2
      %s5815 = smul.addr %s5811, 8
      %s5816 = sadd.s32 %s5814, %s5815
      %s5817 = smul.addr %s5816, 8
      %s5818 = scalar_lea.vmem %s12, %s5817
      // Predicated region
      $region69: #{_mose_forward.2} parent=67 // pred_check
        %p5819 = pneg %p319
      $region70: #{_mose_forward.2} parent=67 // pred_check_branch
        %5821 = sbr.rel (%p5819) target = $region72
      $region71: #{_mose_forward.2} parent=67 // pred_region
        %s5822 = smul.u32 2, %s28
      $region72: #{_mose_forward.2} parent=67 // pred_fallthru
        _
    $region68: #{_mose_forward.2} parent=5 // pred_fallthru
      _
    %p5823 = scmp.le.s32.totalorder 2, %s18
    // Predicated region
    $region73: #{_mose_forward.2} parent=5 // pred_check
      %p5824 = pneg %p5823
    $region74: #{_mose_forward.2} parent=5 // pred_check_branch
      %5826 = sbr.rel (%p5824) target = $region76
    $region75: #{_mose_forward.2} parent=5 // pred_region
      %s5827 = ssub.s32 %s18, 2
      // Predicated region
      $region77: #{_mose_forward.2} parent=75 // pred_check
        %p5828 = pneg %p325
      $region78: #{_mose_forward.2} parent=75 // pred_check_branch
        %5830 = sbr.rel (%p5828) target = $region80
      $region79: #{_mose_forward.2} parent=75 // pred_region
        %s5831 = smul.u32 2, %s30
        %p5832 = scmp.lt.s32.totalorder %s29, 1
        %s5833 = scalar_select %p5832, %s29, 1
        %p5834 = scmp.lt.s32.totalorder %s5831, 3
        %s5835 = scalar_select %p5834, %s5831, 3
        %s5836 = smul.addr %s5835, 2
        %s5837 = smul.addr %s5833, 8
        %s5838 = sadd.s32 %s5836, %s5837
        %s5839 = smul.addr %s5838, 8
        %s5840 = scalar_lea.vmem %s12, %s5839
      $region80: #{_mose_forward.2} parent=75 // pred_fallthru
        _
    $region76: #{_mose_forward.2} parent=5 // pred_fallthru
      _
  $region6: #{_mose_forward.2} parent=0 // loop_footer
    %s22 = sadd.s32 1, %s18
  $region7: #{_mose_forward.2} parent=0 // loop_footer_branch
    %17 = sbr.rel target = $region3
  $region8: #{_mose_forward.2} parent=0 // loop_exit
    _

</llo_original>
